<compile_context>
chip_gen: v7x
topology: tpu7x:2x2x1
jax: 0.10.0
libtpu: 0.0.40
codegen_flags: <defaults>
</compile_context>

<pallas_src>
import jax
import jax.numpy as jnp
from jax.experimental import pallas as pl
from jax.experimental.pallas import tpu as pltpu

OUT_PAD = 128  # lane-dense slab width


def ggnn_kernel(adj_ref, seg_ref, segt_ref, x_ref,
                w_a_ref, w_b_ref, b_gru_ref, w_head_ref, b_head_ref,
                out_ref):
    f32 = jnp.float32
    bf16 = jnp.bfloat16

    N, H = x_ref.shape
    num_layers = w_a_ref.shape[0]

    adj = adj_ref[...]                                   # (N, N) bf16 block-diag adjacency (sum aggr)
    h = x_ref[...].astype(f32)                           # (N, H) initial node state (zero-padded feats)
    w_b = w_b_ref[...]                                   # (H, 4H) bf16 shared GRUCell hidden projection
    # bias broadcast hoisted out of the unrolled layer loop (JAX does not CSE broadcast_in_dim)
    bias = jnp.broadcast_to(b_gru_ref[...], (N, 4 * H))  # (N, 4H) f32

    # ---- GatedGraphConv: num_layers GRU steps, sum aggregation, shared GRUCell ----
    # gate slab layout (4H = 128 lanes = one vreg): [r_pre | z_pre | gi_n | gh_n]
    # TODO(synk): on v6e/v7x the elementwise GRU math could run in bf16; kept f32 for v5e parity.
    for layer in range(num_layers):                      # static unroll (num_layers is tiny)
        h_bf = h.astype(bf16)
        agg = jnp.dot(adj, h_bf, preferred_element_type=f32)                       # (N, H)
        gates = (jnp.dot(agg.astype(bf16), w_a_ref[layer], preferred_element_type=f32)
                 + jnp.dot(h_bf, w_b, preferred_element_type=f32)
                 + bias)                                                            # (N, 4H)
        r = jax.nn.sigmoid(gates[:, 0:H])
        z = jax.nn.sigmoid(gates[:, H:2 * H])
        n = jnp.tanh(gates[:, 2 * H:3 * H] + r * gates[:, 3 * H:4 * H])
        h = (1.0 - z) * n + z * h

    # ---- fused head (lane-dense 128 wide): [linear_1 | gate_nn | zeros] ----
    head = (jnp.dot(h.astype(bf16), w_head_ref[...], preferred_element_type=f32)
            + b_head_ref[...])                                                      # (N, 128)
    x2 = jnp.tanh(head[:, 0:H])                          # tanh(linear_1(x_ggnn))
    gate = head[:, H:H + 1]                              # (N, 1) attention gate logits

    # ---- per-graph max shift (exact: softmax is shift-invariant per graph) ----
    seg_t = segt_ref[...]                                # (N, G) f32 graph one-hot (transposed)
    masked = jnp.where(seg_t > 0.5, gate, -1e30)         # (N, G)
    gmax = jnp.max(masked, axis=0, keepdims=True)        # (1, G) per-graph max over member nodes
    node_max = jnp.sum(seg_t * gmax, axis=1, keepdims=True)   # (N, 1) scatter max back to nodes
    e = jnp.exp(gate - node_max)                         # (N, 1), in (0, 1]

    # ---- one lane-dense pooling matmul: seg @ [e*h | tanh(lin1(h)) | e | zeros] ----
    pad = jnp.zeros((N, OUT_PAD - 2 * H - 1), f32)
    vals = jnp.concatenate([e * h, x2, e, pad], axis=1).astype(bf16)                # (N, 128)
    pooled = jnp.dot(seg_ref[...], vals, preferred_element_type=f32)                # (G, 128)

    denom = jnp.maximum(pooled[:, 2 * H:2 * H + 1], 1e-30)    # softmax denominator (>= 1 here)
    inv = pl.reciprocal(denom, approx=True)                   # EUP slot, ~free
    att = pooled[:, 0:H] * inv                                # attention pooling
    bsum = pooled[:, H:2 * H]                                 # scatter_add of tanh(linear_1(h))
    result = jnp.tanh(att * bsum)                             # (G, H)

    # lane-dense, unmasked full-width store into the (G, 128) slab
    out_pad = jnp.zeros((result.shape[0], OUT_PAD - H), f32)
    out_ref[...] = jnp.concatenate([result, out_pad], axis=1)


def ggnn_forward(adj_blocks, seg_blocks, seg_t_blocks, x,
                 w_a, w_b, b_gru, w_head, b_head, *, out_channels):
    NB, N_BLK, _ = adj_blocks.shape
    G_BLK = seg_blocks.shape[1]
    G = NB * G_BLK
    H = out_channels

    out = pl.pallas_call(
        ggnn_kernel,
        out_shape=jax.ShapeDtypeStruct((G, OUT_PAD), jnp.float32),
        grid=(NB,),
        in_specs=[
            pl.BlockSpec((None, N_BLK, N_BLK), lambda b: (b, 0, 0)),   # adjacency block (diag)
            pl.BlockSpec((None, G_BLK, N_BLK), lambda b: (b, 0, 0)),   # segment one-hot (G, N)
            pl.BlockSpec((None, N_BLK, G_BLK), lambda b: (b, 0, 0)),   # segment one-hot (N, G)
            pl.BlockSpec((N_BLK, H), lambda b: (b, 0)),                # node features (rows)
            pl.BlockSpec(w_a.shape, lambda b: (0, 0, 0)),              # per-layer folded GRU input proj
            pl.BlockSpec(w_b.shape, lambda b: (0, 0)),                 # shared GRU hidden proj
            pl.BlockSpec(b_gru.shape, lambda b: (0, 0)),
            pl.BlockSpec(w_head.shape, lambda b: (0, 0)),              # fused head weights
            pl.BlockSpec(b_head.shape, lambda b: (0, 0)),
        ],
        out_specs=pl.BlockSpec((G_BLK, OUT_PAD), lambda b: (b, 0)),
        compiler_params=pltpu.CompilerParams(
            dimension_semantics=("parallel",)),                        # even grid -> both TCs on v7x
    )(adj_blocks, seg_blocks, seg_t_blocks, x, w_a, w_b, b_gru, w_head, b_head)
    return out[:, :H]


def init_params(key, out_channels, num_layers):
    """Raw parameters mirroring the PyTorch module's shapes."""
    H = out_channels
    ks = jax.random.split(key, 9)
    s = 0.15
    w_layers = jax.random.normal(ks[0], (num_layers, H, H), jnp.float32) * s  # GatedGraphConv.weight
    w_ih = jax.random.normal(ks[1], (3 * H, H), jnp.float32) * s              # GRUCell.weight_ih
    w_hh = jax.random.normal(ks[2], (3 * H, H), jnp.float32) * s              # GRUCell.weight_hh
    b_ih = jax.random.normal(ks[3], (3 * H,), jnp.float32) * s
    b_hh = jax.random.normal(ks[4], (3 * H,), jnp.float32) * s
    gate_w = jax.random.normal(ks[5], (1, H), jnp.float32) * s                # gate_nn: Linear(H, 1)
    gate_b = jax.random.normal(ks[6], (1,), jnp.float32) * s
    lin1_w = jax.random.normal(ks[7], (H, H), jnp.float32) * s                # linear_1: Linear(H, H)
    lin1_b = jax.random.normal(ks[8], (H,), jnp.float32) * s
    return (w_layers, w_ih, w_hh, b_ih, b_hh, gate_w, gate_b, lin1_w, lin1_b)


def prepare_fused_params(params, out_pad=OUT_PAD):
    """Fold + fuse weights into lane-dense slabs (2 matmuls per GRU layer, 2 for head/pool)."""
    w_layers, w_ih, w_hh, b_ih, b_hh, gate_w, gate_b, lin1_w, lin1_b = params
    L, H, _ = w_layers.shape
    # gi = (A @ (h @ W_l)) @ W_ih^T = (A @ h) @ (W_l @ W_ih^T)  (fold propagate weight)
    w_fold = jnp.einsum('lhk,mk->lhm', w_layers, w_ih)               # (L, H, 3H), cols [r|z|n]
    w_hh_t = w_hh.T                                                  # (H, 3H),    cols [r|z|n]
    zeros_h = jnp.zeros((H, H), jnp.float32)
    # gate slab layout [r_pre | z_pre | gi_n | gh_n]  (width 4H = 128)
    w_a = jnp.concatenate([w_fold, jnp.zeros((L, H, H), jnp.float32)], axis=2)    # (L, H, 4H)
    w_b = jnp.concatenate([w_hh_t[:, 0:2 * H], zeros_h, w_hh_t[:, 2 * H:3 * H]], axis=1)  # (H, 4H)
    b_gru = jnp.concatenate([b_ih[0:2 * H] + b_hh[0:2 * H],
                             b_ih[2 * H:3 * H], b_hh[2 * H:3 * H]])[None, :]      # (1, 4H)
    # fused head padded to 128 lanes: [linear_1^T | gate_nn^T | zeros]
    w_head = jnp.concatenate([lin1_w.T, gate_w.T,
                              jnp.zeros((H, out_pad - H - 1), jnp.float32)], axis=1)   # (H, 128)
    b_head = jnp.concatenate([lin1_b, gate_b,
                              jnp.zeros((out_pad - H - 1,), jnp.float32)])[None, :]    # (1, 128)
    return (w_a.astype(jnp.bfloat16), w_b.astype(jnp.bfloat16), b_gru.astype(jnp.float32),
            w_head.astype(jnp.bfloat16), b_head.astype(jnp.float32))


def build_graph(num_graphs, nodes_per_graph):
    """Deterministic bidirectional ring inside each graph."""
    src, dst = [], []
    for g in range(num_graphs):
        off = g * nodes_per_graph
        for i in range(nodes_per_graph):
            a = off + i
            b = off + (i + 1) % nodes_per_graph
            src += [a, b]
            dst += [b, a]
    edge_index = jnp.array([src, dst], dtype=jnp.int32)
    batch = jnp.repeat(jnp.arange(num_graphs, dtype=jnp.int32), nodes_per_graph)
    return edge_index, batch


def build_block_operators(edge_index, batch, num_graphs, nodes_per_graph, graphs_per_block):
    """Block-diag dense adjacency (sum aggregation) + segment one-hots, per 128-node graph block."""
    num_nodes = num_graphs * nodes_per_graph
    src, dst = edge_index[0], edge_index[1]
    adj = jnp.zeros((num_nodes, num_nodes), jnp.float32).at[dst, src].add(1.0)
    onehot = (batch[None, :] == jnp.arange(num_graphs, dtype=jnp.int32)[:, None]).astype(jnp.float32)
    NB = num_graphs // graphs_per_block
    n_blk = graphs_per_block * nodes_per_graph
    adj_blocks = jnp.stack([adj[b * n_blk:(b + 1) * n_blk, b * n_blk:(b + 1) * n_blk]
                            for b in range(NB)])
    seg_blocks = jnp.stack([onehot[b * graphs_per_block:(b + 1) * graphs_per_block,
                                   b * n_blk:(b + 1) * n_blk] for b in range(NB)])
    seg_t_blocks = jnp.transpose(seg_blocks, (0, 2, 1))
    return (adj_blocks.astype(jnp.bfloat16), seg_blocks.astype(jnp.bfloat16),
            seg_t_blocks.astype(jnp.float32))


def ggnn_reference_f32(x, edge_index, batch, num_graphs, params):
    """Pure-JAX f32 reference mirroring the PyTorch module's forward (unfused)."""
    w_layers, w_ih, w_hh, b_ih, b_hh, gate_w, gate_b, lin1_w, lin1_b = params
    N = x.shape[0]
    H = w_ih.shape[1]
    src, dst = edge_index[0], edge_index[1]
    adj = jnp.zeros((N, N), jnp.float32).at[dst, src].add(1.0)
    h = x
    for l in range(w_layers.shape[0]):
        m = adj @ (h @ w_layers[l])                      # propagate + sum aggregation
        gi = m @ w_ih.T + b_ih
        gh = h @ w_hh.T + b_hh
        r = jax.nn.sigmoid(gi[:, :H] + gh[:, :H])
        z = jax.nn.sigmoid(gi[:, H:2 * H] + gh[:, H:2 * H])
        n = jnp.tanh(gi[:, 2 * H:] + r * gh[:, 2 * H:])
        h = (1.0 - z) * n + z * h
    gate = h @ gate_w.T + gate_b                         # (N, 1)
    onehot = (batch[None, :] == jnp.arange(num_graphs, dtype=jnp.int32)[:, None]).astype(jnp.float32)
    gmax = jnp.max(jnp.where(onehot > 0.5, gate.T, -jnp.inf), axis=1, keepdims=True)
    e = jnp.exp(gate - gmax[batch])                      # (N, 1)
    att = (onehot @ (e * h)) / (onehot @ e)              # AttentionalAggregation (softmax pooling)
    x2 = jnp.tanh(h @ lin1_w.T + lin1_b)
    bsum = onehot @ x2                                   # scatter_add over batch
    return jnp.tanh(att * bsum)


if __name__ == "__main__":
    key = jax.random.PRNGKey(0)
    k_x, k_p = jax.random.split(key)

    IN_CHANNELS = 16
    OUT_CHANNELS = HIDDEN = 32        # module requires hidden == out_channels in forward
    NUM_LAYERS = 3
    NUM_GRAPHS = 32                   # batched graphs
    NODES_PER_GRAPH = 8
    GRAPHS_PER_BLOCK = 16             # -> N_BLK = 128 nodes/block, even grid of 2 parallel blocks

    N = NUM_GRAPHS * NODES_PER_GRAPH
    x_in = jax.random.normal(k_x, (N, IN_CHANNELS), jnp.float32)
    # GatedGraphConv zero-pads input features up to out_channels
    x = jnp.pad(x_in, ((0, 0), (0, OUT_CHANNELS - IN_CHANNELS)))

    edge_index, batch = build_graph(NUM_GRAPHS, NODES_PER_GRAPH)
    adj_blocks, seg_blocks, seg_t_blocks = build_block_operators(
        edge_index, batch, NUM_GRAPHS, NODES_PER_GRAPH, GRAPHS_PER_BLOCK)

    params = init_params(k_p, OUT_CHANNELS, NUM_LAYERS)
    w_a, w_b, b_gru, w_head, b_head = prepare_fused_params(params)

    out = ggnn_forward(adj_blocks, seg_blocks, seg_t_blocks, x,
                       w_a, w_b, b_gru, w_head, b_head, out_channels=OUT_CHANNELS)
    out = jax.block_until_ready(out)

    assert out.shape == (NUM_GRAPHS, OUT_CHANNELS)
    assert bool(jnp.all(jnp.isfinite(out)))
    assert bool(jnp.all(jnp.abs(out) <= 1.0))            # final tanh bound

    # numerical check vs the module-faithful f32 reference (loose tol absorbs bf16 matmul operands)
    ref = ggnn_reference_f32(x, edge_index, batch, NUM_GRAPHS, params)
    max_err = float(jnp.max(jnp.abs(out - ref)))
    assert max_err < 0.15, f"mismatch vs f32 reference: {max_err}"

    print("KERNEL_OK")
</pallas_src>

<mosaic_0001>
module attributes {stable_mosaic.version = 11 : i64} {
  func.func @ggnn_kernel(%arg0: i32, %arg1: memref<1x128x128xbf16, #tpu.memory_space<vmem>>, %arg2: memref<1x16x128xbf16, #tpu.memory_space<vmem>>, %arg3: memref<1x128x16xf32, #tpu.memory_space<vmem>>, %arg4: memref<128x32xf32, #tpu.memory_space<vmem>>, %arg5: memref<3x32x128xbf16, #tpu.memory_space<vmem>>, %arg6: memref<32x128xbf16, #tpu.memory_space<vmem>>, %arg7: memref<1x128xf32, #tpu.memory_space<vmem>>, %arg8: memref<32x128xbf16, #tpu.memory_space<vmem>>, %arg9: memref<1x128xf32, #tpu.memory_space<vmem>>, %arg10: memref<16x128xf32, #tpu.memory_space<vmem>>) attributes {dimension_semantics = [#tpu.dimension_semantics<parallel>], iteration_bounds = array<i64: 2>, scalar_prefetch = 0 : i64, scratch_operands = 0 : i64, tpu.core_type = #tpu.core_type<tc>, window_params = [{transform_indices = @transform_0, window_bounds = array<i64: 1, 128, 128>}, {transform_indices = @transform_1, window_bounds = array<i64: 1, 16, 128>}, {transform_indices = @transform_2, window_bounds = array<i64: 1, 128, 16>}, {transform_indices = @transform_3, window_bounds = array<i64: 128, 32>}, {pipeline_mode = #tpu.pipeline_mode<synchronous>, transform_indices = @transform_4, window_bounds = array<i64: 3, 32, 128>}, {pipeline_mode = #tpu.pipeline_mode<synchronous>, transform_indices = @transform_5, window_bounds = array<i64: 32, 128>}, {pipeline_mode = #tpu.pipeline_mode<synchronous>, transform_indices = @transform_6, window_bounds = array<i64: 1, 128>}, {pipeline_mode = #tpu.pipeline_mode<synchronous>, transform_indices = @transform_7, window_bounds = array<i64: 32, 128>}, {pipeline_mode = #tpu.pipeline_mode<synchronous>, transform_indices = @transform_8, window_bounds = array<i64: 1, 128>}, {transform_indices = @transform_9, window_bounds = array<i64: 16, 128>}]} {
    %c0 = arith.constant 0 : index
    %c0_0 = arith.constant 0 : index
    %c0_1 = arith.constant 0 : index
    %0 = vector.load %arg1[%c0, %c0_0, %c0_1] : memref<1x128x128xbf16, #tpu.memory_space<vmem>>, vector<1x128x128xbf16>
    %1 = vector.shape_cast %0 : vector<1x128x128xbf16> to vector<128x128xbf16>
    %c0_2 = arith.constant 0 : index
    %c0_3 = arith.constant 0 : index
    %2 = vector.load %arg4[%c0_2, %c0_3] : memref<128x32xf32, #tpu.memory_space<vmem>>, vector<128x32xf32>
    %c0_4 = arith.constant 0 : index
    %c0_5 = arith.constant 0 : index
    %3 = vector.load %arg6[%c0_4, %c0_5] : memref<32x128xbf16, #tpu.memory_space<vmem>>, vector<32x128xbf16>
    %c0_6 = arith.constant 0 : index
    %c0_7 = arith.constant 0 : index
    %4 = vector.load %arg7[%c0_6, %c0_7] : memref<1x128xf32, #tpu.memory_space<vmem>>, vector<1x128xf32>
    %5 = vector.shape_cast %4 : vector<1x128xf32> to vector<1x128xf32>
    %6 = vector.broadcast %5 : vector<1x128xf32> to vector<128x128xf32>
    %7 = arith.truncf %2 : vector<128x32xf32> to vector<128x32xbf16>
    %cst = arith.constant dense<0.000000e+00> : vector<128x32xf32>
    %8 = tpu.matmul %1, %7, %cst {dimension_numbers = #tpu.dot_dimension_numbers<[1], [0], [0], [1], [0, 0, 1, 1], [], []>} : vector<128x128xbf16>, vector<128x32xbf16>, vector<128x32xf32> -> vector<128x32xf32>
    %9 = arith.truncf %8 : vector<128x32xf32> to vector<128x32xbf16>
    %c0_8 = arith.constant 0 : index
    %c0_9 = arith.constant 0 : index
    %c0_10 = arith.constant 0 : index
    %10 = vector.load %arg5[%c0_8, %c0_9, %c0_10] : memref<3x32x128xbf16, #tpu.memory_space<vmem>>, vector<1x32x128xbf16>
    %11 = vector.shape_cast %10 : vector<1x32x128xbf16> to vector<32x128xbf16>
    %cst_11 = arith.constant dense<0.000000e+00> : vector<128x128xf32>
    %12 = tpu.matmul %9, %11, %cst_11 {dimension_numbers = #tpu.dot_dimension_numbers<[1], [0], [0], [1], [0, 0, 1, 1], [], []>} : vector<128x32xbf16>, vector<32x128xbf16>, vector<128x128xf32> -> vector<128x128xf32>
    %cst_12 = arith.constant dense<0.000000e+00> : vector<128x128xf32>
    %13 = tpu.matmul %7, %3, %cst_12 {dimension_numbers = #tpu.dot_dimension_numbers<[1], [0], [0], [1], [0, 0, 1, 1], [], []>} : vector<128x32xbf16>, vector<32x128xbf16>, vector<128x128xf32> -> vector<128x128xf32>
    %14 = arith.addf %12, %13 : vector<128x128xf32>
    %15 = arith.addf %14, %6 : vector<128x128xf32>
    %16 = vector.extract_strided_slice %15 {offsets = [0, 0], sizes = [128, 32], strides = [1, 1]} : vector<128x128xf32> to vector<128x32xf32>
    %17 = arith.negf %16 : vector<128x32xf32>
    %18 = math.exp %17 : vector<128x32xf32>
    %cst_13 = arith.constant 1.000000e+00 : f32
    %19 = vector.broadcast %cst_13 : f32 to vector<128x32xf32>
    %20 = arith.addf %19, %18 : vector<128x32xf32>
    %21 = arith.divf %19, %20 : vector<128x32xf32>
    %22 = vector.extract_strided_slice %15 {offsets = [0, 32], sizes = [128, 32], strides = [1, 1]} : vector<128x128xf32> to vector<128x32xf32>
    %23 = arith.negf %22 : vector<128x32xf32>
    %24 = math.exp %23 : vector<128x32xf32>
    %cst_14 = arith.constant 1.000000e+00 : f32
    %25 = vector.broadcast %cst_14 : f32 to vector<128x32xf32>
    %26 = arith.addf %25, %24 : vector<128x32xf32>
    %27 = arith.divf %25, %26 : vector<128x32xf32>
    %28 = vector.extract_strided_slice %15 {offsets = [0, 64], sizes = [128, 32], strides = [1, 1]} : vector<128x128xf32> to vector<128x32xf32>
    %29 = vector.extract_strided_slice %15 {offsets = [0, 96], sizes = [128, 32], strides = [1, 1]} : vector<128x128xf32> to vector<128x32xf32>
    %30 = arith.mulf %21, %29 : vector<128x32xf32>
    %31 = arith.addf %28, %30 : vector<128x32xf32>
    %32 = math.tanh %31 : vector<128x32xf32>
    %cst_15 = arith.constant 1.000000e+00 : f32
    %33 = vector.broadcast %cst_15 : f32 to vector<128x32xf32>
    %34 = arith.subf %33, %27 : vector<128x32xf32>
    %35 = arith.mulf %34, %32 : vector<128x32xf32>
    %36 = arith.mulf %27, %2 : vector<128x32xf32>
    %37 = arith.addf %35, %36 : vector<128x32xf32>
    %38 = arith.truncf %37 : vector<128x32xf32> to vector<128x32xbf16>
    %cst_16 = arith.constant dense<0.000000e+00> : vector<128x32xf32>
    %39 = tpu.matmul %1, %38, %cst_16 {dimension_numbers = #tpu.dot_dimension_numbers<[1], [0], [0], [1], [0, 0, 1, 1], [], []>} : vector<128x128xbf16>, vector<128x32xbf16>, vector<128x32xf32> -> vector<128x32xf32>
    %40 = arith.truncf %39 : vector<128x32xf32> to vector<128x32xbf16>
    %c1 = arith.constant 1 : index
    %c0_17 = arith.constant 0 : index
    %c0_18 = arith.constant 0 : index
    %41 = vector.load %arg5[%c1, %c0_17, %c0_18] : memref<3x32x128xbf16, #tpu.memory_space<vmem>>, vector<1x32x128xbf16>
    %42 = vector.shape_cast %41 : vector<1x32x128xbf16> to vector<32x128xbf16>
    %cst_19 = arith.constant dense<0.000000e+00> : vector<128x128xf32>
    %43 = tpu.matmul %40, %42, %cst_19 {dimension_numbers = #tpu.dot_dimension_numbers<[1], [0], [0], [1], [0, 0, 1, 1], [], []>} : vector<128x32xbf16>, vector<32x128xbf16>, vector<128x128xf32> -> vector<128x128xf32>
    %cst_20 = arith.constant dense<0.000000e+00> : vector<128x128xf32>
    %44 = tpu.matmul %38, %3, %cst_20 {dimension_numbers = #tpu.dot_dimension_numbers<[1], [0], [0], [1], [0, 0, 1, 1], [], []>} : vector<128x32xbf16>, vector<32x128xbf16>, vector<128x128xf32> -> vector<128x128xf32>
    %45 = arith.addf %43, %44 : vector<128x128xf32>
    %46 = arith.addf %45, %6 : vector<128x128xf32>
    %47 = vector.extract_strided_slice %46 {offsets = [0, 0], sizes = [128, 32], strides = [1, 1]} : vector<128x128xf32> to vector<128x32xf32>
    %48 = arith.negf %47 : vector<128x32xf32>
    %49 = math.exp %48 : vector<128x32xf32>
    %cst_21 = arith.constant 1.000000e+00 : f32
    %50 = vector.broadcast %cst_21 : f32 to vector<128x32xf32>
    %51 = arith.addf %50, %49 : vector<128x32xf32>
    %52 = arith.divf %50, %51 : vector<128x32xf32>
    %53 = vector.extract_strided_slice %46 {offsets = [0, 32], sizes = [128, 32], strides = [1, 1]} : vector<128x128xf32> to vector<128x32xf32>
    %54 = arith.negf %53 : vector<128x32xf32>
    %55 = math.exp %54 : vector<128x32xf32>
    %cst_22 = arith.constant 1.000000e+00 : f32
    %56 = vector.broadcast %cst_22 : f32 to vector<128x32xf32>
    %57 = arith.addf %56, %55 : vector<128x32xf32>
    %58 = arith.divf %56, %57 : vector<128x32xf32>
    %59 = vector.extract_strided_slice %46 {offsets = [0, 64], sizes = [128, 32], strides = [1, 1]} : vector<128x128xf32> to vector<128x32xf32>
    %60 = vector.extract_strided_slice %46 {offsets = [0, 96], sizes = [128, 32], strides = [1, 1]} : vector<128x128xf32> to vector<128x32xf32>
    %61 = arith.mulf %52, %60 : vector<128x32xf32>
    %62 = arith.addf %59, %61 : vector<128x32xf32>
    %63 = math.tanh %62 : vector<128x32xf32>
    %cst_23 = arith.constant 1.000000e+00 : f32
    %64 = vector.broadcast %cst_23 : f32 to vector<128x32xf32>
    %65 = arith.subf %64, %58 : vector<128x32xf32>
    %66 = arith.mulf %65, %63 : vector<128x32xf32>
    %67 = arith.mulf %58, %37 : vector<128x32xf32>
    %68 = arith.addf %66, %67 : vector<128x32xf32>
    %69 = arith.truncf %68 : vector<128x32xf32> to vector<128x32xbf16>
    %cst_24 = arith.constant dense<0.000000e+00> : vector<128x32xf32>
    %70 = tpu.matmul %1, %69, %cst_24 {dimension_numbers = #tpu.dot_dimension_numbers<[1], [0], [0], [1], [0, 0, 1, 1], [], []>} : vector<128x128xbf16>, vector<128x32xbf16>, vector<128x32xf32> -> vector<128x32xf32>
    %71 = arith.truncf %70 : vector<128x32xf32> to vector<128x32xbf16>
    %c2 = arith.constant 2 : index
    %c0_25 = arith.constant 0 : index
    %c0_26 = arith.constant 0 : index
    %72 = vector.load %arg5[%c2, %c0_25, %c0_26] : memref<3x32x128xbf16, #tpu.memory_space<vmem>>, vector<1x32x128xbf16>
    %73 = vector.shape_cast %72 : vector<1x32x128xbf16> to vector<32x128xbf16>
    %cst_27 = arith.constant dense<0.000000e+00> : vector<128x128xf32>
    %74 = tpu.matmul %71, %73, %cst_27 {dimension_numbers = #tpu.dot_dimension_numbers<[1], [0], [0], [1], [0, 0, 1, 1], [], []>} : vector<128x32xbf16>, vector<32x128xbf16>, vector<128x128xf32> -> vector<128x128xf32>
    %cst_28 = arith.constant dense<0.000000e+00> : vector<128x128xf32>
    %75 = tpu.matmul %69, %3, %cst_28 {dimension_numbers = #tpu.dot_dimension_numbers<[1], [0], [0], [1], [0, 0, 1, 1], [], []>} : vector<128x32xbf16>, vector<32x128xbf16>, vector<128x128xf32> -> vector<128x128xf32>
    %76 = arith.addf %74, %75 : vector<128x128xf32>
    %77 = arith.addf %76, %6 : vector<128x128xf32>
    %78 = vector.extract_strided_slice %77 {offsets = [0, 0], sizes = [128, 32], strides = [1, 1]} : vector<128x128xf32> to vector<128x32xf32>
    %79 = arith.negf %78 : vector<128x32xf32>
    %80 = math.exp %79 : vector<128x32xf32>
    %cst_29 = arith.constant 1.000000e+00 : f32
    %81 = vector.broadcast %cst_29 : f32 to vector<128x32xf32>
    %82 = arith.addf %81, %80 : vector<128x32xf32>
    %83 = arith.divf %81, %82 : vector<128x32xf32>
    %84 = vector.extract_strided_slice %77 {offsets = [0, 32], sizes = [128, 32], strides = [1, 1]} : vector<128x128xf32> to vector<128x32xf32>
    %85 = arith.negf %84 : vector<128x32xf32>
    %86 = math.exp %85 : vector<128x32xf32>
    %cst_30 = arith.constant 1.000000e+00 : f32
    %87 = vector.broadcast %cst_30 : f32 to vector<128x32xf32>
    %88 = arith.addf %87, %86 : vector<128x32xf32>
    %89 = arith.divf %87, %88 : vector<128x32xf32>
    %90 = vector.extract_strided_slice %77 {offsets = [0, 64], sizes = [128, 32], strides = [1, 1]} : vector<128x128xf32> to vector<128x32xf32>
    %91 = vector.extract_strided_slice %77 {offsets = [0, 96], sizes = [128, 32], strides = [1, 1]} : vector<128x128xf32> to vector<128x32xf32>
    %92 = arith.mulf %83, %91 : vector<128x32xf32>
    %93 = arith.addf %90, %92 : vector<128x32xf32>
    %94 = math.tanh %93 : vector<128x32xf32>
    %cst_31 = arith.constant 1.000000e+00 : f32
    %95 = vector.broadcast %cst_31 : f32 to vector<128x32xf32>
    %96 = arith.subf %95, %89 : vector<128x32xf32>
    %97 = arith.mulf %96, %94 : vector<128x32xf32>
    %98 = arith.mulf %89, %68 : vector<128x32xf32>
    %99 = arith.addf %97, %98 : vector<128x32xf32>
    %100 = arith.truncf %99 : vector<128x32xf32> to vector<128x32xbf16>
    %c0_32 = arith.constant 0 : index
    %c0_33 = arith.constant 0 : index
    %101 = vector.load %arg8[%c0_32, %c0_33] : memref<32x128xbf16, #tpu.memory_space<vmem>>, vector<32x128xbf16>
    %cst_34 = arith.constant dense<0.000000e+00> : vector<128x128xf32>
    %102 = tpu.matmul %100, %101, %cst_34 {dimension_numbers = #tpu.dot_dimension_numbers<[1], [0], [0], [1], [0, 0, 1, 1], [], []>} : vector<128x32xbf16>, vector<32x128xbf16>, vector<128x128xf32> -> vector<128x128xf32>
    %c0_35 = arith.constant 0 : index
    %c0_36 = arith.constant 0 : index
    %103 = vector.load %arg9[%c0_35, %c0_36] : memref<1x128xf32, #tpu.memory_space<vmem>>, vector<1x128xf32>
    %104 = vector.broadcast %103 : vector<1x128xf32> to vector<128x128xf32>
    %105 = arith.addf %102, %104 : vector<128x128xf32>
    %106 = vector.extract_strided_slice %105 {offsets = [0, 0], sizes = [128, 32], strides = [1, 1]} : vector<128x128xf32> to vector<128x32xf32>
    %107 = math.tanh %106 : vector<128x32xf32>
    %108 = vector.extract_strided_slice %105 {offsets = [0, 32], sizes = [128, 1], strides = [1, 1]} : vector<128x128xf32> to vector<128x1xf32>
    %c0_37 = arith.constant 0 : index
    %c0_38 = arith.constant 0 : index
    %c0_39 = arith.constant 0 : index
    %109 = vector.load %arg3[%c0_37, %c0_38, %c0_39] : memref<1x128x16xf32, #tpu.memory_space<vmem>>, vector<1x128x16xf32>
    %110 = vector.shape_cast %109 : vector<1x128x16xf32> to vector<128x16xf32>
    %cst_40 = arith.constant 5.000000e-01 : f32
    %111 = vector.broadcast %cst_40 : f32 to vector<128x16xf32>
    %112 = arith.cmpf ogt, %110, %111 : vector<128x16xf32>
    %cst_41 = arith.constant -1.000000e+30 : f32
    %113 = vector.shape_cast %108 : vector<128x1xf32> to vector<128x1xf32>
    %114 = vector.broadcast %113 : vector<128x1xf32> to vector<128x16xf32>
    %115 = vector.broadcast %cst_41 : f32 to vector<128x16xf32>
    %116 = arith.select %112, %114, %115 : vector<128x16xi1>, vector<128x16xf32>
    %cst_42 = arith.constant dense<0xFF800000> : vector<16xf32>
    %117 = vector.multi_reduction <maximumf>, %116, %cst_42 [0] : vector<128x16xf32> to vector<16xf32>
    %118 = vector.shape_cast %117 : vector<16xf32> to vector<1x16xf32>
    %119 = vector.broadcast %118 : vector<1x16xf32> to vector<128x16xf32>
    %120 = arith.mulf %110, %119 : vector<128x16xf32>
    %cst_43 = arith.constant dense<0.000000e+00> : vector<128xf32>
    %121 = vector.multi_reduction <add>, %120, %cst_43 [1] : vector<128x16xf32> to vector<128xf32>
    %122 = vector.shape_cast %121 : vector<128xf32> to vector<128x1xf32>
    %123 = arith.subf %108, %122 : vector<128x1xf32>
    %124 = math.exp %123 : vector<128x1xf32>
    %cst_44 = arith.constant 0.000000e+00 : f32
    %125 = vector.broadcast %cst_44 : f32 to vector<128x63xf32>
    %126 = vector.broadcast %124 : vector<128x1xf32> to vector<128x32xf32>
    %127 = arith.mulf %126, %99 : vector<128x32xf32>
    %128 = tpu.concatenate %127, %107, %124, %125 in 1 : vector<128x32xf32>, vector<128x32xf32>, vector<128x1xf32>, vector<128x63xf32> -> vector<128x128xf32>
    %129 = arith.truncf %128 : vector<128x128xf32> to vector<128x128xbf16>
    %c0_45 = arith.constant 0 : index
    %c0_46 = arith.constant 0 : index
    %c0_47 = arith.constant 0 : index
    %130 = vector.load %arg2[%c0_45, %c0_46, %c0_47] : memref<1x16x128xbf16, #tpu.memory_space<vmem>>, vector<1x16x128xbf16>
    %131 = vector.shape_cast %130 : vector<1x16x128xbf16> to vector<16x128xbf16>
    %cst_48 = arith.constant dense<0.000000e+00> : vector<16x128xf32>
    %132 = tpu.matmul %131, %129, %cst_48 {dimension_numbers = #tpu.dot_dimension_numbers<[1], [0], [0], [1], [0, 0, 1, 1], [], []>} : vector<16x128xbf16>, vector<128x128xbf16>, vector<16x128xf32> -> vector<16x128xf32>
    %133 = vector.extract_strided_slice %132 {offsets = [0, 64], sizes = [16, 1], strides = [1, 1]} : vector<16x128xf32> to vector<16x1xf32>
    %cst_49 = arith.constant 1.000000e-30 : f32
    %134 = vector.broadcast %cst_49 : f32 to vector<16x1xf32>
    %135 = arith.maximumf %133, %134 : vector<16x1xf32>
    %136 = tpu.reciprocal %135 {approx = true} : vector<16x1xf32> -> vector<16x1xf32>
    %137 = vector.extract_strided_slice %132 {offsets = [0, 0], sizes = [16, 32], strides = [1, 1]} : vector<16x128xf32> to vector<16x32xf32>
    %138 = vector.broadcast %136 : vector<16x1xf32> to vector<16x32xf32>
    %139 = arith.mulf %137, %138 : vector<16x32xf32>
    %140 = vector.extract_strided_slice %132 {offsets = [0, 32], sizes = [16, 32], strides = [1, 1]} : vector<16x128xf32> to vector<16x32xf32>
    %141 = arith.mulf %139, %140 : vector<16x32xf32>
    %142 = math.tanh %141 : vector<16x32xf32>
    %cst_50 = arith.constant 0.000000e+00 : f32
    %143 = vector.broadcast %cst_50 : f32 to vector<16x96xf32>
    %144 = tpu.concatenate %142, %143 in 1 : vector<16x32xf32>, vector<16x96xf32> -> vector<16x128xf32>
    %c0_51 = arith.constant 0 : index
    %c0_52 = arith.constant 0 : index
    %145 = vector.load %arg10[%c0_51, %c0_52] : memref<16x128xf32, #tpu.memory_space<vmem>>, vector<16x128xf32>
    tpu.vector_store %arg10[%c0_51, %c0_52], %144 {strides = array<i32>} : memref<16x128xf32, #tpu.memory_space<vmem>>, vector<16x128xf32>,
    return
  }
  func.func @transform_0(%arg0: i32) -> (i32, i32, i32) {
    %c0_i32 = arith.constant 0 : i32
    %c0_i32_0 = arith.constant 0 : i32
    %c0_i32_1 = arith.constant 0 : i32
    return %arg0, %c0_i32, %c0_i32_0 : i32, i32, i32
  }
  func.func @transform_1(%arg0: i32) -> (i32, i32, i32) {
    %c0_i32 = arith.constant 0 : i32
    %c0_i32_0 = arith.constant 0 : i32
    %c0_i32_1 = arith.constant 0 : i32
    return %arg0, %c0_i32, %c0_i32_0 : i32, i32, i32
  }
  func.func @transform_2(%arg0: i32) -> (i32, i32, i32) {
    %c0_i32 = arith.constant 0 : i32
    %c0_i32_0 = arith.constant 0 : i32
    %c0_i32_1 = arith.constant 0 : i32
    return %arg0, %c0_i32, %c0_i32_0 : i32, i32, i32
  }
  func.func @transform_3(%arg0: i32) -> (i32, i32) {
    %c0_i32 = arith.constant 0 : i32
    %c0_i32_0 = arith.constant 0 : i32
    return %arg0, %c0_i32 : i32, i32
  }
  func.func @transform_4(%arg0: i32) -> (i32, i32, i32) {
    %c0_i32 = arith.constant 0 : i32
    %c0_i32_0 = arith.constant 0 : i32
    %c0_i32_1 = arith.constant 0 : i32
    %c0_i32_2 = arith.constant 0 : i32
    return %c0_i32, %c0_i32_0, %c0_i32_1 : i32, i32, i32
  }
  func.func @transform_5(%arg0: i32) -> (i32, i32) {
    %c0_i32 = arith.constant 0 : i32
    %c0_i32_0 = arith.constant 0 : i32
    %c0_i32_1 = arith.constant 0 : i32
    return %c0_i32, %c0_i32_0 : i32, i32
  }
  func.func @transform_6(%arg0: i32) -> (i32, i32) {
    %c0_i32 = arith.constant 0 : i32
    %c0_i32_0 = arith.constant 0 : i32
    %c0_i32_1 = arith.constant 0 : i32
    return %c0_i32, %c0_i32_0 : i32, i32
  }
  func.func @transform_7(%arg0: i32) -> (i32, i32) {
    %c0_i32 = arith.constant 0 : i32
    %c0_i32_0 = arith.constant 0 : i32
    %c0_i32_1 = arith.constant 0 : i32
    return %c0_i32, %c0_i32_0 : i32, i32
  }
  func.func @transform_8(%arg0: i32) -> (i32, i32) {
    %c0_i32 = arith.constant 0 : i32
    %c0_i32_0 = arith.constant 0 : i32
    %c0_i32_1 = arith.constant 0 : i32
    return %c0_i32, %c0_i32_0 : i32, i32
  }
  func.func @transform_9(%arg0: i32) -> (i32, i32) {
    %c0_i32 = arith.constant 0 : i32
    %c0_i32_0 = arith.constant 0 : i32
    return %arg0, %c0_i32 : i32, i32
  }
}

</mosaic_0001>

<llo_original>
// kernel: tpu_custom_call.1
$region0: #{tpu_custom_call.1}
  #allocation0 [shape = 'u32[]', space=smem, size = 0x4, offset = 0x4, fixed_abs, tag = 'smem constant byte address 0x4 - core index']
  #allocation1 [shape = 'u32[144,128]{1,0:T(1,128)}', space=vmem, size = 0x12000, scoped, tag = 'internal scratch']
  %s0 = inlined_call_operand.vmem [shape: bf16[2,128,128], index: 0, kind: input, shape index: {}]
  %s1 = inlined_call_operand.vmem [shape: bf16[2,16,128], index: 1, kind: input, shape index: {}]
  %s2 = inlined_call_operand.vmem [shape: f32[2,128,16], index: 2, kind: input, shape index: {}]
  %s3 = inlined_call_operand.vmem [shape: f32[256,32], index: 3, kind: input, shape index: {}]
  %s4 = inlined_call_operand.vmem [shape: bf16[3,32,128], index: 4, kind: input, shape index: {}]
  %s5 = inlined_call_operand.vmem [shape: bf16[32,128], index: 5, kind: input, shape index: {}]
  %s6 = inlined_call_operand.vmem [shape: f32[1,128], index: 6, kind: input, shape index: {}]
  %s7 = inlined_call_operand.vmem [shape: bf16[32,128], index: 7, kind: input, shape index: {}]
  %s8 = inlined_call_operand.vmem [shape: f32[1,128], index: 8, kind: input, shape index: {}]
  %s9 = inlined_call_operand.hbm [shape: f32[32,128], index: 9, kind: output, shape index: {}]
  %s10 = sld [smem:[#allocation0]]
  $region69: #{tpu_custom_call.1} parent=0
    _
  %s12 = ssub.s32 1, %s10
  %s13 = scalar_select 0, %s12, %s10
  $region1: #{tpu_custom_call.1} parent=0
    #allocation2 [shape = 'u8[16384]{0}', space=vmem, size = 0x4000, scoped, tag = 'output window, operand 0']
    #allocation3 [shape = 's32[2]{0}', space=sflag, size = 0x8, scoped, tag = 'scoped memory for tpu_custom_call.1']
    %14 = vsyncpa [#allocation3], 0
    %s15 = scalar_lea.sflag [#allocation3], 1
    %16 = vsyncpa %s15, 0
    loop: start=0, step=1, limit=4
    $region2: #{tpu_custom_call.1} parent=1 // loop_pre_header
      _
    $region3: #{tpu_custom_call.1} parent=1 // loop_header
      %s18 = sphi 0, %s22
      %p19 = scmp.ge.s32.totalorder %s18, 4
      %s28 = sphi 0, %s30
      %s31 = sphi 0, %s28
      %s32 = sphi 0, %s31
      %s48 = sphi 0, %s32
      %s54 = sphi 0, %s56
      %s57 = sphi 0, %s54
      %s58 = sphi 0, %s57
      %s74 = sphi 0, %s58
      %s80 = sphi 0, %s82
      %s83 = sphi 0, %s80
      %s84 = sphi 0, %s83
      %s100 = sphi 0, %s84
      %s106 = sphi 0, %s108
      %s109 = sphi 0, %s106
      %s110 = sphi 0, %s109
      %s126 = sphi 0, %s110
      %s130 = sphi 0, %s130
      %s132 = sphi 0, %s130
      %s133 = sphi 0, %s132
      %s147 = sphi 0, %s133
      %s151 = sphi 0, %s151
      %s153 = sphi 0, %s151
      %s154 = sphi 0, %s153
      %s168 = sphi 0, %s154
      %s172 = sphi 0, %s172
      %s174 = sphi 0, %s172
      %s175 = sphi 0, %s174
      %s189 = sphi 0, %s175
      %s193 = sphi 0, %s193
      %s195 = sphi 0, %s193
      %s196 = sphi 0, %s195
      %s210 = sphi 0, %s196
      %s214 = sphi 0, %s214
      %s216 = sphi 0, %s214
      %s217 = sphi 0, %s216
      %s231 = sphi 0, %s217
      %s237 = sphi 0, %s239
      %s240 = sphi 0, %s237
      %s241 = sphi 0, %s240
      %s257 = sphi 0, %s241
    $region4: #{tpu_custom_call.1} parent=1 // loop_header_branch
      %21 = sbr.rel (%p19) target = $region8
    $region5: #{tpu_custom_call.1} parent=1 // loop_body
      %s23 = ssub.s32 %s18, 1
      %s24 = ssub.s32 %s18, 2
      %s25 = sadd.s32 %s18, 1
      %s26 = ssub.s32 %s18, %s25
      %p27 = scmp.eq.s32.totalorder %s26, 0
      %s29 = sadd.s32 %s28, 1
      %s30 = scalar_select %p27, %s28, %s29
      %p33 = pneg %p27
      %p34 = scmp.eq.s32.totalorder %s18, 1
      %p35 = por %p33, %p34
      %p36 = scmp.ne.s32.totalorder %s28, %s31
      %p37 = scmp.eq.s32.totalorder %s18, 0
      %p38 = por %p36, %p37
      %p39 = scmp.ne.s32.totalorder %s28, %s31
      %p40 = scmp.eq.s32.totalorder %s23, 1
      %p41 = por %p39, %p40
      %p42 = scmp.ne.s32.totalorder %s31, %s32
      %p43 = scmp.eq.s32.totalorder %s23, 0
      %p44 = por %p42, %p43
      %p45 = scmp.ne.s32.totalorder %s31, %s32
      %p46 = scmp.eq.s32.totalorder %s24, 1
      %p47 = por %p45, %p46
      %p49 = scmp.ne.s32.totalorder %s32, %s48
      %p50 = scmp.eq.s32.totalorder %s24, 0
      %p51 = por %p49, %p50
      %s52 = ssub.s32 %s18, %s25
      %p53 = scmp.eq.s32.totalorder %s52, 0
      %s55 = sadd.s32 %s54, 1
      %s56 = scalar_select %p53, %s54, %s55
      %p59 = pneg %p53
      %p60 = scmp.eq.s32.totalorder %s18, 1
      %p61 = por %p59, %p60
      %p62 = scmp.ne.s32.totalorder %s54, %s57
      %p63 = scmp.eq.s32.totalorder %s18, 0
      %p64 = por %p62, %p63
      %p65 = scmp.ne.s32.totalorder %s54, %s57
      %p66 = scmp.eq.s32.totalorder %s23, 1
      %p67 = por %p65, %p66
      %p68 = scmp.ne.s32.totalorder %s57, %s58
      %p69 = scmp.eq.s32.totalorder %s23, 0
      %p70 = por %p68, %p69
      %p71 = scmp.ne.s32.totalorder %s57, %s58
      %p72 = scmp.eq.s32.totalorder %s24, 1
      %p73 = por %p71, %p72
      %p75 = scmp.ne.s32.totalorder %s58, %s74
      %p76 = scmp.eq.s32.totalorder %s24, 0
      %p77 = por %p75, %p76
      %s78 = ssub.s32 %s18, %s25
      %p79 = scmp.eq.s32.totalorder %s78, 0
      %s81 = sadd.s32 %s80, 1
      %s82 = scalar_select %p79, %s80, %s81
      %p85 = pneg %p79
      %p86 = scmp.eq.s32.totalorder %s18, 1
      %p87 = por %p85, %p86
      %p88 = scmp.ne.s32.totalorder %s80, %s83
      %p89 = scmp.eq.s32.totalorder %s18, 0
      %p90 = por %p88, %p89
      %p91 = scmp.ne.s32.totalorder %s80, %s83
      %p92 = scmp.eq.s32.totalorder %s23, 1
      %p93 = por %p91, %p92
      %p94 = scmp.ne.s32.totalorder %s83, %s84
      %p95 = scmp.eq.s32.totalorder %s23, 0
      %p96 = por %p94, %p95
      %p97 = scmp.ne.s32.totalorder %s83, %s84
      %p98 = scmp.eq.s32.totalorder %s24, 1
      %p99 = por %p97, %p98
      %p101 = scmp.ne.s32.totalorder %s84, %s100
      %p102 = scmp.eq.s32.totalorder %s24, 0
      %p103 = por %p101, %p102
      %s104 = ssub.s32 %s18, %s25
      %p105 = scmp.eq.s32.totalorder %s104, 0
      %s107 = sadd.s32 %s106, 1
      %s108 = scalar_select %p105, %s106, %s107
      %p111 = pneg %p105
      %p112 = scmp.eq.s32.totalorder %s18, 1
      %p113 = por %p111, %p112
      %p114 = scmp.ne.s32.totalorder %s106, %s109
      %p115 = scmp.eq.s32.totalorder %s18, 0
      %p116 = por %p114, %p115
      %p117 = scmp.ne.s32.totalorder %s106, %s109
      %p118 = scmp.eq.s32.totalorder %s23, 1
      %p119 = por %p117, %p118
      %p120 = scmp.ne.s32.totalorder %s109, %s110
      %p121 = scmp.eq.s32.totalorder %s23, 0
      %p122 = por %p120, %p121
      %p123 = scmp.ne.s32.totalorder %s109, %s110
      %p124 = scmp.eq.s32.totalorder %s24, 1
      %p125 = por %p123, %p124
      %p127 = scmp.ne.s32.totalorder %s110, %s126
      %p128 = scmp.eq.s32.totalorder %s24, 0
      %p129 = por %p127, %p128
      %s131 = sadd.s32 %s130, 1
      %p134 = scmp.eq.s32.totalorder %s18, 1
      %p135 = scmp.ne.s32.totalorder %s130, %s132
      %p136 = scmp.eq.s32.totalorder %s18, 0
      %p137 = por %p135, %p136
      %p138 = scmp.ne.s32.totalorder %s130, %s132
      %p139 = scmp.eq.s32.totalorder %s23, 1
      %p140 = por %p138, %p139
      %p141 = scmp.ne.s32.totalorder %s132, %s133
      %p142 = scmp.eq.s32.totalorder %s23, 0
      %p143 = por %p141, %p142
      %p144 = scmp.ne.s32.totalorder %s132, %s133
      %p145 = scmp.eq.s32.totalorder %s24, 1
      %p146 = por %p144, %p145
      %p148 = scmp.ne.s32.totalorder %s133, %s147
      %p149 = scmp.eq.s32.totalorder %s24, 0
      %p150 = por %p148, %p149
      %s152 = sadd.s32 %s151, 1
      %p155 = scmp.eq.s32.totalorder %s18, 1
      %p156 = scmp.ne.s32.totalorder %s151, %s153
      %p157 = scmp.eq.s32.totalorder %s18, 0
      %p158 = por %p156, %p157
      %p159 = scmp.ne.s32.totalorder %s151, %s153
      %p160 = scmp.eq.s32.totalorder %s23, 1
      %p161 = por %p159, %p160
      %p162 = scmp.ne.s32.totalorder %s153, %s154
      %p163 = scmp.eq.s32.totalorder %s23, 0
      %p164 = por %p162, %p163
      %p165 = scmp.ne.s32.totalorder %s153, %s154
      %p166 = scmp.eq.s32.totalorder %s24, 1
      %p167 = por %p165, %p166
      %p169 = scmp.ne.s32.totalorder %s154, %s168
      %p170 = scmp.eq.s32.totalorder %s24, 0
      %p171 = por %p169, %p170
      %s173 = sadd.s32 %s172, 1
      %p176 = scmp.eq.s32.totalorder %s18, 1
      %p177 = scmp.ne.s32.totalorder %s172, %s174
      %p178 = scmp.eq.s32.totalorder %s18, 0
      %p179 = por %p177, %p178
      %p180 = scmp.ne.s32.totalorder %s172, %s174
      %p181 = scmp.eq.s32.totalorder %s23, 1
      %p182 = por %p180, %p181
      %p183 = scmp.ne.s32.totalorder %s174, %s175
      %p184 = scmp.eq.s32.totalorder %s23, 0
      %p185 = por %p183, %p184
      %p186 = scmp.ne.s32.totalorder %s174, %s175
      %p187 = scmp.eq.s32.totalorder %s24, 1
      %p188 = por %p186, %p187
      %p190 = scmp.ne.s32.totalorder %s175, %s189
      %p191 = scmp.eq.s32.totalorder %s24, 0
      %p192 = por %p190, %p191
      %s194 = sadd.s32 %s193, 1
      %p197 = scmp.eq.s32.totalorder %s18, 1
      %p198 = scmp.ne.s32.totalorder %s193, %s195
      %p199 = scmp.eq.s32.totalorder %s18, 0
      %p200 = por %p198, %p199
      %p201 = scmp.ne.s32.totalorder %s193, %s195
      %p202 = scmp.eq.s32.totalorder %s23, 1
      %p203 = por %p201, %p202
      %p204 = scmp.ne.s32.totalorder %s195, %s196
      %p205 = scmp.eq.s32.totalorder %s23, 0
      %p206 = por %p204, %p205
      %p207 = scmp.ne.s32.totalorder %s195, %s196
      %p208 = scmp.eq.s32.totalorder %s24, 1
      %p209 = por %p207, %p208
      %p211 = scmp.ne.s32.totalorder %s196, %s210
      %p212 = scmp.eq.s32.totalorder %s24, 0
      %p213 = por %p211, %p212
      %s215 = sadd.s32 %s214, 1
      %p218 = scmp.eq.s32.totalorder %s18, 1
      %p219 = scmp.ne.s32.totalorder %s214, %s216
      %p220 = scmp.eq.s32.totalorder %s18, 0
      %p221 = por %p219, %p220
      %p222 = scmp.ne.s32.totalorder %s214, %s216
      %p223 = scmp.eq.s32.totalorder %s23, 1
      %p224 = por %p222, %p223
      %p225 = scmp.ne.s32.totalorder %s216, %s217
      %p226 = scmp.eq.s32.totalorder %s23, 0
      %p227 = por %p225, %p226
      %p228 = scmp.ne.s32.totalorder %s216, %s217
      %p229 = scmp.eq.s32.totalorder %s24, 1
      %p230 = por %p228, %p229
      %p232 = scmp.ne.s32.totalorder %s217, %s231
      %p233 = scmp.eq.s32.totalorder %s24, 0
      %p234 = por %p232, %p233
      %s235 = ssub.s32 %s18, %s25
      %p236 = scmp.eq.s32.totalorder %s235, 0
      %s238 = sadd.s32 %s237, 1
      %s239 = scalar_select %p236, %s237, %s238
      %p242 = pneg %p236
      %p243 = scmp.eq.s32.totalorder %s18, 1
      %p244 = por %p242, %p243
      %p245 = scmp.ne.s32.totalorder %s237, %s240
      %p246 = scmp.eq.s32.totalorder %s18, 0
      %p247 = por %p245, %p246
      %p248 = scmp.ne.s32.totalorder %s237, %s240
      %p249 = scmp.eq.s32.totalorder %s23, 1
      %p250 = por %p248, %p249
      %p251 = scmp.ne.s32.totalorder %s240, %s241
      %p252 = scmp.eq.s32.totalorder %s23, 0
      %p253 = por %p251, %p252
      %p254 = scmp.ne.s32.totalorder %s240, %s241
      %p255 = scmp.eq.s32.totalorder %s24, 1
      %p256 = por %p254, %p255
      %p258 = scmp.ne.s32.totalorder %s241, %s257
      %p259 = scmp.eq.s32.totalorder %s24, 0
      %p260 = por %p258, %p259
      %p261 = scmp.le.s32.totalorder 1, %s18
      %p262 = scmp.lt.s32.totalorder %s18, 3
      %p263 = pnand %p261, %p262
      %p264 = pneg %p263
      // Predicated region
      $region9: #{tpu_custom_call.1} parent=5 // pred_check
        _
      $region10: #{tpu_custom_call.1} parent=5 // pred_check_branch
        %266 = sbr.rel (%p263) target = $region12
      $region11: #{tpu_custom_call.1} parent=5 // pred_region
        %s267 = ssub.s32 %s18, 1
        // Predicated region
        $region13: #{tpu_custom_call.1} parent=11 // pred_check
          %p268 = pneg %p143
        $region14: #{tpu_custom_call.1} parent=11 // pred_check_branch
          %270 = sbr.rel (%p268) target = $region16
        $region15: #{tpu_custom_call.1} parent=11 // pred_region
          _
        $region16: #{tpu_custom_call.1} parent=11 // pred_fallthru
          _
        // Predicated region
        $region17: #{tpu_custom_call.1} parent=11 // pred_check
          %p271 = pneg %p164
        $region18: #{tpu_custom_call.1} parent=11 // pred_check_branch
          %273 = sbr.rel (%p271) target = $region20
        $region19: #{tpu_custom_call.1} parent=11 // pred_region
          _
        $region20: #{tpu_custom_call.1} parent=11 // pred_fallthru
          _
        // Predicated region
        $region21: #{tpu_custom_call.1} parent=11 // pred_check
          %p274 = pneg %p185
        $region22: #{tpu_custom_call.1} parent=11 // pred_check_branch
          %276 = sbr.rel (%p274) target = $region24
        $region23: #{tpu_custom_call.1} parent=11 // pred_region
          _
        $region24: #{tpu_custom_call.1} parent=11 // pred_fallthru
          _
        // Predicated region
        $region25: #{tpu_custom_call.1} parent=11 // pred_check
          %p277 = pneg %p206
        $region26: #{tpu_custom_call.1} parent=11 // pred_check_branch
          %279 = sbr.rel (%p277) target = $region28
        $region27: #{tpu_custom_call.1} parent=11 // pred_region
          _
        $region28: #{tpu_custom_call.1} parent=11 // pred_fallthru
          _
        // Predicated region
        $region29: #{tpu_custom_call.1} parent=11 // pred_check
          %p280 = pneg %p227
        $region30: #{tpu_custom_call.1} parent=11 // pred_check_branch
          %282 = sbr.rel (%p280) target = $region32
        $region31: #{tpu_custom_call.1} parent=11 // pred_region
          _
        $region32: #{tpu_custom_call.1} parent=11 // pred_fallthru
          _
      $region12: #{tpu_custom_call.1} parent=5 // pred_fallthru
        _
      %p283 = scmp.lt.s32.totalorder %s18, 2
      // Predicated region
      $region33: #{tpu_custom_call.1} parent=5 // pred_check
        %p284 = pneg %p283
      $region34: #{tpu_custom_call.1} parent=5 // pred_check_branch
        %286 = sbr.rel (%p284) target = $region36
      $region35: #{tpu_custom_call.1} parent=5 // pred_region
        // Predicated region
        $region37: #{tpu_custom_call.1} parent=35 // pred_check
          %p287 = pneg %p38
        $region38: #{tpu_custom_call.1} parent=35 // pred_check_branch
          %289 = sbr.rel (%p287) target = $region40
        $region39: #{tpu_custom_call.1} parent=35 // pred_region
          %p290 = scmp.lt.s32.totalorder %s18, 1
          %s291 = scalar_select %p290, %s18, 1
          %s292 = smul.addr %s291, 16
          %s293 = smul.addr %s292, 4
          %s294 = scalar_lea.vmem %s0, %s293
        $region40: #{tpu_custom_call.1} parent=35 // pred_fallthru
          _
        // Predicated region
        $region41: #{tpu_custom_call.1} parent=35 // pred_check
          %p295 = pneg %p64
        $region42: #{tpu_custom_call.1} parent=35 // pred_check_branch
          %297 = sbr.rel (%p295) target = $region44
        $region43: #{tpu_custom_call.1} parent=35 // pred_region
          %p298 = scmp.lt.s32.totalorder %s18, 1
          %s299 = scalar_select %p298, %s18, 1
          %s300 = smul.addr %s299, 2
          %s301 = smul.addr %s300, 4
          %s302 = scalar_lea.vmem %s1, %s301
        $region44: #{tpu_custom_call.1} parent=35 // pred_fallthru
          _
        // Predicated region
        $region45: #{tpu_custom_call.1} parent=35 // pred_check
          %p303 = pneg %p90
        $region46: #{tpu_custom_call.1} parent=35 // pred_check_branch
          %305 = sbr.rel (%p303) target = $region48
        $region47: #{tpu_custom_call.1} parent=35 // pred_region
          %p306 = scmp.lt.s32.totalorder %s18, 1
          %s307 = scalar_select %p306, %s18, 1
          %s308 = smul.addr %s307, 16
          %s309 = smul.addr %s308, 8
          %s310 = scalar_lea.vmem %s2, %s309
        $region48: #{tpu_custom_call.1} parent=35 // pred_fallthru
          _
        // Predicated region
        $region49: #{tpu_custom_call.1} parent=35 // pred_check
          %p311 = pneg %p116
        $region50: #{tpu_custom_call.1} parent=35 // pred_check_branch
          %313 = sbr.rel (%p311) target = $region52
        $region51: #{tpu_custom_call.1} parent=35 // pred_region
          %s314 = smul.u32 16, %s18
          %p315 = scmp.lt.s32.totalorder %s314, 31
          %s316 = scalar_select %p315, %s314, 31
          %s317 = smul.addr %s316, 8
          %s318 = scalar_lea.vmem %s3, %s317
          %s319 = smul.u32 16, %s18
        $region52: #{tpu_custom_call.1} parent=35 // pred_fallthru
          _
      $region36: #{tpu_custom_call.1} parent=5 // pred_fallthru
        _
      %p320 = scmp.le.s32.totalorder 1, %s18
      %p321 = scmp.lt.s32.totalorder %s18, 3
      %p322 = pnand %p320, %p321
      %p323 = pneg %p322
      // Predicated region
      $region53: #{tpu_custom_call.1} parent=5 // pred_check
        _
      $region54: #{tpu_custom_call.1} parent=5 // pred_check_branch
        %325 = sbr.rel (%p322) target = $region56
      $region55: #{tpu_custom_call.1} parent=5 // pred_region
        %s326 = ssub.s32 %s18, 1
        %p327 = scmp.lt.s32.totalorder %s23, 1
        %s328 = scalar_select %p327, %s23, 1
        %s329 = smul.addr %s328, 16
        %s330 = smul.addr %s329, 4
        %s331 = scalar_lea.vmem %s0, %s330
        %p332 = pneg %p44
        %p333 = pneg %p41
        %p334 = scmp.lt.s32.totalorder %s23, 1
        %s335 = scalar_select %p334, %s23, 1
        %s336 = smul.addr %s335, 2
        %s337 = smul.addr %s336, 4
        %s338 = scalar_lea.vmem %s1, %s337
        %p339 = pneg %p70
        %p340 = pneg %p67
        %p341 = scmp.lt.s32.totalorder %s23, 1
        %s342 = scalar_select %p341, %s23, 1
        %s343 = smul.addr %s342, 16
        %s344 = smul.addr %s343, 8
        %s345 = scalar_lea.vmem %s2, %s344
        %p346 = pneg %p96
        %p347 = pneg %p93
        %s348 = smul.u32 16, %s23
        %p349 = scmp.lt.s32.totalorder %s348, 31
        %s350 = scalar_select %p349, %s348, 31
        %s351 = smul.addr %s350, 8
        %s352 = scalar_lea.vmem %s3, %s351
        %p353 = pneg %p122
        %p354 = pneg %p119
        %p355 = pneg %p143
        %p356 = pneg %p140
        %p357 = pneg %p164
        %p358 = pneg %p161
        %p359 = pneg %p185
        %p360 = pneg %p182
        %p361 = pneg %p206
        %p362 = pneg %p203
        %p363 = pneg %p227
        %p364 = pneg %p224
        %p365 = pneg %p253
        %p366 = pneg %p250
        %s367 = sand.u32 %s240, 1
        %s368 = scalar_lea.sflag [#allocation3], %s367
        %s369 = sand.u32 %s240, 1
        %s370 = smul.addr %s369, 16
        %s371 = scalar_lea.vmem [#allocation2], %s370
        %p372 = scmp.lt.s32.totalorder %s23, 1
        %s373 = scalar_select %p372, %s23, 1
        %s374 = smul.addr %s373, 16
        %s375 = smul.addr %s374, 4
        %s376 = scalar_lea.vmem %s0, %s375
        %p377 = scmp.lt.s32.totalorder %s23, 1
        %s378 = scalar_select %p377, %s23, 1
        %s379 = smul.addr %s378, 2
        %s380 = smul.addr %s379, 4
        %s381 = scalar_lea.vmem %s1, %s380
        %p382 = scmp.lt.s32.totalorder %s23, 1
        %s383 = scalar_select %p382, %s23, 1
        %s384 = smul.addr %s383, 16
        %s385 = smul.addr %s384, 8
        %s386 = scalar_lea.vmem %s2, %s385
        %s387 = smul.u32 16, %s23
        %p388 = scmp.lt.s32.totalorder %s387, 31
        %s389 = scalar_select %p388, %s387, 31
        %s390 = smul.addr %s389, 8
        %s391 = scalar_lea.vmem %s3, %s390
        %s392 = smul.u32 16, %s23
        %s393 = smul.u32 2, %s23
        %v395 = vld [vmem:[%s376] sm:$0xf]
        %v396 = vld [vmem:[%s376 + $0x4] sm:$0xf]
        %v397 = vld [vmem:[%s376 + $0x8] sm:$0xf]
        %v398 = vld [vmem:[%s376 + $0xc] sm:$0xf]
        %v399 = vld [vmem:[%s376 + $0x10] sm:$0xf]
        %v400 = vld [vmem:[%s376 + $0x14] sm:$0xf]
        %v401 = vld [vmem:[%s376 + $0x18] sm:$0xf]
        %v402 = vld [vmem:[%s376 + $0x1c] sm:$0xf]
        %v403 = vld [vmem:[%s376 + $0x20] sm:$0xf]
        %v404 = vld [vmem:[%s376 + $0x24] sm:$0xf]
        %v405 = vld [vmem:[%s376 + $0x28] sm:$0xf]
        %v406 = vld [vmem:[%s376 + $0x2c] sm:$0xf]
        %v407 = vld [vmem:[%s376 + $0x30] sm:$0xf]
        %v408 = vld [vmem:[%s376 + $0x34] sm:$0xf]
        %v409 = vld [vmem:[%s376 + $0x38] sm:$0xf]
        %v410 = vld [vmem:[%s376 + $0x3c] sm:$0xf]
        %v411 = vld [vmem:[%s391] sm:$0xff]
        %v412 = vld [vmem:[%s391 + $0x8] sm:$0xff]
        %v413 = vld [vmem:[%s391 + $0x10] sm:$0xff]
        %v414 = vld [vmem:[%s391 + $0x18] sm:$0xff]
        %v415 = vld [vmem:[%s391 + $0x20] sm:$0xff]
        %v416 = vld [vmem:[%s391 + $0x28] sm:$0xff]
        %v417 = vld [vmem:[%s391 + $0x30] sm:$0xff]
        %v418 = vld [vmem:[%s391 + $0x38] sm:$0xff]
        %v419 = vld [vmem:[%s391 + $0x40] sm:$0xff]
        %v420 = vld [vmem:[%s391 + $0x48] sm:$0xff]
        %v421 = vld [vmem:[%s391 + $0x50] sm:$0xff]
        %v422 = vld [vmem:[%s391 + $0x58] sm:$0xff]
        %v423 = vld [vmem:[%s391 + $0x60] sm:$0xff]
        %v424 = vld [vmem:[%s391 + $0x68] sm:$0xff]
        %v425 = vld [vmem:[%s391 + $0x70] sm:$0xff]
        %v426 = vld [vmem:[%s391 + $0x78] sm:$0xff]
        %v427 = vld [vmem:[%s5] sm:$0xf]
        %v428 = vld [vmem:[%s5 + $0x4] sm:$0xf]
        %v429 = vld [vmem:[%s5 + $0x8] sm:$0xf]
        %v430 = vld [vmem:[%s5 + $0xc] sm:$0xf]
        %v431 = vld [vmem:[%s6] sm:$0x1]
        %v433 = vlaneseq
        %v434 = vshrl.u32 %v433, 7
        %v435 = vsub.s32 0, %v434
        %v436 = vrot.slane %v431, %v435
        %v438 = vpack.c.bf16 %v412, %v411
        %v439 = vpack.c.bf16 %v414, %v413
        %v440 = vpack.c.bf16 %v416, %v415
        %v441 = vpack.c.bf16 %v418, %v417
        %v442 = vpack.c.bf16 %v420, %v419
        %v443 = vpack.c.bf16 %v422, %v421
        %v444 = vpack.c.bf16 %v424, %v423
        %v445 = vpack.c.bf16 %v426, %v425
        %v462 = vunpack.c.l.b16 %v395
        %v463 = vunpack.c.l.b16 %v396
        %v464 = vunpack.c.l.b16 %v397
        %v465 = vunpack.c.l.b16 %v398
        %v466 = vunpack.c.l.b16 %v399
        %v467 = vunpack.c.l.b16 %v400
        %v468 = vunpack.c.l.b16 %v401
        %v469 = vunpack.c.l.b16 %v402
        %v470 = vunpack.c.l.b16 %v403
        %v471 = vunpack.c.l.b16 %v404
        %v472 = vunpack.c.l.b16 %v405
        %v473 = vunpack.c.l.b16 %v406
        %v474 = vunpack.c.l.b16 %v407
        %v475 = vunpack.c.l.b16 %v408
        %v476 = vunpack.c.l.b16 %v409
        %v477 = vunpack.c.l.b16 %v410
        %v478 = vpack.c.b16 %v463, %v462
        %v479 = vpack.c.b16 %v465, %v464
        %v480 = vpack.c.b16 %v467, %v466
        %v481 = vpack.c.b16 %v469, %v468
        %v482 = vpack.c.b16 %v471, %v470
        %v483 = vpack.c.b16 %v473, %v472
        %v484 = vpack.c.b16 %v475, %v474
        %v485 = vpack.c.b16 %v477, %v476
        %494 = vmatprep.subr.bf16.mxu0 0
        %495 = vmatpush1.bf16.msra.mxu0 %v438
        %496 = vmatprep.subr.bf16.mxu0 0
        %497 = vmatpush1.bf16.msra.mxu0 %v439
        %498 = vmatprep.subr.bf16.mxu0 0
        %499 = vmatpush1.bf16.msra.mxu0 %v440
        %500 = vmatprep.subr.bf16.mxu0 0
        %501 = vmatpush1.bf16.msra.mxu0 %v441
        %502 = vmatprep.subr.bf16.mxu0 0
        %503 = vmatpush1.bf16.msra.mxu0 %v442
        %504 = vmatprep.subr.bf16.mxu0 0
        %505 = vmatpush1.bf16.msra.mxu0 %v443
        %506 = vmatprep.subr.bf16.mxu0 0
        %507 = vmatpush1.bf16.msra.mxu0 %v444
        %508 = vmatprep.subr.bf16.mxu0 0
        %509 = vmatpush1.bf16.msra.mxu0 %v445
        %510 = vmatprep.subr.bf16.mxu0 0
        %511 = vmatpush1.bf16.msra.mxu0 0
        %512 = vmatprep.subr.bf16.mxu0 0
        %513 = vmatpush1.bf16.msra.mxu0 0
        %514 = vmatprep.subr.bf16.mxu0 0
        %515 = vmatpush1.bf16.msra.mxu0 0
        %516 = vmatprep.subr.bf16.mxu0 0
        %517 = vmatpush1.bf16.msra.mxu0 0
        %518 = vmatprep.subr.bf16.mxu0 0
        %519 = vmatpush1.bf16.msra.mxu0 0
        %520 = vmatprep.subr.bf16.mxu0 0
        %521 = vmatpush1.bf16.msra.mxu0 0
        %522 = vmatprep.subr.bf16.mxu0 0
        %523 = vmatpush1.bf16.msra.mxu0 0
        %524 = vmatprep.subr.bf16.mxu0 0
        %525 = vmatpush1.bf16.msra.mxu0 0
        %526 = vmatprep.mubr.bf16.mxu0 0
        %527 = vmatmul.mubr.bf16.gmra.mrb[0].mxu0 %v478
        %v528 = vpop.f32.mrb[0].mxu0
        %v529 = vadd.f32 0.0, %v528
        %v530 = vpop.f32.mrb[0].mxu0
        %v531 = vpop.f32.mrb[0].mxu0
        %v532 = vadd.f32 0.0, %v531
        %v533 = vpop.f32.mrb[0].mxu0
        %534 = vmatprep.mubr.bf16.mxu0 0
        %535 = vmatmul.mubr.bf16.gmra.mrb[0].mxu0 %v479
        %v536 = vpop.f32.mrb[0].mxu0
        %v537 = vadd.f32 0.0, %v536
        %v538 = vpop.f32.mrb[0].mxu0
        %v539 = vpop.f32.mrb[0].mxu0
        %v540 = vadd.f32 0.0, %v539
        %v541 = vpop.f32.mrb[0].mxu0
        %542 = vmatprep.mubr.bf16.mxu0 0
        %543 = vmatmul.mubr.bf16.gmra.mrb[0].mxu0 %v480
        %v544 = vpop.f32.mrb[0].mxu0
        %v545 = vadd.f32 0.0, %v544
        %v546 = vpop.f32.mrb[0].mxu0
        %v547 = vpop.f32.mrb[0].mxu0
        %v548 = vadd.f32 0.0, %v547
        %v549 = vpop.f32.mrb[0].mxu0
        %550 = vmatprep.mubr.bf16.mxu0 0
        %551 = vmatmul.mubr.bf16.gmra.mrb[0].mxu0 %v481
        %v552 = vpop.f32.mrb[0].mxu0
        %v553 = vadd.f32 0.0, %v552
        %v554 = vpop.f32.mrb[0].mxu0
        %v555 = vpop.f32.mrb[0].mxu0
        %v556 = vadd.f32 0.0, %v555
        %v557 = vpop.f32.mrb[0].mxu0
        %558 = vmatprep.mubr.bf16.mxu0 0
        %559 = vmatmul.mubr.bf16.gmra.mrb[0].mxu0 %v482
        %v560 = vpop.f32.mrb[0].mxu0
        %v561 = vadd.f32 0.0, %v560
        %v562 = vpop.f32.mrb[0].mxu0
        %v563 = vpop.f32.mrb[0].mxu0
        %v564 = vadd.f32 0.0, %v563
        %v565 = vpop.f32.mrb[0].mxu0
        %566 = vmatprep.mubr.bf16.mxu0 0
        %567 = vmatmul.mubr.bf16.gmra.mrb[0].mxu0 %v483
        %v568 = vpop.f32.mrb[0].mxu0
        %v569 = vadd.f32 0.0, %v568
        %v570 = vpop.f32.mrb[0].mxu0
        %v571 = vpop.f32.mrb[0].mxu0
        %v572 = vadd.f32 0.0, %v571
        %v573 = vpop.f32.mrb[0].mxu0
        %574 = vmatprep.mubr.bf16.mxu0 0
        %575 = vmatmul.mubr.bf16.gmra.mrb[0].mxu0 %v484
        %v576 = vpop.f32.mrb[0].mxu0
        %v577 = vadd.f32 0.0, %v576
        %v578 = vpop.f32.mrb[0].mxu0
        %v579 = vpop.f32.mrb[0].mxu0
        %v580 = vadd.f32 0.0, %v579
        %v581 = vpop.f32.mrb[0].mxu0
        %582 = vmatprep.mubr.bf16.mxu0 0
        %583 = vmatmul.mubr.bf16.gmra.mrb[0].mxu0 %v485
        %v584 = vpop.f32.mrb[0].mxu0
        %v585 = vadd.f32 0.0, %v584
        %v586 = vpop.f32.mrb[0].mxu0
        %v587 = vpop.f32.mrb[0].mxu0
        %v588 = vadd.f32 0.0, %v587
        %v589 = vpop.f32.mrb[0].mxu0
        %590 = vdwg.mxu0
        %v591 = vpack.c.bf16 %v532, %v529
        %v592 = vpack.c.bf16 %v540, %v537
        %v593 = vpack.c.bf16 %v548, %v545
        %v594 = vpack.c.bf16 %v556, %v553
        %v595 = vpack.c.bf16 %v564, %v561
        %v596 = vpack.c.bf16 %v572, %v569
        %v597 = vpack.c.bf16 %v580, %v577
        %v598 = vpack.c.bf16 %v588, %v585
        %v599 = vld [vmem:[%s4] sm:$0xf]
        %v600 = vld [vmem:[%s4 + $0x4] sm:$0xf]
        %v601 = vld [vmem:[%s4 + $0x8] sm:$0xf]
        %v602 = vld [vmem:[%s4 + $0xc] sm:$0xf]
        %v607 = vunpack.c.l.b16 %v427
        %v608 = vunpack.c.l.b16 %v428
        %v609 = vunpack.c.l.b16 %v429
        %v610 = vunpack.c.l.b16 %v430
        %v611 = vpack.c.b16 %v608, %v607
        %v612 = vpack.c.b16 %v610, %v609
        %vm615 = vcmask 261120
        %v617 = vsel %vm615, %v438, 0
        %v620 = vsel %vm615, %v439, 0
        %v623 = vsel %vm615, %v440, 0
        %v626 = vsel %vm615, %v441, 0
        %v629 = vsel %vm615, %v442, 0
        %v632 = vsel %vm615, %v443, 0
        %v635 = vsel %vm615, %v444, 0
        %v638 = vsel %vm615, %v445, 0
        %640 = vmatprep.subr.bf16.mxu0 0
        %641 = vmatpush1.bf16.msra.mxu0 %v611
        %642 = vmatprep.subr.bf16.mxu0 0
        %643 = vmatpush1.bf16.msra.mxu0 %v612
        %644 = vmatprep.subr.bf16.mxu0 0
        %645 = vmatpush1.bf16.msra.mxu0 0
        %646 = vmatprep.subr.bf16.mxu0 0
        %647 = vmatpush1.bf16.msra.mxu0 0
        %648 = vmatprep.subr.bf16.mxu0 0
        %649 = vmatpush1.bf16.msra.mxu0 0
        %650 = vmatprep.subr.bf16.mxu0 0
        %651 = vmatpush1.bf16.msra.mxu0 0
        %652 = vmatprep.subr.bf16.mxu0 0
        %653 = vmatpush1.bf16.msra.mxu0 0
        %654 = vmatprep.subr.bf16.mxu0 0
        %655 = vmatpush1.bf16.msra.mxu0 0
        %656 = vmatprep.subr.bf16.mxu0 0
        %657 = vmatpush1.bf16.msra.mxu0 0
        %658 = vmatprep.subr.bf16.mxu0 0
        %659 = vmatpush1.bf16.msra.mxu0 0
        %660 = vmatprep.subr.bf16.mxu0 0
        %661 = vmatpush1.bf16.msra.mxu0 0
        %662 = vmatprep.subr.bf16.mxu0 0
        %663 = vmatpush1.bf16.msra.mxu0 0
        %664 = vmatprep.subr.bf16.mxu0 0
        %665 = vmatpush1.bf16.msra.mxu0 0
        %666 = vmatprep.subr.bf16.mxu0 0
        %667 = vmatpush1.bf16.msra.mxu0 0
        %668 = vmatprep.subr.bf16.mxu0 0
        %669 = vmatpush1.bf16.msra.mxu0 0
        %670 = vmatprep.subr.bf16.mxu0 0
        %671 = vmatpush1.bf16.msra.mxu0 0
        %672 = vmatprep.mubr.bf16.mxu0 0
        %673 = vmatmul.mubr.bf16.gmra.mrb[0].mxu0 %v617
        %v674 = vpop.f32.mrb[0].mxu0
        %v675 = vadd.f32 0.0, %v674
        %v676 = vpop.f32.mrb[0].mxu0
        %v677 = vpop.f32.mrb[0].mxu0
        %v678 = vadd.f32 0.0, %v677
        %v679 = vpop.f32.mrb[0].mxu0
        %680 = vmatprep.mubr.bf16.mxu0 0
        %681 = vmatmul.mubr.bf16.gmra.mrb[0].mxu0 %v620
        %v682 = vpop.f32.mrb[0].mxu0
        %v683 = vadd.f32 0.0, %v682
        %v684 = vpop.f32.mrb[0].mxu0
        %v685 = vpop.f32.mrb[0].mxu0
        %v686 = vadd.f32 0.0, %v685
        %v687 = vpop.f32.mrb[0].mxu0
        %688 = vmatprep.mubr.bf16.mxu0 0
        %689 = vmatmul.mubr.bf16.gmra.mrb[0].mxu0 %v623
        %v690 = vpop.f32.mrb[0].mxu0
        %v691 = vadd.f32 0.0, %v690
        %v692 = vpop.f32.mrb[0].mxu0
        %v693 = vpop.f32.mrb[0].mxu0
        %v694 = vadd.f32 0.0, %v693
        %v695 = vpop.f32.mrb[0].mxu0
        %696 = vmatprep.mubr.bf16.mxu0 0
        %697 = vmatmul.mubr.bf16.gmra.mrb[0].mxu0 %v626
        %v698 = vpop.f32.mrb[0].mxu0
        %v699 = vadd.f32 0.0, %v698
        %v700 = vpop.f32.mrb[0].mxu0
        %v701 = vpop.f32.mrb[0].mxu0
        %v702 = vadd.f32 0.0, %v701
        %v703 = vpop.f32.mrb[0].mxu0
        %704 = vmatprep.mubr.bf16.mxu0 0
        %705 = vmatmul.mubr.bf16.gmra.mrb[0].mxu0 %v629
        %v706 = vpop.f32.mrb[0].mxu0
        %v707 = vadd.f32 0.0, %v706
        %v708 = vpop.f32.mrb[0].mxu0
        %v709 = vpop.f32.mrb[0].mxu0
        %v710 = vadd.f32 0.0, %v709
        %v711 = vpop.f32.mrb[0].mxu0
        %712 = vmatprep.mubr.bf16.mxu0 0
        %713 = vmatmul.mubr.bf16.gmra.mrb[0].mxu0 %v632
        %v714 = vpop.f32.mrb[0].mxu0
        %v715 = vadd.f32 0.0, %v714
        %v716 = vpop.f32.mrb[0].mxu0
        %v717 = vpop.f32.mrb[0].mxu0
        %v718 = vadd.f32 0.0, %v717
        %v719 = vpop.f32.mrb[0].mxu0
        %720 = vmatprep.mubr.bf16.mxu0 0
        %721 = vmatmul.mubr.bf16.gmra.mrb[0].mxu0 %v635
        %v722 = vpop.f32.mrb[0].mxu0
        %v723 = vadd.f32 0.0, %v722
        %v724 = vpop.f32.mrb[0].mxu0
        %v725 = vpop.f32.mrb[0].mxu0
        %v726 = vadd.f32 0.0, %v725
        %v727 = vpop.f32.mrb[0].mxu0
        %728 = vmatprep.mubr.bf16.mxu0 0
        %729 = vmatmul.mubr.bf16.gmra.mrb[0].mxu0 %v638
        %v730 = vpop.f32.mrb[0].mxu0
        %v731 = vadd.f32 0.0, %v730
        %v732 = vpop.f32.mrb[0].mxu0
        %v733 = vpop.f32.mrb[0].mxu0
        %v734 = vadd.f32 0.0, %v733
        %v735 = vpop.f32.mrb[0].mxu0
        %736 = vdwg.mxu0
        %v741 = vunpack.c.l.b16 %v599
        %v742 = vunpack.c.l.b16 %v600
        %v743 = vunpack.c.l.b16 %v601
        %v744 = vunpack.c.l.b16 %v602
        %v745 = vpack.c.b16 %v742, %v741
        %v746 = vpack.c.b16 %v744, %v743
        %v750 = vsel %vm615, %v591, 0
        %v753 = vsel %vm615, %v592, 0
        %v756 = vsel %vm615, %v593, 0
        %v759 = vsel %vm615, %v594, 0
        %v762 = vsel %vm615, %v595, 0
        %v765 = vsel %vm615, %v596, 0
        %v768 = vsel %vm615, %v597, 0
        %v771 = vsel %vm615, %v598, 0
        %773 = vmatprep.subr.bf16.mxu0 0
        %774 = vmatpush1.bf16.msra.mxu0 %v745
        %775 = vmatprep.subr.bf16.mxu0 0
        %776 = vmatpush1.bf16.msra.mxu0 %v746
        %777 = vmatprep.subr.bf16.mxu0 0
        %778 = vmatpush1.bf16.msra.mxu0 0
        %779 = vmatprep.subr.bf16.mxu0 0
        %780 = vmatpush1.bf16.msra.mxu0 0
        %781 = vmatprep.subr.bf16.mxu0 0
        %782 = vmatpush1.bf16.msra.mxu0 0
        %783 = vmatprep.subr.bf16.mxu0 0
        %784 = vmatpush1.bf16.msra.mxu0 0
        %785 = vmatprep.subr.bf16.mxu0 0
        %786 = vmatpush1.bf16.msra.mxu0 0
        %787 = vmatprep.subr.bf16.mxu0 0
        %788 = vmatpush1.bf16.msra.mxu0 0
        %789 = vmatprep.subr.bf16.mxu0 0
        %790 = vmatpush1.bf16.msra.mxu0 0
        %791 = vmatprep.subr.bf16.mxu0 0
        %792 = vmatpush1.bf16.msra.mxu0 0
        %793 = vmatprep.subr.bf16.mxu0 0
        %794 = vmatpush1.bf16.msra.mxu0 0
        %795 = vmatprep.subr.bf16.mxu0 0
        %796 = vmatpush1.bf16.msra.mxu0 0
        %797 = vmatprep.subr.bf16.mxu0 0
        %798 = vmatpush1.bf16.msra.mxu0 0
        %799 = vmatprep.subr.bf16.mxu0 0
        %800 = vmatpush1.bf16.msra.mxu0 0
        %801 = vmatprep.subr.bf16.mxu0 0
        %802 = vmatpush1.bf16.msra.mxu0 0
        %803 = vmatprep.subr.bf16.mxu0 0
        %804 = vmatpush1.bf16.msra.mxu0 0
        %805 = vmatprep.mubr.bf16.mxu0 0
        %806 = vmatmul.mubr.bf16.gmra.mrb[0].mxu0 %v750
        %v807 = vpop.f32.mrb[0].mxu0
        %v808 = vadd.f32 %v675, %v807
        %v809 = vpop.f32.mrb[0].mxu0
        %v810 = vpop.f32.mrb[0].mxu0
        %v811 = vadd.f32 %v678, %v810
        %v812 = vpop.f32.mrb[0].mxu0
        %813 = vmatprep.mubr.bf16.mxu0 0
        %814 = vmatmul.mubr.bf16.gmra.mrb[0].mxu0 %v753
        %v815 = vpop.f32.mrb[0].mxu0
        %v816 = vadd.f32 %v683, %v815
        %v817 = vpop.f32.mrb[0].mxu0
        %v818 = vpop.f32.mrb[0].mxu0
        %v819 = vadd.f32 %v686, %v818
        %v820 = vpop.f32.mrb[0].mxu0
        %821 = vmatprep.mubr.bf16.mxu0 0
        %822 = vmatmul.mubr.bf16.gmra.mrb[0].mxu0 %v756
        %v823 = vpop.f32.mrb[0].mxu0
        %v824 = vadd.f32 %v691, %v823
        %v825 = vpop.f32.mrb[0].mxu0
        %v826 = vpop.f32.mrb[0].mxu0
        %v827 = vadd.f32 %v694, %v826
        %v828 = vpop.f32.mrb[0].mxu0
        %829 = vmatprep.mubr.bf16.mxu0 0
        %830 = vmatmul.mubr.bf16.gmra.mrb[0].mxu0 %v759
        %v831 = vpop.f32.mrb[0].mxu0
        %v832 = vadd.f32 %v699, %v831
        %v833 = vpop.f32.mrb[0].mxu0
        %v834 = vpop.f32.mrb[0].mxu0
        %v835 = vadd.f32 %v702, %v834
        %v836 = vpop.f32.mrb[0].mxu0
        %837 = vmatprep.mubr.bf16.mxu0 0
        %838 = vmatmul.mubr.bf16.gmra.mrb[0].mxu0 %v762
        %v839 = vpop.f32.mrb[0].mxu0
        %v840 = vadd.f32 %v707, %v839
        %v841 = vpop.f32.mrb[0].mxu0
        %v842 = vpop.f32.mrb[0].mxu0
        %v843 = vadd.f32 %v710, %v842
        %v844 = vpop.f32.mrb[0].mxu0
        %845 = vmatprep.mubr.bf16.mxu0 0
        %846 = vmatmul.mubr.bf16.gmra.mrb[0].mxu0 %v765
        %v847 = vpop.f32.mrb[0].mxu0
        %v848 = vadd.f32 %v715, %v847
        %v849 = vpop.f32.mrb[0].mxu0
        %v850 = vpop.f32.mrb[0].mxu0
        %v851 = vadd.f32 %v718, %v850
        %v852 = vpop.f32.mrb[0].mxu0
        %853 = vmatprep.mubr.bf16.mxu0 0
        %854 = vmatmul.mubr.bf16.gmra.mrb[0].mxu0 %v768
        %v855 = vpop.f32.mrb[0].mxu0
        %v856 = vadd.f32 %v723, %v855
        %v857 = vpop.f32.mrb[0].mxu0
        %v858 = vpop.f32.mrb[0].mxu0
        %v859 = vadd.f32 %v726, %v858
        %v860 = vpop.f32.mrb[0].mxu0
        %861 = vmatprep.mubr.bf16.mxu0 0
        %862 = vmatmul.mubr.bf16.gmra.mrb[0].mxu0 %v771
        %v863 = vpop.f32.mrb[0].mxu0
        %v864 = vadd.f32 %v731, %v863
        %v865 = vpop.f32.mrb[0].mxu0
        %v866 = vpop.f32.mrb[0].mxu0
        %v867 = vadd.f32 %v734, %v866
        %v868 = vpop.f32.mrb[0].mxu0
        %869 = vdwg.mxu0
        %v870 = vadd.f32 %v808, %v436
        %v871 = vadd.f32 %v811, %v436
        %v872 = vadd.f32 %v816, %v436
        %v873 = vadd.f32 %v819, %v436
        %v874 = vadd.f32 %v824, %v436
        %v875 = vadd.f32 %v827, %v436
        %v876 = vadd.f32 %v832, %v436
        %v877 = vadd.f32 %v835, %v436
        %v878 = vadd.f32 %v840, %v436
        %v879 = vadd.f32 %v843, %v436
        %v880 = vadd.f32 %v848, %v436
        %v881 = vadd.f32 %v851, %v436
        %v882 = vadd.f32 %v856, %v436
        %v883 = vadd.f32 %v859, %v436
        %v884 = vadd.f32 %v864, %v436
        %v885 = vadd.f32 %v867, %v436
        %v886 = vxor.u32 %v870, 2147483648
        %v887 = vxor.u32 %v871, 2147483648
        %v888 = vxor.u32 %v872, 2147483648
        %v889 = vxor.u32 %v873, 2147483648
        %v890 = vxor.u32 %v874, 2147483648
        %v891 = vxor.u32 %v875, 2147483648
        %v892 = vxor.u32 %v876, 2147483648
        %v893 = vxor.u32 %v877, 2147483648
        %v894 = vxor.u32 %v878, 2147483648
        %v895 = vxor.u32 %v879, 2147483648
        %v896 = vxor.u32 %v880, 2147483648
        %v897 = vxor.u32 %v881, 2147483648
        %v898 = vxor.u32 %v882, 2147483648
        %v899 = vxor.u32 %v883, 2147483648
        %v900 = vxor.u32 %v884, 2147483648
        %v901 = vxor.u32 %v885, 2147483648
        %v902 = vmul.f32 %v886, 1.442695
        %v903 = vpow.pop %v902
        %v904 = vmul.f32 %v887, 1.442695
        %v905 = vpow.pop %v904
        %v906 = vmul.f32 %v888, 1.442695
        %v907 = vpow.pop %v906
        %v908 = vmul.f32 %v889, 1.442695
        %v909 = vpow.pop %v908
        %v910 = vmul.f32 %v890, 1.442695
        %v911 = vpow.pop %v910
        %v912 = vmul.f32 %v891, 1.442695
        %v913 = vpow.pop %v912
        %v914 = vmul.f32 %v892, 1.442695
        %v915 = vpow.pop %v914
        %v916 = vmul.f32 %v893, 1.442695
        %v917 = vpow.pop %v916
        %v918 = vmul.f32 %v894, 1.442695
        %v919 = vpow.pop %v918
        %v920 = vmul.f32 %v895, 1.442695
        %v921 = vpow.pop %v920
        %v922 = vmul.f32 %v896, 1.442695
        %v923 = vpow.pop %v922
        %v924 = vmul.f32 %v897, 1.442695
        %v925 = vpow.pop %v924
        %v926 = vmul.f32 %v898, 1.442695
        %v927 = vpow.pop %v926
        %v928 = vmul.f32 %v899, 1.442695
        %v929 = vpow.pop %v928
        %v930 = vmul.f32 %v900, 1.442695
        %v931 = vpow.pop %v930
        %v932 = vmul.f32 %v901, 1.442695
        %v933 = vpow.pop %v932
        %v934 = vadd.f32 %v903, 1.0
        %v935 = vadd.f32 %v905, 1.0
        %v936 = vadd.f32 %v907, 1.0
        %v937 = vadd.f32 %v909, 1.0
        %v938 = vadd.f32 %v911, 1.0
        %v939 = vadd.f32 %v913, 1.0
        %v940 = vadd.f32 %v915, 1.0
        %v941 = vadd.f32 %v917, 1.0
        %v942 = vadd.f32 %v919, 1.0
        %v943 = vadd.f32 %v921, 1.0
        %v944 = vadd.f32 %v923, 1.0
        %v945 = vadd.f32 %v925, 1.0
        %v946 = vadd.f32 %v927, 1.0
        %v947 = vadd.f32 %v929, 1.0
        %v948 = vadd.f32 %v931, 1.0
        %v949 = vadd.f32 %v933, 1.0
        %v950 = vrcp.pop %v934
        %v951 = vmul.f32 1.0, %v950
        %v952 = vrcp.pop %v935
        %v953 = vmul.f32 1.0, %v952
        %v954 = vrcp.pop %v936
        %v955 = vmul.f32 1.0, %v954
        %v956 = vrcp.pop %v937
        %v957 = vmul.f32 1.0, %v956
        %v958 = vrcp.pop %v938
        %v959 = vmul.f32 1.0, %v958
        %v960 = vrcp.pop %v939
        %v961 = vmul.f32 1.0, %v960
        %v962 = vrcp.pop %v940
        %v963 = vmul.f32 1.0, %v962
        %v964 = vrcp.pop %v941
        %v965 = vmul.f32 1.0, %v964
        %v966 = vrcp.pop %v942
        %v967 = vmul.f32 1.0, %v966
        %v968 = vrcp.pop %v943
        %v969 = vmul.f32 1.0, %v968
        %v970 = vrcp.pop %v944
        %v971 = vmul.f32 1.0, %v970
        %v972 = vrcp.pop %v945
        %v973 = vmul.f32 1.0, %v972
        %v974 = vrcp.pop %v946
        %v975 = vmul.f32 1.0, %v974
        %v976 = vrcp.pop %v947
        %v977 = vmul.f32 1.0, %v976
        %v978 = vrcp.pop %v948
        %v979 = vmul.f32 1.0, %v978
        %v980 = vrcp.pop %v949
        %v981 = vmul.f32 1.0, %v980
        %998 = vrot.lane.b32.xlu0 %v870, 32
        %v999 = vpop.permute.xlu0 %998
        %1000 = vrot.lane.b32.xlu0 %v871, 32
        %v1001 = vpop.permute.xlu0 %1000
        %1002 = vrot.lane.b32.xlu0 %v872, 32
        %v1003 = vpop.permute.xlu0 %1002
        %1004 = vrot.lane.b32.xlu0 %v873, 32
        %v1005 = vpop.permute.xlu0 %1004
        %1006 = vrot.lane.b32.xlu0 %v874, 32
        %v1007 = vpop.permute.xlu0 %1006
        %1008 = vrot.lane.b32.xlu0 %v875, 32
        %v1009 = vpop.permute.xlu0 %1008
        %1010 = vrot.lane.b32.xlu0 %v876, 32
        %v1011 = vpop.permute.xlu0 %1010
        %1012 = vrot.lane.b32.xlu0 %v877, 32
        %v1013 = vpop.permute.xlu0 %1012
        %1014 = vrot.lane.b32.xlu0 %v878, 32
        %v1015 = vpop.permute.xlu0 %1014
        %1016 = vrot.lane.b32.xlu0 %v879, 32
        %v1017 = vpop.permute.xlu0 %1016
        %1018 = vrot.lane.b32.xlu0 %v880, 32
        %v1019 = vpop.permute.xlu0 %1018
        %1020 = vrot.lane.b32.xlu0 %v881, 32
        %v1021 = vpop.permute.xlu0 %1020
        %1022 = vrot.lane.b32.xlu0 %v882, 32
        %v1023 = vpop.permute.xlu0 %1022
        %1024 = vrot.lane.b32.xlu0 %v883, 32
        %v1025 = vpop.permute.xlu0 %1024
        %1026 = vrot.lane.b32.xlu0 %v884, 32
        %v1027 = vpop.permute.xlu0 %1026
        %1028 = vrot.lane.b32.xlu0 %v885, 32
        %v1029 = vpop.permute.xlu0 %1028
        %v1046 = vmul.f32 %v951, %v999
        %v1047 = vmul.f32 %v953, %v1001
        %v1048 = vmul.f32 %v955, %v1003
        %v1049 = vmul.f32 %v957, %v1005
        %v1050 = vmul.f32 %v959, %v1007
        %v1051 = vmul.f32 %v961, %v1009
        %v1052 = vmul.f32 %v963, %v1011
        %v1053 = vmul.f32 %v965, %v1013
        %v1054 = vmul.f32 %v967, %v1015
        %v1055 = vmul.f32 %v969, %v1017
        %v1056 = vmul.f32 %v971, %v1019
        %v1057 = vmul.f32 %v973, %v1021
        %v1058 = vmul.f32 %v975, %v1023
        %v1059 = vmul.f32 %v977, %v1025
        %v1060 = vmul.f32 %v979, %v1027
        %v1061 = vmul.f32 %v981, %v1029
        %1078 = vrot.lane.b32.xlu0 %v1046, 64
        %v1079 = vpop.permute.xlu0 %1078
        %1080 = vrot.lane.b32.xlu0 %v1047, 64
        %v1081 = vpop.permute.xlu0 %1080
        %1082 = vrot.lane.b32.xlu0 %v1048, 64
        %v1083 = vpop.permute.xlu0 %1082
        %1084 = vrot.lane.b32.xlu0 %v1049, 64
        %v1085 = vpop.permute.xlu0 %1084
        %1086 = vrot.lane.b32.xlu0 %v1050, 64
        %v1087 = vpop.permute.xlu0 %1086
        %1088 = vrot.lane.b32.xlu0 %v1051, 64
        %v1089 = vpop.permute.xlu0 %1088
        %1090 = vrot.lane.b32.xlu0 %v1052, 64
        %v1091 = vpop.permute.xlu0 %1090
        %1092 = vrot.lane.b32.xlu0 %v1053, 64
        %v1093 = vpop.permute.xlu0 %1092
        %1094 = vrot.lane.b32.xlu0 %v1054, 64
        %v1095 = vpop.permute.xlu0 %1094
        %1096 = vrot.lane.b32.xlu0 %v1055, 64
        %v1097 = vpop.permute.xlu0 %1096
        %1098 = vrot.lane.b32.xlu0 %v1056, 64
        %v1099 = vpop.permute.xlu0 %1098
        %1100 = vrot.lane.b32.xlu0 %v1057, 64
        %v1101 = vpop.permute.xlu0 %1100
        %1102 = vrot.lane.b32.xlu0 %v1058, 64
        %v1103 = vpop.permute.xlu0 %1102
        %1104 = vrot.lane.b32.xlu0 %v1059, 64
        %v1105 = vpop.permute.xlu0 %1104
        %1106 = vrot.lane.b32.xlu0 %v1060, 64
        %v1107 = vpop.permute.xlu0 %1106
        %1108 = vrot.lane.b32.xlu0 %v1061, 64
        %v1109 = vpop.permute.xlu0 %1108
        %v1126 = vadd.f32 %v870, %v1079
        %v1127 = vadd.f32 %v871, %v1081
        %v1128 = vadd.f32 %v872, %v1083
        %v1129 = vadd.f32 %v873, %v1085
        %v1130 = vadd.f32 %v874, %v1087
        %v1131 = vadd.f32 %v875, %v1089
        %v1132 = vadd.f32 %v876, %v1091
        %v1133 = vadd.f32 %v877, %v1093
        %v1134 = vadd.f32 %v878, %v1095
        %v1135 = vadd.f32 %v879, %v1097
        %v1136 = vadd.f32 %v880, %v1099
        %v1137 = vadd.f32 %v881, %v1101
        %v1138 = vadd.f32 %v882, %v1103
        %v1139 = vadd.f32 %v883, %v1105
        %v1140 = vadd.f32 %v884, %v1107
        %v1141 = vadd.f32 %v885, %v1109
        %v1142 = vtanh.pop %v1126
        %v1143 = vtanh.pop %v1127
        %v1144 = vtanh.pop %v1128
        %v1145 = vtanh.pop %v1129
        %v1146 = vtanh.pop %v1130
        %v1147 = vtanh.pop %v1131
        %v1148 = vtanh.pop %v1132
        %v1149 = vtanh.pop %v1133
        %v1150 = vtanh.pop %v1134
        %v1151 = vtanh.pop %v1135
        %v1152 = vtanh.pop %v1136
        %v1153 = vtanh.pop %v1137
        %v1154 = vtanh.pop %v1138
        %v1155 = vtanh.pop %v1139
        %v1156 = vtanh.pop %v1140
        %v1157 = vtanh.pop %v1141
        %v1158 = vsub.f32 1.0, %v951
        %v1159 = vsub.f32 1.0, %v953
        %v1160 = vsub.f32 1.0, %v955
        %v1161 = vsub.f32 1.0, %v957
        %v1162 = vsub.f32 1.0, %v959
        %v1163 = vsub.f32 1.0, %v961
        %v1164 = vsub.f32 1.0, %v963
        %v1165 = vsub.f32 1.0, %v965
        %v1166 = vsub.f32 1.0, %v967
        %v1167 = vsub.f32 1.0, %v969
        %v1168 = vsub.f32 1.0, %v971
        %v1169 = vsub.f32 1.0, %v973
        %v1170 = vsub.f32 1.0, %v975
        %v1171 = vsub.f32 1.0, %v977
        %v1172 = vsub.f32 1.0, %v979
        %v1173 = vsub.f32 1.0, %v981
        %1190 = vrot.lane.b32.xlu0 %v1142, 96
        %v1191 = vpop.permute.xlu0 %1190
        %1192 = vrot.lane.b32.xlu0 %v1143, 96
        %v1193 = vpop.permute.xlu0 %1192
        %1194 = vrot.lane.b32.xlu0 %v1144, 96
        %v1195 = vpop.permute.xlu0 %1194
        %1196 = vrot.lane.b32.xlu0 %v1145, 96
        %v1197 = vpop.permute.xlu0 %1196
        %1198 = vrot.lane.b32.xlu0 %v1146, 96
        %v1199 = vpop.permute.xlu0 %1198
        %1200 = vrot.lane.b32.xlu0 %v1147, 96
        %v1201 = vpop.permute.xlu0 %1200
        %1202 = vrot.lane.b32.xlu0 %v1148, 96
        %v1203 = vpop.permute.xlu0 %1202
        %1204 = vrot.lane.b32.xlu0 %v1149, 96
        %v1205 = vpop.permute.xlu0 %1204
        %1206 = vrot.lane.b32.xlu0 %v1150, 96
        %v1207 = vpop.permute.xlu0 %1206
        %1208 = vrot.lane.b32.xlu0 %v1151, 96
        %v1209 = vpop.permute.xlu0 %1208
        %1210 = vrot.lane.b32.xlu0 %v1152, 96
        %v1211 = vpop.permute.xlu0 %1210
        %1212 = vrot.lane.b32.xlu0 %v1153, 96
        %v1213 = vpop.permute.xlu0 %1212
        %1214 = vrot.lane.b32.xlu0 %v1154, 96
        %v1215 = vpop.permute.xlu0 %1214
        %1216 = vrot.lane.b32.xlu0 %v1155, 96
        %v1217 = vpop.permute.xlu0 %1216
        %1218 = vrot.lane.b32.xlu0 %v1156, 96
        %v1219 = vpop.permute.xlu0 %1218
        %1220 = vrot.lane.b32.xlu0 %v1157, 96
        %v1221 = vpop.permute.xlu0 %1220
        %v1238 = vmul.f32 %v1158, %v1191
        %v1239 = vmul.f32 %v1159, %v1193
        %v1240 = vmul.f32 %v1160, %v1195
        %v1241 = vmul.f32 %v1161, %v1197
        %v1242 = vmul.f32 %v1162, %v1199
        %v1243 = vmul.f32 %v1163, %v1201
        %v1244 = vmul.f32 %v1164, %v1203
        %v1245 = vmul.f32 %v1165, %v1205
        %v1246 = vmul.f32 %v1166, %v1207
        %v1247 = vmul.f32 %v1167, %v1209
        %v1248 = vmul.f32 %v1168, %v1211
        %v1249 = vmul.f32 %v1169, %v1213
        %v1250 = vmul.f32 %v1170, %v1215
        %v1251 = vmul.f32 %v1171, %v1217
        %v1252 = vmul.f32 %v1172, %v1219
        %v1253 = vmul.f32 %v1173, %v1221
        %1270 = vrot.lane.b32.xlu0 %v411, 32
        %v1271 = vpop.permute.xlu0 %1270
        %1272 = vrot.lane.b32.xlu0 %v412, 32
        %v1273 = vpop.permute.xlu0 %1272
        %1274 = vrot.lane.b32.xlu0 %v413, 32
        %v1275 = vpop.permute.xlu0 %1274
        %1276 = vrot.lane.b32.xlu0 %v414, 32
        %v1277 = vpop.permute.xlu0 %1276
        %1278 = vrot.lane.b32.xlu0 %v415, 32
        %v1279 = vpop.permute.xlu0 %1278
        %1280 = vrot.lane.b32.xlu0 %v416, 32
        %v1281 = vpop.permute.xlu0 %1280
        %1282 = vrot.lane.b32.xlu0 %v417, 32
        %v1283 = vpop.permute.xlu0 %1282
        %1284 = vrot.lane.b32.xlu0 %v418, 32
        %v1285 = vpop.permute.xlu0 %1284
        %1286 = vrot.lane.b32.xlu0 %v419, 32
        %v1287 = vpop.permute.xlu0 %1286
        %1288 = vrot.lane.b32.xlu0 %v420, 32
        %v1289 = vpop.permute.xlu0 %1288
        %1290 = vrot.lane.b32.xlu0 %v421, 32
        %v1291 = vpop.permute.xlu0 %1290
        %1292 = vrot.lane.b32.xlu0 %v422, 32
        %v1293 = vpop.permute.xlu0 %1292
        %1294 = vrot.lane.b32.xlu0 %v423, 32
        %v1295 = vpop.permute.xlu0 %1294
        %1296 = vrot.lane.b32.xlu0 %v424, 32
        %v1297 = vpop.permute.xlu0 %1296
        %1298 = vrot.lane.b32.xlu0 %v425, 32
        %v1299 = vpop.permute.xlu0 %1298
        %1300 = vrot.lane.b32.xlu0 %v426, 32
        %v1301 = vpop.permute.xlu0 %1300
        %v1318 = vmul.f32 %v951, %v1271
        %v1319 = vmul.f32 %v953, %v1273
        %v1320 = vmul.f32 %v955, %v1275
        %v1321 = vmul.f32 %v957, %v1277
        %v1322 = vmul.f32 %v959, %v1279
        %v1323 = vmul.f32 %v961, %v1281
        %v1324 = vmul.f32 %v963, %v1283
        %v1325 = vmul.f32 %v965, %v1285
        %v1326 = vmul.f32 %v967, %v1287
        %v1327 = vmul.f32 %v969, %v1289
        %v1328 = vmul.f32 %v971, %v1291
        %v1329 = vmul.f32 %v973, %v1293
        %v1330 = vmul.f32 %v975, %v1295
        %v1331 = vmul.f32 %v977, %v1297
        %v1332 = vmul.f32 %v979, %v1299
        %v1333 = vmul.f32 %v981, %v1301
        %v1334 = vadd.f32 %v1238, %v1318
        %v1335 = vadd.f32 %v1239, %v1319
        %v1336 = vadd.f32 %v1240, %v1320
        %v1337 = vadd.f32 %v1241, %v1321
        %v1338 = vadd.f32 %v1242, %v1322
        %v1339 = vadd.f32 %v1243, %v1323
        %v1340 = vadd.f32 %v1244, %v1324
        %v1341 = vadd.f32 %v1245, %v1325
        %v1342 = vadd.f32 %v1246, %v1326
        %v1343 = vadd.f32 %v1247, %v1327
        %v1344 = vadd.f32 %v1248, %v1328
        %v1345 = vadd.f32 %v1249, %v1329
        %v1346 = vadd.f32 %v1250, %v1330
        %v1347 = vadd.f32 %v1251, %v1331
        %v1348 = vadd.f32 %v1252, %v1332
        %v1349 = vadd.f32 %v1253, %v1333
        %v1350 = vpack.c.bf16 %v1335, %v1334
        %v1351 = vpack.c.bf16 %v1337, %v1336
        %v1352 = vpack.c.bf16 %v1339, %v1338
        %v1353 = vpack.c.bf16 %v1341, %v1340
        %v1354 = vpack.c.bf16 %v1343, %v1342
        %v1355 = vpack.c.bf16 %v1345, %v1344
        %v1356 = vpack.c.bf16 %v1347, %v1346
        %v1357 = vpack.c.bf16 %v1349, %v1348
        %1366 = vrot.lane.b32.xlu0 %v1350, 96
        %v1367 = vpop.permute.xlu0 %1366
        %1368 = vrot.lane.b32.xlu0 %v1351, 96
        %v1369 = vpop.permute.xlu0 %1368
        %1370 = vrot.lane.b32.xlu0 %v1352, 96
        %v1371 = vpop.permute.xlu0 %1370
        %1372 = vrot.lane.b32.xlu0 %v1353, 96
        %v1373 = vpop.permute.xlu0 %1372
        %1374 = vrot.lane.b32.xlu0 %v1354, 96
        %v1375 = vpop.permute.xlu0 %1374
        %1376 = vrot.lane.b32.xlu0 %v1355, 96
        %v1377 = vpop.permute.xlu0 %1376
        %1378 = vrot.lane.b32.xlu0 %v1356, 96
        %v1379 = vpop.permute.xlu0 %1378
        %1380 = vrot.lane.b32.xlu0 %v1357, 96
        %v1381 = vpop.permute.xlu0 %1380
        %1390 = vmatprep.subr.bf16.mxu0 0
        %1391 = vmatpush1.bf16.msra.mxu0 %v1367
        %1392 = vmatprep.subr.bf16.mxu0 0
        %1393 = vmatpush1.bf16.msra.mxu0 %v1369
        %1394 = vmatprep.subr.bf16.mxu0 0
        %1395 = vmatpush1.bf16.msra.mxu0 %v1371
        %1396 = vmatprep.subr.bf16.mxu0 0
        %1397 = vmatpush1.bf16.msra.mxu0 %v1373
        %1398 = vmatprep.subr.bf16.mxu0 0
        %1399 = vmatpush1.bf16.msra.mxu0 %v1375
        %1400 = vmatprep.subr.bf16.mxu0 0
        %1401 = vmatpush1.bf16.msra.mxu0 %v1377
        %1402 = vmatprep.subr.bf16.mxu0 0
        %1403 = vmatpush1.bf16.msra.mxu0 %v1379
        %1404 = vmatprep.subr.bf16.mxu0 0
        %1405 = vmatpush1.bf16.msra.mxu0 %v1381
        %1406 = vmatprep.subr.bf16.mxu0 0
        %1407 = vmatpush1.bf16.msra.mxu0 0
        %1408 = vmatprep.subr.bf16.mxu0 0
        %1409 = vmatpush1.bf16.msra.mxu0 0
        %1410 = vmatprep.subr.bf16.mxu0 0
        %1411 = vmatpush1.bf16.msra.mxu0 0
        %1412 = vmatprep.subr.bf16.mxu0 0
        %1413 = vmatpush1.bf16.msra.mxu0 0
        %1414 = vmatprep.subr.bf16.mxu0 0
        %1415 = vmatpush1.bf16.msra.mxu0 0
        %1416 = vmatprep.subr.bf16.mxu0 0
        %1417 = vmatpush1.bf16.msra.mxu0 0
        %1418 = vmatprep.subr.bf16.mxu0 0
        %1419 = vmatpush1.bf16.msra.mxu0 0
        %1420 = vmatprep.subr.bf16.mxu0 0
        %1421 = vmatpush1.bf16.msra.mxu0 0
        %1422 = vmatprep.mubr.bf16.mxu0 0
        %1423 = vmatmul.mubr.bf16.gmra.mrb[0].mxu0 %v478
        %v1424 = vpop.f32.mrb[0].mxu0
        %v1425 = vadd.f32 0.0, %v1424
        %v1426 = vpop.f32.mrb[0].mxu0
        %v1427 = vpop.f32.mrb[0].mxu0
        %v1428 = vadd.f32 0.0, %v1427
        %v1429 = vpop.f32.mrb[0].mxu0
        %1430 = vmatprep.mubr.bf16.mxu0 0
        %1431 = vmatmul.mubr.bf16.gmra.mrb[0].mxu0 %v479
        %v1432 = vpop.f32.mrb[0].mxu0
        %v1433 = vadd.f32 0.0, %v1432
        %v1434 = vpop.f32.mrb[0].mxu0
        %v1435 = vpop.f32.mrb[0].mxu0
        %v1436 = vadd.f32 0.0, %v1435
        %v1437 = vpop.f32.mrb[0].mxu0
        %1438 = vmatprep.mubr.bf16.mxu0 0
        %1439 = vmatmul.mubr.bf16.gmra.mrb[0].mxu0 %v480
        %v1440 = vpop.f32.mrb[0].mxu0
        %v1441 = vadd.f32 0.0, %v1440
        %v1442 = vpop.f32.mrb[0].mxu0
        %v1443 = vpop.f32.mrb[0].mxu0
        %v1444 = vadd.f32 0.0, %v1443
        %v1445 = vpop.f32.mrb[0].mxu0
        %1446 = vmatprep.mubr.bf16.mxu0 0
        %1447 = vmatmul.mubr.bf16.gmra.mrb[0].mxu0 %v481
        %v1448 = vpop.f32.mrb[0].mxu0
        %v1449 = vadd.f32 0.0, %v1448
        %v1450 = vpop.f32.mrb[0].mxu0
        %v1451 = vpop.f32.mrb[0].mxu0
        %v1452 = vadd.f32 0.0, %v1451
        %v1453 = vpop.f32.mrb[0].mxu0
        %1454 = vmatprep.mubr.bf16.mxu0 0
        %1455 = vmatmul.mubr.bf16.gmra.mrb[0].mxu0 %v482
        %v1456 = vpop.f32.mrb[0].mxu0
        %v1457 = vadd.f32 0.0, %v1456
        %v1458 = vpop.f32.mrb[0].mxu0
        %v1459 = vpop.f32.mrb[0].mxu0
        %v1460 = vadd.f32 0.0, %v1459
        %v1461 = vpop.f32.mrb[0].mxu0
        %1462 = vmatprep.mubr.bf16.mxu0 0
        %1463 = vmatmul.mubr.bf16.gmra.mrb[0].mxu0 %v483
        %v1464 = vpop.f32.mrb[0].mxu0
        %v1465 = vadd.f32 0.0, %v1464
        %v1466 = vpop.f32.mrb[0].mxu0
        %v1467 = vpop.f32.mrb[0].mxu0
        %v1468 = vadd.f32 0.0, %v1467
        %v1469 = vpop.f32.mrb[0].mxu0
        %1470 = vmatprep.mubr.bf16.mxu0 0
        %1471 = vmatmul.mubr.bf16.gmra.mrb[0].mxu0 %v484
        %v1472 = vpop.f32.mrb[0].mxu0
        %v1473 = vadd.f32 0.0, %v1472
        %v1474 = vpop.f32.mrb[0].mxu0
        %v1475 = vpop.f32.mrb[0].mxu0
        %v1476 = vadd.f32 0.0, %v1475
        %v1477 = vpop.f32.mrb[0].mxu0
        %1478 = vmatprep.mubr.bf16.mxu0 0
        %1479 = vmatmul.mubr.bf16.gmra.mrb[0].mxu0 %v485
        %v1480 = vpop.f32.mrb[0].mxu0
        %v1481 = vadd.f32 0.0, %v1480
        %v1482 = vpop.f32.mrb[0].mxu0
        %v1483 = vpop.f32.mrb[0].mxu0
        %v1484 = vadd.f32 0.0, %v1483
        %v1485 = vpop.f32.mrb[0].mxu0
        %1486 = vdwg.mxu0
        %v1487 = vpack.c.bf16 %v1428, %v1425
        %v1488 = vpack.c.bf16 %v1436, %v1433
        %v1489 = vpack.c.bf16 %v1444, %v1441
        %v1490 = vpack.c.bf16 %v1452, %v1449
        %v1491 = vpack.c.bf16 %v1460, %v1457
        %v1492 = vpack.c.bf16 %v1468, %v1465
        %v1493 = vpack.c.bf16 %v1476, %v1473
        %v1494 = vpack.c.bf16 %v1484, %v1481
        %s1495 = scalar_lea.vmem %s4, 16
        %v1496 = vld [vmem:[%s1495] sm:$0xf]
        %v1497 = vld [vmem:[%s1495 + $0x4] sm:$0xf]
        %v1498 = vld [vmem:[%s1495 + $0x8] sm:$0xf]
        %v1499 = vld [vmem:[%s1495 + $0xc] sm:$0xf]
        %v1501 = vsel %vm615, %v1367, 0
        %v1504 = vsel %vm615, %v1369, 0
        %v1507 = vsel %vm615, %v1371, 0
        %v1510 = vsel %vm615, %v1373, 0
        %v1513 = vsel %vm615, %v1375, 0
        %v1516 = vsel %vm615, %v1377, 0
        %v1519 = vsel %vm615, %v1379, 0
        %v1522 = vsel %vm615, %v1381, 0
        %1524 = vmatprep.subr.bf16.mxu0 0
        %1525 = vmatpush1.bf16.msra.mxu0 %v611
        %1526 = vmatprep.subr.bf16.mxu0 0
        %1527 = vmatpush1.bf16.msra.mxu0 %v612
        %1528 = vmatprep.subr.bf16.mxu0 0
        %1529 = vmatpush1.bf16.msra.mxu0 0
        %1530 = vmatprep.subr.bf16.mxu0 0
        %1531 = vmatpush1.bf16.msra.mxu0 0
        %1532 = vmatprep.subr.bf16.mxu0 0
        %1533 = vmatpush1.bf16.msra.mxu0 0
        %1534 = vmatprep.subr.bf16.mxu0 0
        %1535 = vmatpush1.bf16.msra.mxu0 0
        %1536 = vmatprep.subr.bf16.mxu0 0
        %1537 = vmatpush1.bf16.msra.mxu0 0
        %1538 = vmatprep.subr.bf16.mxu0 0
        %1539 = vmatpush1.bf16.msra.mxu0 0
        %1540 = vmatprep.subr.bf16.mxu0 0
        %1541 = vmatpush1.bf16.msra.mxu0 0
        %1542 = vmatprep.subr.bf16.mxu0 0
        %1543 = vmatpush1.bf16.msra.mxu0 0
        %1544 = vmatprep.subr.bf16.mxu0 0
        %1545 = vmatpush1.bf16.msra.mxu0 0
        %1546 = vmatprep.subr.bf16.mxu0 0
        %1547 = vmatpush1.bf16.msra.mxu0 0
        %1548 = vmatprep.subr.bf16.mxu0 0
        %1549 = vmatpush1.bf16.msra.mxu0 0
        %1550 = vmatprep.subr.bf16.mxu0 0
        %1551 = vmatpush1.bf16.msra.mxu0 0
        %1552 = vmatprep.subr.bf16.mxu0 0
        %1553 = vmatpush1.bf16.msra.mxu0 0
        %1554 = vmatprep.subr.bf16.mxu0 0
        %1555 = vmatpush1.bf16.msra.mxu0 0
        %1556 = vmatprep.mubr.bf16.mxu0 0
        %1557 = vmatmul.mubr.bf16.gmra.mrb[0].mxu0 %v1501
        %v1558 = vpop.f32.mrb[0].mxu0
        %v1559 = vadd.f32 0.0, %v1558
        %v1560 = vpop.f32.mrb[0].mxu0
        %v1561 = vpop.f32.mrb[0].mxu0
        %v1562 = vadd.f32 0.0, %v1561
        %v1563 = vpop.f32.mrb[0].mxu0
        %1564 = vmatprep.mubr.bf16.mxu0 0
        %1565 = vmatmul.mubr.bf16.gmra.mrb[0].mxu0 %v1504
        %v1566 = vpop.f32.mrb[0].mxu0
        %v1567 = vadd.f32 0.0, %v1566
        %v1568 = vpop.f32.mrb[0].mxu0
        %v1569 = vpop.f32.mrb[0].mxu0
        %v1570 = vadd.f32 0.0, %v1569
        %v1571 = vpop.f32.mrb[0].mxu0
        %1572 = vmatprep.mubr.bf16.mxu0 0
        %1573 = vmatmul.mubr.bf16.gmra.mrb[0].mxu0 %v1507
        %v1574 = vpop.f32.mrb[0].mxu0
        %v1575 = vadd.f32 0.0, %v1574
        %v1576 = vpop.f32.mrb[0].mxu0
        %v1577 = vpop.f32.mrb[0].mxu0
        %v1578 = vadd.f32 0.0, %v1577
        %v1579 = vpop.f32.mrb[0].mxu0
        %1580 = vmatprep.mubr.bf16.mxu0 0
        %1581 = vmatmul.mubr.bf16.gmra.mrb[0].mxu0 %v1510
        %v1582 = vpop.f32.mrb[0].mxu0
        %v1583 = vadd.f32 0.0, %v1582
        %v1584 = vpop.f32.mrb[0].mxu0
        %v1585 = vpop.f32.mrb[0].mxu0
        %v1586 = vadd.f32 0.0, %v1585
        %v1587 = vpop.f32.mrb[0].mxu0
        %1588 = vmatprep.mubr.bf16.mxu0 0
        %1589 = vmatmul.mubr.bf16.gmra.mrb[0].mxu0 %v1513
        %v1590 = vpop.f32.mrb[0].mxu0
        %v1591 = vadd.f32 0.0, %v1590
        %v1592 = vpop.f32.mrb[0].mxu0
        %v1593 = vpop.f32.mrb[0].mxu0
        %v1594 = vadd.f32 0.0, %v1593
        %v1595 = vpop.f32.mrb[0].mxu0
        %1596 = vmatprep.mubr.bf16.mxu0 0
        %1597 = vmatmul.mubr.bf16.gmra.mrb[0].mxu0 %v1516
        %v1598 = vpop.f32.mrb[0].mxu0
        %v1599 = vadd.f32 0.0, %v1598
        %v1600 = vpop.f32.mrb[0].mxu0
        %v1601 = vpop.f32.mrb[0].mxu0
        %v1602 = vadd.f32 0.0, %v1601
        %v1603 = vpop.f32.mrb[0].mxu0
        %1604 = vmatprep.mubr.bf16.mxu0 0
        %1605 = vmatmul.mubr.bf16.gmra.mrb[0].mxu0 %v1519
        %v1606 = vpop.f32.mrb[0].mxu0
        %v1607 = vadd.f32 0.0, %v1606
        %v1608 = vpop.f32.mrb[0].mxu0
        %v1609 = vpop.f32.mrb[0].mxu0
        %v1610 = vadd.f32 0.0, %v1609
        %v1611 = vpop.f32.mrb[0].mxu0
        %1612 = vmatprep.mubr.bf16.mxu0 0
        %1613 = vmatmul.mubr.bf16.gmra.mrb[0].mxu0 %v1522
        %v1614 = vpop.f32.mrb[0].mxu0
        %v1615 = vadd.f32 0.0, %v1614
        %v1616 = vpop.f32.mrb[0].mxu0
        %v1617 = vpop.f32.mrb[0].mxu0
        %v1618 = vadd.f32 0.0, %v1617
        %v1619 = vpop.f32.mrb[0].mxu0
        %1620 = vdwg.mxu0
        %v1625 = vunpack.c.l.b16 %v1496
        %v1626 = vunpack.c.l.b16 %v1497
        %v1627 = vunpack.c.l.b16 %v1498
        %v1628 = vunpack.c.l.b16 %v1499
        %v1629 = vpack.c.b16 %v1626, %v1625
        %v1630 = vpack.c.b16 %v1628, %v1627
        %v1634 = vsel %vm615, %v1487, 0
        %v1637 = vsel %vm615, %v1488, 0
        %v1640 = vsel %vm615, %v1489, 0
        %v1643 = vsel %vm615, %v1490, 0
        %v1646 = vsel %vm615, %v1491, 0
        %v1649 = vsel %vm615, %v1492, 0
        %v1652 = vsel %vm615, %v1493, 0
        %v1655 = vsel %vm615, %v1494, 0
        %1657 = vmatprep.subr.bf16.mxu0 0
        %1658 = vmatpush1.bf16.msra.mxu0 %v1629
        %1659 = vmatprep.subr.bf16.mxu0 0
        %1660 = vmatpush1.bf16.msra.mxu0 %v1630
        %1661 = vmatprep.subr.bf16.mxu0 0
        %1662 = vmatpush1.bf16.msra.mxu0 0
        %1663 = vmatprep.subr.bf16.mxu0 0
        %1664 = vmatpush1.bf16.msra.mxu0 0
        %1665 = vmatprep.subr.bf16.mxu0 0
        %1666 = vmatpush1.bf16.msra.mxu0 0
        %1667 = vmatprep.subr.bf16.mxu0 0
        %1668 = vmatpush1.bf16.msra.mxu0 0
        %1669 = vmatprep.subr.bf16.mxu0 0
        %1670 = vmatpush1.bf16.msra.mxu0 0
        %1671 = vmatprep.subr.bf16.mxu0 0
        %1672 = vmatpush1.bf16.msra.mxu0 0
        %1673 = vmatprep.subr.bf16.mxu0 0
        %1674 = vmatpush1.bf16.msra.mxu0 0
        %1675 = vmatprep.subr.bf16.mxu0 0
        %1676 = vmatpush1.bf16.msra.mxu0 0
        %1677 = vmatprep.subr.bf16.mxu0 0
        %1678 = vmatpush1.bf16.msra.mxu0 0
        %1679 = vmatprep.subr.bf16.mxu0 0
        %1680 = vmatpush1.bf16.msra.mxu0 0
        %1681 = vmatprep.subr.bf16.mxu0 0
        %1682 = vmatpush1.bf16.msra.mxu0 0
        %1683 = vmatprep.subr.bf16.mxu0 0
        %1684 = vmatpush1.bf16.msra.mxu0 0
        %1685 = vmatprep.subr.bf16.mxu0 0
        %1686 = vmatpush1.bf16.msra.mxu0 0
        %1687 = vmatprep.subr.bf16.mxu0 0
        %1688 = vmatpush1.bf16.msra.mxu0 0
        %1689 = vmatprep.mubr.bf16.mxu0 0
        %1690 = vmatmul.mubr.bf16.gmra.mrb[0].mxu0 %v1634
        %v1691 = vpop.f32.mrb[0].mxu0
        %v1692 = vadd.f32 %v1559, %v1691
        %v1693 = vpop.f32.mrb[0].mxu0
        %v1694 = vpop.f32.mrb[0].mxu0
        %v1695 = vadd.f32 %v1562, %v1694
        %v1696 = vpop.f32.mrb[0].mxu0
        %1697 = vmatprep.mubr.bf16.mxu0 0
        %1698 = vmatmul.mubr.bf16.gmra.mrb[0].mxu0 %v1637
        %v1699 = vpop.f32.mrb[0].mxu0
        %v1700 = vadd.f32 %v1567, %v1699
        %v1701 = vpop.f32.mrb[0].mxu0
        %v1702 = vpop.f32.mrb[0].mxu0
        %v1703 = vadd.f32 %v1570, %v1702
        %v1704 = vpop.f32.mrb[0].mxu0
        %1705 = vmatprep.mubr.bf16.mxu0 0
        %1706 = vmatmul.mubr.bf16.gmra.mrb[0].mxu0 %v1640
        %v1707 = vpop.f32.mrb[0].mxu0
        %v1708 = vadd.f32 %v1575, %v1707
        %v1709 = vpop.f32.mrb[0].mxu0
        %v1710 = vpop.f32.mrb[0].mxu0
        %v1711 = vadd.f32 %v1578, %v1710
        %v1712 = vpop.f32.mrb[0].mxu0
        %1713 = vmatprep.mubr.bf16.mxu0 0
        %1714 = vmatmul.mubr.bf16.gmra.mrb[0].mxu0 %v1643
        %v1715 = vpop.f32.mrb[0].mxu0
        %v1716 = vadd.f32 %v1583, %v1715
        %v1717 = vpop.f32.mrb[0].mxu0
        %v1718 = vpop.f32.mrb[0].mxu0
        %v1719 = vadd.f32 %v1586, %v1718
        %v1720 = vpop.f32.mrb[0].mxu0
        %1721 = vmatprep.mubr.bf16.mxu0 0
        %1722 = vmatmul.mubr.bf16.gmra.mrb[0].mxu0 %v1646
        %v1723 = vpop.f32.mrb[0].mxu0
        %v1724 = vadd.f32 %v1591, %v1723
        %v1725 = vpop.f32.mrb[0].mxu0
        %v1726 = vpop.f32.mrb[0].mxu0
        %v1727 = vadd.f32 %v1594, %v1726
        %v1728 = vpop.f32.mrb[0].mxu0
        %1729 = vmatprep.mubr.bf16.mxu0 0
        %1730 = vmatmul.mubr.bf16.gmra.mrb[0].mxu0 %v1649
        %v1731 = vpop.f32.mrb[0].mxu0
        %v1732 = vadd.f32 %v1599, %v1731
        %v1733 = vpop.f32.mrb[0].mxu0
        %v1734 = vpop.f32.mrb[0].mxu0
        %v1735 = vadd.f32 %v1602, %v1734
        %v1736 = vpop.f32.mrb[0].mxu0
        %1737 = vmatprep.mubr.bf16.mxu0 0
        %1738 = vmatmul.mubr.bf16.gmra.mrb[0].mxu0 %v1652
        %v1739 = vpop.f32.mrb[0].mxu0
        %v1740 = vadd.f32 %v1607, %v1739
        %v1741 = vpop.f32.mrb[0].mxu0
        %v1742 = vpop.f32.mrb[0].mxu0
        %v1743 = vadd.f32 %v1610, %v1742
        %v1744 = vpop.f32.mrb[0].mxu0
        %1745 = vmatprep.mubr.bf16.mxu0 0
        %1746 = vmatmul.mubr.bf16.gmra.mrb[0].mxu0 %v1655
        %v1747 = vpop.f32.mrb[0].mxu0
        %v1748 = vadd.f32 %v1615, %v1747
        %v1749 = vpop.f32.mrb[0].mxu0
        %v1750 = vpop.f32.mrb[0].mxu0
        %v1751 = vadd.f32 %v1618, %v1750
        %v1752 = vpop.f32.mrb[0].mxu0
        %1753 = vdwg.mxu0
        %v1754 = vadd.f32 %v1692, %v436
        %v1755 = vadd.f32 %v1695, %v436
        %v1756 = vadd.f32 %v1700, %v436
        %v1757 = vadd.f32 %v1703, %v436
        %v1758 = vadd.f32 %v1708, %v436
        %v1759 = vadd.f32 %v1711, %v436
        %v1760 = vadd.f32 %v1716, %v436
        %v1761 = vadd.f32 %v1719, %v436
        %v1762 = vadd.f32 %v1724, %v436
        %v1763 = vadd.f32 %v1727, %v436
        %v1764 = vadd.f32 %v1732, %v436
        %v1765 = vadd.f32 %v1735, %v436
        %v1766 = vadd.f32 %v1740, %v436
        %v1767 = vadd.f32 %v1743, %v436
        %v1768 = vadd.f32 %v1748, %v436
        %v1769 = vadd.f32 %v1751, %v436
        %v1770 = vxor.u32 %v1754, 2147483648
        %v1771 = vxor.u32 %v1755, 2147483648
        %v1772 = vxor.u32 %v1756, 2147483648
        %v1773 = vxor.u32 %v1757, 2147483648
        %v1774 = vxor.u32 %v1758, 2147483648
        %v1775 = vxor.u32 %v1759, 2147483648
        %v1776 = vxor.u32 %v1760, 2147483648
        %v1777 = vxor.u32 %v1761, 2147483648
        %v1778 = vxor.u32 %v1762, 2147483648
        %v1779 = vxor.u32 %v1763, 2147483648
        %v1780 = vxor.u32 %v1764, 2147483648
        %v1781 = vxor.u32 %v1765, 2147483648
        %v1782 = vxor.u32 %v1766, 2147483648
        %v1783 = vxor.u32 %v1767, 2147483648
        %v1784 = vxor.u32 %v1768, 2147483648
        %v1785 = vxor.u32 %v1769, 2147483648
        %v1786 = vmul.f32 %v1770, 1.442695
        %v1787 = vpow.pop %v1786
        %v1788 = vmul.f32 %v1771, 1.442695
        %v1789 = vpow.pop %v1788
        %v1790 = vmul.f32 %v1772, 1.442695
        %v1791 = vpow.pop %v1790
        %v1792 = vmul.f32 %v1773, 1.442695
        %v1793 = vpow.pop %v1792
        %v1794 = vmul.f32 %v1774, 1.442695
        %v1795 = vpow.pop %v1794
        %v1796 = vmul.f32 %v1775, 1.442695
        %v1797 = vpow.pop %v1796
        %v1798 = vmul.f32 %v1776, 1.442695
        %v1799 = vpow.pop %v1798
        %v1800 = vmul.f32 %v1777, 1.442695
        %v1801 = vpow.pop %v1800
        %v1802 = vmul.f32 %v1778, 1.442695
        %v1803 = vpow.pop %v1802
        %v1804 = vmul.f32 %v1779, 1.442695
        %v1805 = vpow.pop %v1804
        %v1806 = vmul.f32 %v1780, 1.442695
        %v1807 = vpow.pop %v1806
        %v1808 = vmul.f32 %v1781, 1.442695
        %v1809 = vpow.pop %v1808
        %v1810 = vmul.f32 %v1782, 1.442695
        %v1811 = vpow.pop %v1810
        %v1812 = vmul.f32 %v1783, 1.442695
        %v1813 = vpow.pop %v1812
        %v1814 = vmul.f32 %v1784, 1.442695
        %v1815 = vpow.pop %v1814
        %v1816 = vmul.f32 %v1785, 1.442695
        %v1817 = vpow.pop %v1816
        %v1818 = vadd.f32 %v1787, 1.0
        %v1819 = vadd.f32 %v1789, 1.0
        %v1820 = vadd.f32 %v1791, 1.0
        %v1821 = vadd.f32 %v1793, 1.0
        %v1822 = vadd.f32 %v1795, 1.0
        %v1823 = vadd.f32 %v1797, 1.0
        %v1824 = vadd.f32 %v1799, 1.0
        %v1825 = vadd.f32 %v1801, 1.0
        %v1826 = vadd.f32 %v1803, 1.0
        %v1827 = vadd.f32 %v1805, 1.0
        %v1828 = vadd.f32 %v1807, 1.0
        %v1829 = vadd.f32 %v1809, 1.0
        %v1830 = vadd.f32 %v1811, 1.0
        %v1831 = vadd.f32 %v1813, 1.0
        %v1832 = vadd.f32 %v1815, 1.0
        %v1833 = vadd.f32 %v1817, 1.0
        %v1834 = vrcp.pop %v1818
        %v1835 = vmul.f32 1.0, %v1834
        %v1836 = vrcp.pop %v1819
        %v1837 = vmul.f32 1.0, %v1836
        %v1838 = vrcp.pop %v1820
        %v1839 = vmul.f32 1.0, %v1838
        %v1840 = vrcp.pop %v1821
        %v1841 = vmul.f32 1.0, %v1840
        %v1842 = vrcp.pop %v1822
        %v1843 = vmul.f32 1.0, %v1842
        %v1844 = vrcp.pop %v1823
        %v1845 = vmul.f32 1.0, %v1844
        %v1846 = vrcp.pop %v1824
        %v1847 = vmul.f32 1.0, %v1846
        %v1848 = vrcp.pop %v1825
        %v1849 = vmul.f32 1.0, %v1848
        %v1850 = vrcp.pop %v1826
        %v1851 = vmul.f32 1.0, %v1850
        %v1852 = vrcp.pop %v1827
        %v1853 = vmul.f32 1.0, %v1852
        %v1854 = vrcp.pop %v1828
        %v1855 = vmul.f32 1.0, %v1854
        %v1856 = vrcp.pop %v1829
        %v1857 = vmul.f32 1.0, %v1856
        %v1858 = vrcp.pop %v1830
        %v1859 = vmul.f32 1.0, %v1858
        %v1860 = vrcp.pop %v1831
        %v1861 = vmul.f32 1.0, %v1860
        %v1862 = vrcp.pop %v1832
        %v1863 = vmul.f32 1.0, %v1862
        %v1864 = vrcp.pop %v1833
        %v1865 = vmul.f32 1.0, %v1864
        %1882 = vrot.lane.b32.xlu0 %v1754, 32
        %v1883 = vpop.permute.xlu0 %1882
        %1884 = vrot.lane.b32.xlu0 %v1755, 32
        %v1885 = vpop.permute.xlu0 %1884
        %1886 = vrot.lane.b32.xlu0 %v1756, 32
        %v1887 = vpop.permute.xlu0 %1886
        %1888 = vrot.lane.b32.xlu0 %v1757, 32
        %v1889 = vpop.permute.xlu0 %1888
        %1890 = vrot.lane.b32.xlu0 %v1758, 32
        %v1891 = vpop.permute.xlu0 %1890
        %1892 = vrot.lane.b32.xlu0 %v1759, 32
        %v1893 = vpop.permute.xlu0 %1892
        %1894 = vrot.lane.b32.xlu0 %v1760, 32
        %v1895 = vpop.permute.xlu0 %1894
        %1896 = vrot.lane.b32.xlu0 %v1761, 32
        %v1897 = vpop.permute.xlu0 %1896
        %1898 = vrot.lane.b32.xlu0 %v1762, 32
        %v1899 = vpop.permute.xlu0 %1898
        %1900 = vrot.lane.b32.xlu0 %v1763, 32
        %v1901 = vpop.permute.xlu0 %1900
        %1902 = vrot.lane.b32.xlu0 %v1764, 32
        %v1903 = vpop.permute.xlu0 %1902
        %1904 = vrot.lane.b32.xlu0 %v1765, 32
        %v1905 = vpop.permute.xlu0 %1904
        %1906 = vrot.lane.b32.xlu0 %v1766, 32
        %v1907 = vpop.permute.xlu0 %1906
        %1908 = vrot.lane.b32.xlu0 %v1767, 32
        %v1909 = vpop.permute.xlu0 %1908
        %1910 = vrot.lane.b32.xlu0 %v1768, 32
        %v1911 = vpop.permute.xlu0 %1910
        %1912 = vrot.lane.b32.xlu0 %v1769, 32
        %v1913 = vpop.permute.xlu0 %1912
        %v1930 = vmul.f32 %v1835, %v1883
        %v1931 = vmul.f32 %v1837, %v1885
        %v1932 = vmul.f32 %v1839, %v1887
        %v1933 = vmul.f32 %v1841, %v1889
        %v1934 = vmul.f32 %v1843, %v1891
        %v1935 = vmul.f32 %v1845, %v1893
        %v1936 = vmul.f32 %v1847, %v1895
        %v1937 = vmul.f32 %v1849, %v1897
        %v1938 = vmul.f32 %v1851, %v1899
        %v1939 = vmul.f32 %v1853, %v1901
        %v1940 = vmul.f32 %v1855, %v1903
        %v1941 = vmul.f32 %v1857, %v1905
        %v1942 = vmul.f32 %v1859, %v1907
        %v1943 = vmul.f32 %v1861, %v1909
        %v1944 = vmul.f32 %v1863, %v1911
        %v1945 = vmul.f32 %v1865, %v1913
        %1962 = vrot.lane.b32.xlu0 %v1930, 64
        %v1963 = vpop.permute.xlu0 %1962
        %1964 = vrot.lane.b32.xlu0 %v1931, 64
        %v1965 = vpop.permute.xlu0 %1964
        %1966 = vrot.lane.b32.xlu0 %v1932, 64
        %v1967 = vpop.permute.xlu0 %1966
        %1968 = vrot.lane.b32.xlu0 %v1933, 64
        %v1969 = vpop.permute.xlu0 %1968
        %1970 = vrot.lane.b32.xlu0 %v1934, 64
        %v1971 = vpop.permute.xlu0 %1970
        %1972 = vrot.lane.b32.xlu0 %v1935, 64
        %v1973 = vpop.permute.xlu0 %1972
        %1974 = vrot.lane.b32.xlu0 %v1936, 64
        %v1975 = vpop.permute.xlu0 %1974
        %1976 = vrot.lane.b32.xlu0 %v1937, 64
        %v1977 = vpop.permute.xlu0 %1976
        %1978 = vrot.lane.b32.xlu0 %v1938, 64
        %v1979 = vpop.permute.xlu0 %1978
        %1980 = vrot.lane.b32.xlu0 %v1939, 64
        %v1981 = vpop.permute.xlu0 %1980
        %1982 = vrot.lane.b32.xlu0 %v1940, 64
        %v1983 = vpop.permute.xlu0 %1982
        %1984 = vrot.lane.b32.xlu0 %v1941, 64
        %v1985 = vpop.permute.xlu0 %1984
        %1986 = vrot.lane.b32.xlu0 %v1942, 64
        %v1987 = vpop.permute.xlu0 %1986
        %1988 = vrot.lane.b32.xlu0 %v1943, 64
        %v1989 = vpop.permute.xlu0 %1988
        %1990 = vrot.lane.b32.xlu0 %v1944, 64
        %v1991 = vpop.permute.xlu0 %1990
        %1992 = vrot.lane.b32.xlu0 %v1945, 64
        %v1993 = vpop.permute.xlu0 %1992
        %v2010 = vadd.f32 %v1754, %v1963
        %v2011 = vadd.f32 %v1755, %v1965
        %v2012 = vadd.f32 %v1756, %v1967
        %v2013 = vadd.f32 %v1757, %v1969
        %v2014 = vadd.f32 %v1758, %v1971
        %v2015 = vadd.f32 %v1759, %v1973
        %v2016 = vadd.f32 %v1760, %v1975
        %v2017 = vadd.f32 %v1761, %v1977
        %v2018 = vadd.f32 %v1762, %v1979
        %v2019 = vadd.f32 %v1763, %v1981
        %v2020 = vadd.f32 %v1764, %v1983
        %v2021 = vadd.f32 %v1765, %v1985
        %v2022 = vadd.f32 %v1766, %v1987
        %v2023 = vadd.f32 %v1767, %v1989
        %v2024 = vadd.f32 %v1768, %v1991
        %v2025 = vadd.f32 %v1769, %v1993
        %v2026 = vtanh.pop %v2010
        %v2027 = vtanh.pop %v2011
        %v2028 = vtanh.pop %v2012
        %v2029 = vtanh.pop %v2013
        %v2030 = vtanh.pop %v2014
        %v2031 = vtanh.pop %v2015
        %v2032 = vtanh.pop %v2016
        %v2033 = vtanh.pop %v2017
        %v2034 = vtanh.pop %v2018
        %v2035 = vtanh.pop %v2019
        %v2036 = vtanh.pop %v2020
        %v2037 = vtanh.pop %v2021
        %v2038 = vtanh.pop %v2022
        %v2039 = vtanh.pop %v2023
        %v2040 = vtanh.pop %v2024
        %v2041 = vtanh.pop %v2025
        %v2042 = vsub.f32 1.0, %v1835
        %v2043 = vsub.f32 1.0, %v1837
        %v2044 = vsub.f32 1.0, %v1839
        %v2045 = vsub.f32 1.0, %v1841
        %v2046 = vsub.f32 1.0, %v1843
        %v2047 = vsub.f32 1.0, %v1845
        %v2048 = vsub.f32 1.0, %v1847
        %v2049 = vsub.f32 1.0, %v1849
        %v2050 = vsub.f32 1.0, %v1851
        %v2051 = vsub.f32 1.0, %v1853
        %v2052 = vsub.f32 1.0, %v1855
        %v2053 = vsub.f32 1.0, %v1857
        %v2054 = vsub.f32 1.0, %v1859
        %v2055 = vsub.f32 1.0, %v1861
        %v2056 = vsub.f32 1.0, %v1863
        %v2057 = vsub.f32 1.0, %v1865
        %2074 = vrot.lane.b32.xlu0 %v2026, 96
        %v2075 = vpop.permute.xlu0 %2074
        %2076 = vrot.lane.b32.xlu0 %v2027, 96
        %v2077 = vpop.permute.xlu0 %2076
        %2078 = vrot.lane.b32.xlu0 %v2028, 96
        %v2079 = vpop.permute.xlu0 %2078
        %2080 = vrot.lane.b32.xlu0 %v2029, 96
        %v2081 = vpop.permute.xlu0 %2080
        %2082 = vrot.lane.b32.xlu0 %v2030, 96
        %v2083 = vpop.permute.xlu0 %2082
        %2084 = vrot.lane.b32.xlu0 %v2031, 96
        %v2085 = vpop.permute.xlu0 %2084
        %2086 = vrot.lane.b32.xlu0 %v2032, 96
        %v2087 = vpop.permute.xlu0 %2086
        %2088 = vrot.lane.b32.xlu0 %v2033, 96
        %v2089 = vpop.permute.xlu0 %2088
        %2090 = vrot.lane.b32.xlu0 %v2034, 96
        %v2091 = vpop.permute.xlu0 %2090
        %2092 = vrot.lane.b32.xlu0 %v2035, 96
        %v2093 = vpop.permute.xlu0 %2092
        %2094 = vrot.lane.b32.xlu0 %v2036, 96
        %v2095 = vpop.permute.xlu0 %2094
        %2096 = vrot.lane.b32.xlu0 %v2037, 96
        %v2097 = vpop.permute.xlu0 %2096
        %2098 = vrot.lane.b32.xlu0 %v2038, 96
        %v2099 = vpop.permute.xlu0 %2098
        %2100 = vrot.lane.b32.xlu0 %v2039, 96
        %v2101 = vpop.permute.xlu0 %2100
        %2102 = vrot.lane.b32.xlu0 %v2040, 96
        %v2103 = vpop.permute.xlu0 %2102
        %2104 = vrot.lane.b32.xlu0 %v2041, 96
        %v2105 = vpop.permute.xlu0 %2104
        %v2122 = vmul.f32 %v2042, %v2075
        %v2123 = vmul.f32 %v2043, %v2077
        %v2124 = vmul.f32 %v2044, %v2079
        %v2125 = vmul.f32 %v2045, %v2081
        %v2126 = vmul.f32 %v2046, %v2083
        %v2127 = vmul.f32 %v2047, %v2085
        %v2128 = vmul.f32 %v2048, %v2087
        %v2129 = vmul.f32 %v2049, %v2089
        %v2130 = vmul.f32 %v2050, %v2091
        %v2131 = vmul.f32 %v2051, %v2093
        %v2132 = vmul.f32 %v2052, %v2095
        %v2133 = vmul.f32 %v2053, %v2097
        %v2134 = vmul.f32 %v2054, %v2099
        %v2135 = vmul.f32 %v2055, %v2101
        %v2136 = vmul.f32 %v2056, %v2103
        %v2137 = vmul.f32 %v2057, %v2105
        %v2138 = vmul.f32 %v1835, %v1334
        %v2139 = vmul.f32 %v1837, %v1335
        %v2140 = vmul.f32 %v1839, %v1336
        %v2141 = vmul.f32 %v1841, %v1337
        %v2142 = vmul.f32 %v1843, %v1338
        %v2143 = vmul.f32 %v1845, %v1339
        %v2144 = vmul.f32 %v1847, %v1340
        %v2145 = vmul.f32 %v1849, %v1341
        %v2146 = vmul.f32 %v1851, %v1342
        %v2147 = vmul.f32 %v1853, %v1343
        %v2148 = vmul.f32 %v1855, %v1344
        %v2149 = vmul.f32 %v1857, %v1345
        %v2150 = vmul.f32 %v1859, %v1346
        %v2151 = vmul.f32 %v1861, %v1347
        %v2152 = vmul.f32 %v1863, %v1348
        %v2153 = vmul.f32 %v1865, %v1349
        %v2154 = vadd.f32 %v2122, %v2138
        %v2155 = vadd.f32 %v2123, %v2139
        %v2156 = vadd.f32 %v2124, %v2140
        %v2157 = vadd.f32 %v2125, %v2141
        %v2158 = vadd.f32 %v2126, %v2142
        %v2159 = vadd.f32 %v2127, %v2143
        %v2160 = vadd.f32 %v2128, %v2144
        %v2161 = vadd.f32 %v2129, %v2145
        %v2162 = vadd.f32 %v2130, %v2146
        %v2163 = vadd.f32 %v2131, %v2147
        %v2164 = vadd.f32 %v2132, %v2148
        %v2165 = vadd.f32 %v2133, %v2149
        %v2166 = vadd.f32 %v2134, %v2150
        %v2167 = vadd.f32 %v2135, %v2151
        %v2168 = vadd.f32 %v2136, %v2152
        %v2169 = vadd.f32 %v2137, %v2153
        %v2170 = vpack.c.bf16 %v2155, %v2154
        %v2171 = vpack.c.bf16 %v2157, %v2156
        %v2172 = vpack.c.bf16 %v2159, %v2158
        %v2173 = vpack.c.bf16 %v2161, %v2160
        %v2174 = vpack.c.bf16 %v2163, %v2162
        %v2175 = vpack.c.bf16 %v2165, %v2164
        %v2176 = vpack.c.bf16 %v2167, %v2166
        %v2177 = vpack.c.bf16 %v2169, %v2168
        %2186 = vrot.lane.b32.xlu0 %v2170, 96
        %v2187 = vpop.permute.xlu0 %2186
        %2188 = vrot.lane.b32.xlu0 %v2171, 96
        %v2189 = vpop.permute.xlu0 %2188
        %2190 = vrot.lane.b32.xlu0 %v2172, 96
        %v2191 = vpop.permute.xlu0 %2190
        %2192 = vrot.lane.b32.xlu0 %v2173, 96
        %v2193 = vpop.permute.xlu0 %2192
        %2194 = vrot.lane.b32.xlu0 %v2174, 96
        %v2195 = vpop.permute.xlu0 %2194
        %2196 = vrot.lane.b32.xlu0 %v2175, 96
        %v2197 = vpop.permute.xlu0 %2196
        %2198 = vrot.lane.b32.xlu0 %v2176, 96
        %v2199 = vpop.permute.xlu0 %2198
        %2200 = vrot.lane.b32.xlu0 %v2177, 96
        %v2201 = vpop.permute.xlu0 %2200
        %2210 = vmatprep.subr.bf16.mxu0 0
        %2211 = vmatpush1.bf16.msra.mxu0 %v2187
        %2212 = vmatprep.subr.bf16.mxu0 0
        %2213 = vmatpush1.bf16.msra.mxu0 %v2189
        %2214 = vmatprep.subr.bf16.mxu0 0
        %2215 = vmatpush1.bf16.msra.mxu0 %v2191
        %2216 = vmatprep.subr.bf16.mxu0 0
        %2217 = vmatpush1.bf16.msra.mxu0 %v2193
        %2218 = vmatprep.subr.bf16.mxu0 0
        %2219 = vmatpush1.bf16.msra.mxu0 %v2195
        %2220 = vmatprep.subr.bf16.mxu0 0
        %2221 = vmatpush1.bf16.msra.mxu0 %v2197
        %2222 = vmatprep.subr.bf16.mxu0 0
        %2223 = vmatpush1.bf16.msra.mxu0 %v2199
        %2224 = vmatprep.subr.bf16.mxu0 0
        %2225 = vmatpush1.bf16.msra.mxu0 %v2201
        %2226 = vmatprep.subr.bf16.mxu0 0
        %2227 = vmatpush1.bf16.msra.mxu0 0
        %2228 = vmatprep.subr.bf16.mxu0 0
        %2229 = vmatpush1.bf16.msra.mxu0 0
        %2230 = vmatprep.subr.bf16.mxu0 0
        %2231 = vmatpush1.bf16.msra.mxu0 0
        %2232 = vmatprep.subr.bf16.mxu0 0
        %2233 = vmatpush1.bf16.msra.mxu0 0
        %2234 = vmatprep.subr.bf16.mxu0 0
        %2235 = vmatpush1.bf16.msra.mxu0 0
        %2236 = vmatprep.subr.bf16.mxu0 0
        %2237 = vmatpush1.bf16.msra.mxu0 0
        %2238 = vmatprep.subr.bf16.mxu0 0
        %2239 = vmatpush1.bf16.msra.mxu0 0
        %2240 = vmatprep.subr.bf16.mxu0 0
        %2241 = vmatpush1.bf16.msra.mxu0 0
        %2242 = vmatprep.mubr.bf16.mxu0 0
        %2243 = vmatmul.mubr.bf16.gmra.mrb[0].mxu0 %v478
        %v2244 = vpop.f32.mrb[0].mxu0
        %v2245 = vadd.f32 0.0, %v2244
        %v2246 = vpop.f32.mrb[0].mxu0
        %v2247 = vpop.f32.mrb[0].mxu0
        %v2248 = vadd.f32 0.0, %v2247
        %v2249 = vpop.f32.mrb[0].mxu0
        %2250 = vmatprep.mubr.bf16.mxu0 0
        %2251 = vmatmul.mubr.bf16.gmra.mrb[0].mxu0 %v479
        %v2252 = vpop.f32.mrb[0].mxu0
        %v2253 = vadd.f32 0.0, %v2252
        %v2254 = vpop.f32.mrb[0].mxu0
        %v2255 = vpop.f32.mrb[0].mxu0
        %v2256 = vadd.f32 0.0, %v2255
        %v2257 = vpop.f32.mrb[0].mxu0
        %2258 = vmatprep.mubr.bf16.mxu0 0
        %2259 = vmatmul.mubr.bf16.gmra.mrb[0].mxu0 %v480
        %v2260 = vpop.f32.mrb[0].mxu0
        %v2261 = vadd.f32 0.0, %v2260
        %v2262 = vpop.f32.mrb[0].mxu0
        %v2263 = vpop.f32.mrb[0].mxu0
        %v2264 = vadd.f32 0.0, %v2263
        %v2265 = vpop.f32.mrb[0].mxu0
        %2266 = vmatprep.mubr.bf16.mxu0 0
        %2267 = vmatmul.mubr.bf16.gmra.mrb[0].mxu0 %v481
        %v2268 = vpop.f32.mrb[0].mxu0
        %v2269 = vadd.f32 0.0, %v2268
        %v2270 = vpop.f32.mrb[0].mxu0
        %v2271 = vpop.f32.mrb[0].mxu0
        %v2272 = vadd.f32 0.0, %v2271
        %v2273 = vpop.f32.mrb[0].mxu0
        %2274 = vmatprep.mubr.bf16.mxu0 0
        %2275 = vmatmul.mubr.bf16.gmra.mrb[0].mxu0 %v482
        %v2276 = vpop.f32.mrb[0].mxu0
        %v2277 = vadd.f32 0.0, %v2276
        %v2278 = vpop.f32.mrb[0].mxu0
        %v2279 = vpop.f32.mrb[0].mxu0
        %v2280 = vadd.f32 0.0, %v2279
        %v2281 = vpop.f32.mrb[0].mxu0
        %2282 = vmatprep.mubr.bf16.mxu0 0
        %2283 = vmatmul.mubr.bf16.gmra.mrb[0].mxu0 %v483
        %v2284 = vpop.f32.mrb[0].mxu0
        %v2285 = vadd.f32 0.0, %v2284
        %v2286 = vpop.f32.mrb[0].mxu0
        %v2287 = vpop.f32.mrb[0].mxu0
        %v2288 = vadd.f32 0.0, %v2287
        %v2289 = vpop.f32.mrb[0].mxu0
        %2290 = vmatprep.mubr.bf16.mxu0 0
        %2291 = vmatmul.mubr.bf16.gmra.mrb[0].mxu0 %v484
        %v2292 = vpop.f32.mrb[0].mxu0
        %v2293 = vadd.f32 0.0, %v2292
        %v2294 = vpop.f32.mrb[0].mxu0
        %v2295 = vpop.f32.mrb[0].mxu0
        %v2296 = vadd.f32 0.0, %v2295
        %v2297 = vpop.f32.mrb[0].mxu0
        %2298 = vmatprep.mubr.bf16.mxu0 0
        %2299 = vmatmul.mubr.bf16.gmra.mrb[0].mxu0 %v485
        %v2300 = vpop.f32.mrb[0].mxu0
        %v2301 = vadd.f32 0.0, %v2300
        %v2302 = vpop.f32.mrb[0].mxu0
        %v2303 = vpop.f32.mrb[0].mxu0
        %v2304 = vadd.f32 0.0, %v2303
        %v2305 = vpop.f32.mrb[0].mxu0
        %2306 = vdwg.mxu0
        %v2307 = vpack.c.bf16 %v2248, %v2245
        %v2308 = vpack.c.bf16 %v2256, %v2253
        %v2309 = vpack.c.bf16 %v2264, %v2261
        %v2310 = vpack.c.bf16 %v2272, %v2269
        %v2311 = vpack.c.bf16 %v2280, %v2277
        %v2312 = vpack.c.bf16 %v2288, %v2285
        %v2313 = vpack.c.bf16 %v2296, %v2293
        %v2314 = vpack.c.bf16 %v2304, %v2301
        %s2315 = scalar_lea.vmem %s4, 32
        %v2316 = vld [vmem:[%s2315] sm:$0xf]
        %v2317 = vld [vmem:[%s2315 + $0x4] sm:$0xf]
        %v2318 = vld [vmem:[%s2315 + $0x8] sm:$0xf]
        %v2319 = vld [vmem:[%s2315 + $0xc] sm:$0xf]
        %v2321 = vsel %vm615, %v2187, 0
        %v2324 = vsel %vm615, %v2189, 0
        %v2327 = vsel %vm615, %v2191, 0
        %v2330 = vsel %vm615, %v2193, 0
        %v2333 = vsel %vm615, %v2195, 0
        %v2336 = vsel %vm615, %v2197, 0
        %v2339 = vsel %vm615, %v2199, 0
        %v2342 = vsel %vm615, %v2201, 0
        %2344 = vmatprep.subr.bf16.mxu0 0
        %2345 = vmatpush1.bf16.msra.mxu0 %v611
        %2346 = vmatprep.subr.bf16.mxu0 0
        %2347 = vmatpush1.bf16.msra.mxu0 %v612
        %2348 = vmatprep.subr.bf16.mxu0 0
        %2349 = vmatpush1.bf16.msra.mxu0 0
        %2350 = vmatprep.subr.bf16.mxu0 0
        %2351 = vmatpush1.bf16.msra.mxu0 0
        %2352 = vmatprep.subr.bf16.mxu0 0
        %2353 = vmatpush1.bf16.msra.mxu0 0
        %2354 = vmatprep.subr.bf16.mxu0 0
        %2355 = vmatpush1.bf16.msra.mxu0 0
        %2356 = vmatprep.subr.bf16.mxu0 0
        %2357 = vmatpush1.bf16.msra.mxu0 0
        %2358 = vmatprep.subr.bf16.mxu0 0
        %2359 = vmatpush1.bf16.msra.mxu0 0
        %2360 = vmatprep.subr.bf16.mxu0 0
        %2361 = vmatpush1.bf16.msra.mxu0 0
        %2362 = vmatprep.subr.bf16.mxu0 0
        %2363 = vmatpush1.bf16.msra.mxu0 0
        %2364 = vmatprep.subr.bf16.mxu0 0
        %2365 = vmatpush1.bf16.msra.mxu0 0
        %2366 = vmatprep.subr.bf16.mxu0 0
        %2367 = vmatpush1.bf16.msra.mxu0 0
        %2368 = vmatprep.subr.bf16.mxu0 0
        %2369 = vmatpush1.bf16.msra.mxu0 0
        %2370 = vmatprep.subr.bf16.mxu0 0
        %2371 = vmatpush1.bf16.msra.mxu0 0
        %2372 = vmatprep.subr.bf16.mxu0 0
        %2373 = vmatpush1.bf16.msra.mxu0 0
        %2374 = vmatprep.subr.bf16.mxu0 0
        %2375 = vmatpush1.bf16.msra.mxu0 0
        %2376 = vmatprep.mubr.bf16.mxu0 0
        %2377 = vmatmul.mubr.bf16.gmra.mrb[0].mxu0 %v2321
        %v2378 = vpop.f32.mrb[0].mxu0
        %v2379 = vadd.f32 0.0, %v2378
        %v2380 = vpop.f32.mrb[0].mxu0
        %v2381 = vpop.f32.mrb[0].mxu0
        %v2382 = vadd.f32 0.0, %v2381
        %v2383 = vpop.f32.mrb[0].mxu0
        %2384 = vmatprep.mubr.bf16.mxu0 0
        %2385 = vmatmul.mubr.bf16.gmra.mrb[0].mxu0 %v2324
        %v2386 = vpop.f32.mrb[0].mxu0
        %v2387 = vadd.f32 0.0, %v2386
        %v2388 = vpop.f32.mrb[0].mxu0
        %v2389 = vpop.f32.mrb[0].mxu0
        %v2390 = vadd.f32 0.0, %v2389
        %v2391 = vpop.f32.mrb[0].mxu0
        %2392 = vmatprep.mubr.bf16.mxu0 0
        %2393 = vmatmul.mubr.bf16.gmra.mrb[0].mxu0 %v2327
        %v2394 = vpop.f32.mrb[0].mxu0
        %v2395 = vadd.f32 0.0, %v2394
        %v2396 = vpop.f32.mrb[0].mxu0
        %v2397 = vpop.f32.mrb[0].mxu0
        %v2398 = vadd.f32 0.0, %v2397
        %v2399 = vpop.f32.mrb[0].mxu0
        %2400 = vmatprep.mubr.bf16.mxu0 0
        %2401 = vmatmul.mubr.bf16.gmra.mrb[0].mxu0 %v2330
        %v2402 = vpop.f32.mrb[0].mxu0
        %v2403 = vadd.f32 0.0, %v2402
        %v2404 = vpop.f32.mrb[0].mxu0
        %v2405 = vpop.f32.mrb[0].mxu0
        %v2406 = vadd.f32 0.0, %v2405
        %v2407 = vpop.f32.mrb[0].mxu0
        %2408 = vmatprep.mubr.bf16.mxu0 0
        %2409 = vmatmul.mubr.bf16.gmra.mrb[0].mxu0 %v2333
        %v2410 = vpop.f32.mrb[0].mxu0
        %v2411 = vadd.f32 0.0, %v2410
        %v2412 = vpop.f32.mrb[0].mxu0
        %v2413 = vpop.f32.mrb[0].mxu0
        %v2414 = vadd.f32 0.0, %v2413
        %v2415 = vpop.f32.mrb[0].mxu0
        %2416 = vmatprep.mubr.bf16.mxu0 0
        %2417 = vmatmul.mubr.bf16.gmra.mrb[0].mxu0 %v2336
        %v2418 = vpop.f32.mrb[0].mxu0
        %v2419 = vadd.f32 0.0, %v2418
        %v2420 = vpop.f32.mrb[0].mxu0
        %v2421 = vpop.f32.mrb[0].mxu0
        %v2422 = vadd.f32 0.0, %v2421
        %v2423 = vpop.f32.mrb[0].mxu0
        %2424 = vmatprep.mubr.bf16.mxu0 0
        %2425 = vmatmul.mubr.bf16.gmra.mrb[0].mxu0 %v2339
        %v2426 = vpop.f32.mrb[0].mxu0
        %v2427 = vadd.f32 0.0, %v2426
        %v2428 = vpop.f32.mrb[0].mxu0
        %v2429 = vpop.f32.mrb[0].mxu0
        %v2430 = vadd.f32 0.0, %v2429
        %v2431 = vpop.f32.mrb[0].mxu0
        %2432 = vmatprep.mubr.bf16.mxu0 0
        %2433 = vmatmul.mubr.bf16.gmra.mrb[0].mxu0 %v2342
        %v2434 = vpop.f32.mrb[0].mxu0
        %v2435 = vadd.f32 0.0, %v2434
        %v2436 = vpop.f32.mrb[0].mxu0
        %v2437 = vpop.f32.mrb[0].mxu0
        %v2438 = vadd.f32 0.0, %v2437
        %v2439 = vpop.f32.mrb[0].mxu0
        %2440 = vdwg.mxu0
        %v2445 = vunpack.c.l.b16 %v2316
        %v2446 = vunpack.c.l.b16 %v2317
        %v2447 = vunpack.c.l.b16 %v2318
        %v2448 = vunpack.c.l.b16 %v2319
        %v2449 = vpack.c.b16 %v2446, %v2445
        %v2450 = vpack.c.b16 %v2448, %v2447
        %v2454 = vsel %vm615, %v2307, 0
        %v2457 = vsel %vm615, %v2308, 0
        %v2460 = vsel %vm615, %v2309, 0
        %v2463 = vsel %vm615, %v2310, 0
        %v2466 = vsel %vm615, %v2311, 0
        %v2469 = vsel %vm615, %v2312, 0
        %v2472 = vsel %vm615, %v2313, 0
        %v2475 = vsel %vm615, %v2314, 0
        %2477 = vmatprep.subr.bf16.mxu0 0
        %2478 = vmatpush1.bf16.msra.mxu0 %v2449
        %2479 = vmatprep.subr.bf16.mxu0 0
        %2480 = vmatpush1.bf16.msra.mxu0 %v2450
        %2481 = vmatprep.subr.bf16.mxu0 0
        %2482 = vmatpush1.bf16.msra.mxu0 0
        %2483 = vmatprep.subr.bf16.mxu0 0
        %2484 = vmatpush1.bf16.msra.mxu0 0
        %2485 = vmatprep.subr.bf16.mxu0 0
        %2486 = vmatpush1.bf16.msra.mxu0 0
        %2487 = vmatprep.subr.bf16.mxu0 0
        %2488 = vmatpush1.bf16.msra.mxu0 0
        %2489 = vmatprep.subr.bf16.mxu0 0
        %2490 = vmatpush1.bf16.msra.mxu0 0
        %2491 = vmatprep.subr.bf16.mxu0 0
        %2492 = vmatpush1.bf16.msra.mxu0 0
        %2493 = vmatprep.subr.bf16.mxu0 0
        %2494 = vmatpush1.bf16.msra.mxu0 0
        %2495 = vmatprep.subr.bf16.mxu0 0
        %2496 = vmatpush1.bf16.msra.mxu0 0
        %2497 = vmatprep.subr.bf16.mxu0 0
        %2498 = vmatpush1.bf16.msra.mxu0 0
        %2499 = vmatprep.subr.bf16.mxu0 0
        %2500 = vmatpush1.bf16.msra.mxu0 0
        %2501 = vmatprep.subr.bf16.mxu0 0
        %2502 = vmatpush1.bf16.msra.mxu0 0
        %2503 = vmatprep.subr.bf16.mxu0 0
        %2504 = vmatpush1.bf16.msra.mxu0 0
        %2505 = vmatprep.subr.bf16.mxu0 0
        %2506 = vmatpush1.bf16.msra.mxu0 0
        %2507 = vmatprep.subr.bf16.mxu0 0
        %2508 = vmatpush1.bf16.msra.mxu0 0
        %2509 = vmatprep.mubr.bf16.mxu0 0
        %2510 = vmatmul.mubr.bf16.gmra.mrb[0].mxu0 %v2454
        %v2511 = vpop.f32.mrb[0].mxu0
        %v2512 = vadd.f32 %v2379, %v2511
        %v2513 = vpop.f32.mrb[0].mxu0
        %v2514 = vpop.f32.mrb[0].mxu0
        %v2515 = vadd.f32 %v2382, %v2514
        %v2516 = vpop.f32.mrb[0].mxu0
        %2517 = vmatprep.mubr.bf16.mxu0 0
        %2518 = vmatmul.mubr.bf16.gmra.mrb[0].mxu0 %v2457
        %v2519 = vpop.f32.mrb[0].mxu0
        %v2520 = vadd.f32 %v2387, %v2519
        %v2521 = vpop.f32.mrb[0].mxu0
        %v2522 = vpop.f32.mrb[0].mxu0
        %v2523 = vadd.f32 %v2390, %v2522
        %v2524 = vpop.f32.mrb[0].mxu0
        %2525 = vmatprep.mubr.bf16.mxu0 0
        %2526 = vmatmul.mubr.bf16.gmra.mrb[0].mxu0 %v2460
        %v2527 = vpop.f32.mrb[0].mxu0
        %v2528 = vadd.f32 %v2395, %v2527
        %v2529 = vpop.f32.mrb[0].mxu0
        %v2530 = vpop.f32.mrb[0].mxu0
        %v2531 = vadd.f32 %v2398, %v2530
        %v2532 = vpop.f32.mrb[0].mxu0
        %2533 = vmatprep.mubr.bf16.mxu0 0
        %2534 = vmatmul.mubr.bf16.gmra.mrb[0].mxu0 %v2463
        %v2535 = vpop.f32.mrb[0].mxu0
        %v2536 = vadd.f32 %v2403, %v2535
        %v2537 = vpop.f32.mrb[0].mxu0
        %v2538 = vpop.f32.mrb[0].mxu0
        %v2539 = vadd.f32 %v2406, %v2538
        %v2540 = vpop.f32.mrb[0].mxu0
        %2541 = vmatprep.mubr.bf16.mxu0 0
        %2542 = vmatmul.mubr.bf16.gmra.mrb[0].mxu0 %v2466
        %v2543 = vpop.f32.mrb[0].mxu0
        %v2544 = vadd.f32 %v2411, %v2543
        %v2545 = vpop.f32.mrb[0].mxu0
        %v2546 = vpop.f32.mrb[0].mxu0
        %v2547 = vadd.f32 %v2414, %v2546
        %v2548 = vpop.f32.mrb[0].mxu0
        %2549 = vmatprep.mubr.bf16.mxu0 0
        %2550 = vmatmul.mubr.bf16.gmra.mrb[0].mxu0 %v2469
        %v2551 = vpop.f32.mrb[0].mxu0
        %v2552 = vadd.f32 %v2419, %v2551
        %v2553 = vpop.f32.mrb[0].mxu0
        %v2554 = vpop.f32.mrb[0].mxu0
        %v2555 = vadd.f32 %v2422, %v2554
        %v2556 = vpop.f32.mrb[0].mxu0
        %2557 = vmatprep.mubr.bf16.mxu0 0
        %2558 = vmatmul.mubr.bf16.gmra.mrb[0].mxu0 %v2472
        %v2559 = vpop.f32.mrb[0].mxu0
        %v2560 = vadd.f32 %v2427, %v2559
        %v2561 = vpop.f32.mrb[0].mxu0
        %v2562 = vpop.f32.mrb[0].mxu0
        %v2563 = vadd.f32 %v2430, %v2562
        %v2564 = vpop.f32.mrb[0].mxu0
        %2565 = vmatprep.mubr.bf16.mxu0 0
        %2566 = vmatmul.mubr.bf16.gmra.mrb[0].mxu0 %v2475
        %v2567 = vpop.f32.mrb[0].mxu0
        %v2568 = vadd.f32 %v2435, %v2567
        %v2569 = vpop.f32.mrb[0].mxu0
        %v2570 = vpop.f32.mrb[0].mxu0
        %v2571 = vadd.f32 %v2438, %v2570
        %v2572 = vpop.f32.mrb[0].mxu0
        %2573 = vdwg.mxu0
        %v2574 = vadd.f32 %v2512, %v436
        %v2575 = vadd.f32 %v2515, %v436
        %v2576 = vadd.f32 %v2520, %v436
        %v2577 = vadd.f32 %v2523, %v436
        %v2578 = vadd.f32 %v2528, %v436
        %v2579 = vadd.f32 %v2531, %v436
        %v2580 = vadd.f32 %v2536, %v436
        %v2581 = vadd.f32 %v2539, %v436
        %v2582 = vadd.f32 %v2544, %v436
        %v2583 = vadd.f32 %v2547, %v436
        %v2584 = vadd.f32 %v2552, %v436
        %v2585 = vadd.f32 %v2555, %v436
        %v2586 = vadd.f32 %v2560, %v436
        %v2587 = vadd.f32 %v2563, %v436
        %v2588 = vadd.f32 %v2568, %v436
        %v2589 = vadd.f32 %v2571, %v436
        %v2590 = vxor.u32 %v2574, 2147483648
        %v2591 = vxor.u32 %v2575, 2147483648
        %v2592 = vxor.u32 %v2576, 2147483648
        %v2593 = vxor.u32 %v2577, 2147483648
        %v2594 = vxor.u32 %v2578, 2147483648
        %v2595 = vxor.u32 %v2579, 2147483648
        %v2596 = vxor.u32 %v2580, 2147483648
        %v2597 = vxor.u32 %v2581, 2147483648
        %v2598 = vxor.u32 %v2582, 2147483648
        %v2599 = vxor.u32 %v2583, 2147483648
        %v2600 = vxor.u32 %v2584, 2147483648
        %v2601 = vxor.u32 %v2585, 2147483648
        %v2602 = vxor.u32 %v2586, 2147483648
        %v2603 = vxor.u32 %v2587, 2147483648
        %v2604 = vxor.u32 %v2588, 2147483648
        %v2605 = vxor.u32 %v2589, 2147483648
        %v2606 = vmul.f32 %v2590, 1.442695
        %v2607 = vpow.pop %v2606
        %v2608 = vmul.f32 %v2591, 1.442695
        %v2609 = vpow.pop %v2608
        %v2610 = vmul.f32 %v2592, 1.442695
        %v2611 = vpow.pop %v2610
        %v2612 = vmul.f32 %v2593, 1.442695
        %v2613 = vpow.pop %v2612
        %v2614 = vmul.f32 %v2594, 1.442695
        %v2615 = vpow.pop %v2614
        %v2616 = vmul.f32 %v2595, 1.442695
        %v2617 = vpow.pop %v2616
        %v2618 = vmul.f32 %v2596, 1.442695
        %v2619 = vpow.pop %v2618
        %v2620 = vmul.f32 %v2597, 1.442695
        %v2621 = vpow.pop %v2620
        %v2622 = vmul.f32 %v2598, 1.442695
        %v2623 = vpow.pop %v2622
        %v2624 = vmul.f32 %v2599, 1.442695
        %v2625 = vpow.pop %v2624
        %v2626 = vmul.f32 %v2600, 1.442695
        %v2627 = vpow.pop %v2626
        %v2628 = vmul.f32 %v2601, 1.442695
        %v2629 = vpow.pop %v2628
        %v2630 = vmul.f32 %v2602, 1.442695
        %v2631 = vpow.pop %v2630
        %v2632 = vmul.f32 %v2603, 1.442695
        %v2633 = vpow.pop %v2632
        %v2634 = vmul.f32 %v2604, 1.442695
        %v2635 = vpow.pop %v2634
        %v2636 = vmul.f32 %v2605, 1.442695
        %v2637 = vpow.pop %v2636
        %v2638 = vadd.f32 %v2607, 1.0
        %v2639 = vadd.f32 %v2609, 1.0
        %v2640 = vadd.f32 %v2611, 1.0
        %v2641 = vadd.f32 %v2613, 1.0
        %v2642 = vadd.f32 %v2615, 1.0
        %v2643 = vadd.f32 %v2617, 1.0
        %v2644 = vadd.f32 %v2619, 1.0
        %v2645 = vadd.f32 %v2621, 1.0
        %v2646 = vadd.f32 %v2623, 1.0
        %v2647 = vadd.f32 %v2625, 1.0
        %v2648 = vadd.f32 %v2627, 1.0
        %v2649 = vadd.f32 %v2629, 1.0
        %v2650 = vadd.f32 %v2631, 1.0
        %v2651 = vadd.f32 %v2633, 1.0
        %v2652 = vadd.f32 %v2635, 1.0
        %v2653 = vadd.f32 %v2637, 1.0
        %v2654 = vrcp.pop %v2638
        %v2655 = vmul.f32 1.0, %v2654
        %v2656 = vrcp.pop %v2639
        %v2657 = vmul.f32 1.0, %v2656
        %v2658 = vrcp.pop %v2640
        %v2659 = vmul.f32 1.0, %v2658
        %v2660 = vrcp.pop %v2641
        %v2661 = vmul.f32 1.0, %v2660
        %v2662 = vrcp.pop %v2642
        %v2663 = vmul.f32 1.0, %v2662
        %v2664 = vrcp.pop %v2643
        %v2665 = vmul.f32 1.0, %v2664
        %v2666 = vrcp.pop %v2644
        %v2667 = vmul.f32 1.0, %v2666
        %v2668 = vrcp.pop %v2645
        %v2669 = vmul.f32 1.0, %v2668
        %v2670 = vrcp.pop %v2646
        %v2671 = vmul.f32 1.0, %v2670
        %v2672 = vrcp.pop %v2647
        %v2673 = vmul.f32 1.0, %v2672
        %v2674 = vrcp.pop %v2648
        %v2675 = vmul.f32 1.0, %v2674
        %v2676 = vrcp.pop %v2649
        %v2677 = vmul.f32 1.0, %v2676
        %v2678 = vrcp.pop %v2650
        %v2679 = vmul.f32 1.0, %v2678
        %v2680 = vrcp.pop %v2651
        %v2681 = vmul.f32 1.0, %v2680
        %v2682 = vrcp.pop %v2652
        %v2683 = vmul.f32 1.0, %v2682
        %v2684 = vrcp.pop %v2653
        %v2685 = vmul.f32 1.0, %v2684
        %2702 = vrot.lane.b32.xlu0 %v2574, 32
        %v2703 = vpop.permute.xlu0 %2702
        %2704 = vrot.lane.b32.xlu0 %v2575, 32
        %v2705 = vpop.permute.xlu0 %2704
        %2706 = vrot.lane.b32.xlu0 %v2576, 32
        %v2707 = vpop.permute.xlu0 %2706
        %2708 = vrot.lane.b32.xlu0 %v2577, 32
        %v2709 = vpop.permute.xlu0 %2708
        %2710 = vrot.lane.b32.xlu0 %v2578, 32
        %v2711 = vpop.permute.xlu0 %2710
        %2712 = vrot.lane.b32.xlu0 %v2579, 32
        %v2713 = vpop.permute.xlu0 %2712
        %2714 = vrot.lane.b32.xlu0 %v2580, 32
        %v2715 = vpop.permute.xlu0 %2714
        %2716 = vrot.lane.b32.xlu0 %v2581, 32
        %v2717 = vpop.permute.xlu0 %2716
        %2718 = vrot.lane.b32.xlu0 %v2582, 32
        %v2719 = vpop.permute.xlu0 %2718
        %2720 = vrot.lane.b32.xlu0 %v2583, 32
        %v2721 = vpop.permute.xlu0 %2720
        %2722 = vrot.lane.b32.xlu0 %v2584, 32
        %v2723 = vpop.permute.xlu0 %2722
        %2724 = vrot.lane.b32.xlu0 %v2585, 32
        %v2725 = vpop.permute.xlu0 %2724
        %2726 = vrot.lane.b32.xlu0 %v2586, 32
        %v2727 = vpop.permute.xlu0 %2726
        %2728 = vrot.lane.b32.xlu0 %v2587, 32
        %v2729 = vpop.permute.xlu0 %2728
        %2730 = vrot.lane.b32.xlu0 %v2588, 32
        %v2731 = vpop.permute.xlu0 %2730
        %2732 = vrot.lane.b32.xlu0 %v2589, 32
        %v2733 = vpop.permute.xlu0 %2732
        %v2750 = vmul.f32 %v2655, %v2703
        %v2751 = vmul.f32 %v2657, %v2705
        %v2752 = vmul.f32 %v2659, %v2707
        %v2753 = vmul.f32 %v2661, %v2709
        %v2754 = vmul.f32 %v2663, %v2711
        %v2755 = vmul.f32 %v2665, %v2713
        %v2756 = vmul.f32 %v2667, %v2715
        %v2757 = vmul.f32 %v2669, %v2717
        %v2758 = vmul.f32 %v2671, %v2719
        %v2759 = vmul.f32 %v2673, %v2721
        %v2760 = vmul.f32 %v2675, %v2723
        %v2761 = vmul.f32 %v2677, %v2725
        %v2762 = vmul.f32 %v2679, %v2727
        %v2763 = vmul.f32 %v2681, %v2729
        %v2764 = vmul.f32 %v2683, %v2731
        %v2765 = vmul.f32 %v2685, %v2733
        %2782 = vrot.lane.b32.xlu0 %v2750, 64
        %v2783 = vpop.permute.xlu0 %2782
        %2784 = vrot.lane.b32.xlu0 %v2751, 64
        %v2785 = vpop.permute.xlu0 %2784
        %2786 = vrot.lane.b32.xlu0 %v2752, 64
        %v2787 = vpop.permute.xlu0 %2786
        %2788 = vrot.lane.b32.xlu0 %v2753, 64
        %v2789 = vpop.permute.xlu0 %2788
        %2790 = vrot.lane.b32.xlu0 %v2754, 64
        %v2791 = vpop.permute.xlu0 %2790
        %2792 = vrot.lane.b32.xlu0 %v2755, 64
        %v2793 = vpop.permute.xlu0 %2792
        %2794 = vrot.lane.b32.xlu0 %v2756, 64
        %v2795 = vpop.permute.xlu0 %2794
        %2796 = vrot.lane.b32.xlu0 %v2757, 64
        %v2797 = vpop.permute.xlu0 %2796
        %2798 = vrot.lane.b32.xlu0 %v2758, 64
        %v2799 = vpop.permute.xlu0 %2798
        %2800 = vrot.lane.b32.xlu0 %v2759, 64
        %v2801 = vpop.permute.xlu0 %2800
        %2802 = vrot.lane.b32.xlu0 %v2760, 64
        %v2803 = vpop.permute.xlu0 %2802
        %2804 = vrot.lane.b32.xlu0 %v2761, 64
        %v2805 = vpop.permute.xlu0 %2804
        %2806 = vrot.lane.b32.xlu0 %v2762, 64
        %v2807 = vpop.permute.xlu0 %2806
        %2808 = vrot.lane.b32.xlu0 %v2763, 64
        %v2809 = vpop.permute.xlu0 %2808
        %2810 = vrot.lane.b32.xlu0 %v2764, 64
        %v2811 = vpop.permute.xlu0 %2810
        %2812 = vrot.lane.b32.xlu0 %v2765, 64
        %v2813 = vpop.permute.xlu0 %2812
        %v2830 = vadd.f32 %v2574, %v2783
        %v2831 = vadd.f32 %v2575, %v2785
        %v2832 = vadd.f32 %v2576, %v2787
        %v2833 = vadd.f32 %v2577, %v2789
        %v2834 = vadd.f32 %v2578, %v2791
        %v2835 = vadd.f32 %v2579, %v2793
        %v2836 = vadd.f32 %v2580, %v2795
        %v2837 = vadd.f32 %v2581, %v2797
        %v2838 = vadd.f32 %v2582, %v2799
        %v2839 = vadd.f32 %v2583, %v2801
        %v2840 = vadd.f32 %v2584, %v2803
        %v2841 = vadd.f32 %v2585, %v2805
        %v2842 = vadd.f32 %v2586, %v2807
        %v2843 = vadd.f32 %v2587, %v2809
        %v2844 = vadd.f32 %v2588, %v2811
        %v2845 = vadd.f32 %v2589, %v2813
        %v2846 = vtanh.pop %v2830
        %v2847 = vtanh.pop %v2831
        %v2848 = vtanh.pop %v2832
        %v2849 = vtanh.pop %v2833
        %v2850 = vtanh.pop %v2834
        %v2851 = vtanh.pop %v2835
        %v2852 = vtanh.pop %v2836
        %v2853 = vtanh.pop %v2837
        %v2854 = vtanh.pop %v2838
        %v2855 = vtanh.pop %v2839
        %v2856 = vtanh.pop %v2840
        %v2857 = vtanh.pop %v2841
        %v2858 = vtanh.pop %v2842
        %v2859 = vtanh.pop %v2843
        %v2860 = vtanh.pop %v2844
        %v2861 = vtanh.pop %v2845
        %v2862 = vsub.f32 1.0, %v2655
        %v2863 = vsub.f32 1.0, %v2657
        %v2864 = vsub.f32 1.0, %v2659
        %v2865 = vsub.f32 1.0, %v2661
        %v2866 = vsub.f32 1.0, %v2663
        %v2867 = vsub.f32 1.0, %v2665
        %v2868 = vsub.f32 1.0, %v2667
        %v2869 = vsub.f32 1.0, %v2669
        %v2870 = vsub.f32 1.0, %v2671
        %v2871 = vsub.f32 1.0, %v2673
        %v2872 = vsub.f32 1.0, %v2675
        %v2873 = vsub.f32 1.0, %v2677
        %v2874 = vsub.f32 1.0, %v2679
        %v2875 = vsub.f32 1.0, %v2681
        %v2876 = vsub.f32 1.0, %v2683
        %v2877 = vsub.f32 1.0, %v2685
        %2894 = vrot.lane.b32.xlu0 %v2846, 96
        %v2895 = vpop.permute.xlu0 %2894
        %2896 = vrot.lane.b32.xlu0 %v2847, 96
        %v2897 = vpop.permute.xlu0 %2896
        %2898 = vrot.lane.b32.xlu0 %v2848, 96
        %v2899 = vpop.permute.xlu0 %2898
        %2900 = vrot.lane.b32.xlu0 %v2849, 96
        %v2901 = vpop.permute.xlu0 %2900
        %2902 = vrot.lane.b32.xlu0 %v2850, 96
        %v2903 = vpop.permute.xlu0 %2902
        %2904 = vrot.lane.b32.xlu0 %v2851, 96
        %v2905 = vpop.permute.xlu0 %2904
        %2906 = vrot.lane.b32.xlu0 %v2852, 96
        %v2907 = vpop.permute.xlu0 %2906
        %2908 = vrot.lane.b32.xlu0 %v2853, 96
        %v2909 = vpop.permute.xlu0 %2908
        %2910 = vrot.lane.b32.xlu0 %v2854, 96
        %v2911 = vpop.permute.xlu0 %2910
        %2912 = vrot.lane.b32.xlu0 %v2855, 96
        %v2913 = vpop.permute.xlu0 %2912
        %2914 = vrot.lane.b32.xlu0 %v2856, 96
        %v2915 = vpop.permute.xlu0 %2914
        %2916 = vrot.lane.b32.xlu0 %v2857, 96
        %v2917 = vpop.permute.xlu0 %2916
        %2918 = vrot.lane.b32.xlu0 %v2858, 96
        %v2919 = vpop.permute.xlu0 %2918
        %2920 = vrot.lane.b32.xlu0 %v2859, 96
        %v2921 = vpop.permute.xlu0 %2920
        %2922 = vrot.lane.b32.xlu0 %v2860, 96
        %v2923 = vpop.permute.xlu0 %2922
        %2924 = vrot.lane.b32.xlu0 %v2861, 96
        %v2925 = vpop.permute.xlu0 %2924
        %v2942 = vmul.f32 %v2862, %v2895
        %v2943 = vmul.f32 %v2863, %v2897
        %v2944 = vmul.f32 %v2864, %v2899
        %v2945 = vmul.f32 %v2865, %v2901
        %v2946 = vmul.f32 %v2866, %v2903
        %v2947 = vmul.f32 %v2867, %v2905
        %v2948 = vmul.f32 %v2868, %v2907
        %v2949 = vmul.f32 %v2869, %v2909
        %v2950 = vmul.f32 %v2870, %v2911
        %v2951 = vmul.f32 %v2871, %v2913
        %v2952 = vmul.f32 %v2872, %v2915
        %v2953 = vmul.f32 %v2873, %v2917
        %v2954 = vmul.f32 %v2874, %v2919
        %v2955 = vmul.f32 %v2875, %v2921
        %v2956 = vmul.f32 %v2876, %v2923
        %v2957 = vmul.f32 %v2877, %v2925
        %v2958 = vmul.f32 %v2655, %v2154
        %v2959 = vmul.f32 %v2657, %v2155
        %v2960 = vmul.f32 %v2659, %v2156
        %v2961 = vmul.f32 %v2661, %v2157
        %v2962 = vmul.f32 %v2663, %v2158
        %v2963 = vmul.f32 %v2665, %v2159
        %v2964 = vmul.f32 %v2667, %v2160
        %v2965 = vmul.f32 %v2669, %v2161
        %v2966 = vmul.f32 %v2671, %v2162
        %v2967 = vmul.f32 %v2673, %v2163
        %v2968 = vmul.f32 %v2675, %v2164
        %v2969 = vmul.f32 %v2677, %v2165
        %v2970 = vmul.f32 %v2679, %v2166
        %v2971 = vmul.f32 %v2681, %v2167
        %v2972 = vmul.f32 %v2683, %v2168
        %v2973 = vmul.f32 %v2685, %v2169
        %v2974 = vadd.f32 %v2942, %v2958
        %v2975 = vadd.f32 %v2943, %v2959
        %v2976 = vadd.f32 %v2944, %v2960
        %v2977 = vadd.f32 %v2945, %v2961
        %v2978 = vadd.f32 %v2946, %v2962
        %v2979 = vadd.f32 %v2947, %v2963
        %v2980 = vadd.f32 %v2948, %v2964
        %v2981 = vadd.f32 %v2949, %v2965
        %v2982 = vadd.f32 %v2950, %v2966
        %v2983 = vadd.f32 %v2951, %v2967
        %v2984 = vadd.f32 %v2952, %v2968
        %v2985 = vadd.f32 %v2953, %v2969
        %v2986 = vadd.f32 %v2954, %v2970
        %v2987 = vadd.f32 %v2955, %v2971
        %v2988 = vadd.f32 %v2956, %v2972
        %v2989 = vadd.f32 %v2957, %v2973
        %v2990 = vpack.c.bf16 %v2975, %v2974
        %v2991 = vpack.c.bf16 %v2977, %v2976
        %v2992 = vpack.c.bf16 %v2979, %v2978
        %v2993 = vpack.c.bf16 %v2981, %v2980
        %v2994 = vpack.c.bf16 %v2983, %v2982
        %v2995 = vpack.c.bf16 %v2985, %v2984
        %v2996 = vpack.c.bf16 %v2987, %v2986
        %v2997 = vpack.c.bf16 %v2989, %v2988
        %v2998 = vld [vmem:[%s7] sm:$0xf]
        %v2999 = vld [vmem:[%s7 + $0x4] sm:$0xf]
        %v3000 = vld [vmem:[%s7 + $0x8] sm:$0xf]
        %v3001 = vld [vmem:[%s7 + $0xc] sm:$0xf]
        %v3002 = vld [vmem:[%s8] sm:$0x1]
        %v3004 = vlaneseq
        %v3005 = vshrl.u32 %v3004, 7
        %v3006 = vsub.s32 0, %v3005
        %v3007 = vrot.slane %v3002, %v3006
        %3017 = vrot.lane.b32.xlu0 %v2990, 96
        %v3018 = vpop.permute.xlu0 %3017
        %3019 = vrot.lane.b32.xlu0 %v2991, 96
        %v3020 = vpop.permute.xlu0 %3019
        %3021 = vrot.lane.b32.xlu0 %v2992, 96
        %v3022 = vpop.permute.xlu0 %3021
        %3023 = vrot.lane.b32.xlu0 %v2993, 96
        %v3024 = vpop.permute.xlu0 %3023
        %3025 = vrot.lane.b32.xlu0 %v2994, 96
        %v3026 = vpop.permute.xlu0 %3025
        %3027 = vrot.lane.b32.xlu0 %v2995, 96
        %v3028 = vpop.permute.xlu0 %3027
        %3029 = vrot.lane.b32.xlu0 %v2996, 96
        %v3030 = vpop.permute.xlu0 %3029
        %3031 = vrot.lane.b32.xlu0 %v2997, 96
        %v3032 = vpop.permute.xlu0 %3031
        %v3037 = vunpack.c.l.b16 %v2998
        %v3038 = vunpack.c.l.b16 %v2999
        %v3039 = vunpack.c.l.b16 %v3000
        %v3040 = vunpack.c.l.b16 %v3001
        %v3041 = vpack.c.b16 %v3038, %v3037
        %v3042 = vpack.c.b16 %v3040, %v3039
        %v3046 = vsel %vm615, %v3018, 0
        %v3049 = vsel %vm615, %v3020, 0
        %v3052 = vsel %vm615, %v3022, 0
        %v3055 = vsel %vm615, %v3024, 0
        %v3058 = vsel %vm615, %v3026, 0
        %v3061 = vsel %vm615, %v3028, 0
        %v3064 = vsel %vm615, %v3030, 0
        %v3067 = vsel %vm615, %v3032, 0
        %3069 = vmatprep.subr.bf16.mxu0 0
        %3070 = vmatpush1.bf16.msra.mxu0 %v3041
        %3071 = vmatprep.subr.bf16.mxu0 0
        %3072 = vmatpush1.bf16.msra.mxu0 %v3042
        %3073 = vmatprep.subr.bf16.mxu0 0
        %3074 = vmatpush1.bf16.msra.mxu0 0
        %3075 = vmatprep.subr.bf16.mxu0 0
        %3076 = vmatpush1.bf16.msra.mxu0 0
        %3077 = vmatprep.subr.bf16.mxu0 0
        %3078 = vmatpush1.bf16.msra.mxu0 0
        %3079 = vmatprep.subr.bf16.mxu0 0
        %3080 = vmatpush1.bf16.msra.mxu0 0
        %3081 = vmatprep.subr.bf16.mxu0 0
        %3082 = vmatpush1.bf16.msra.mxu0 0
        %3083 = vmatprep.subr.bf16.mxu0 0
        %3084 = vmatpush1.bf16.msra.mxu0 0
        %3085 = vmatprep.subr.bf16.mxu0 0
        %3086 = vmatpush1.bf16.msra.mxu0 0
        %3087 = vmatprep.subr.bf16.mxu0 0
        %3088 = vmatpush1.bf16.msra.mxu0 0
        %3089 = vmatprep.subr.bf16.mxu0 0
        %3090 = vmatpush1.bf16.msra.mxu0 0
        %3091 = vmatprep.subr.bf16.mxu0 0
        %3092 = vmatpush1.bf16.msra.mxu0 0
        %3093 = vmatprep.subr.bf16.mxu0 0
        %3094 = vmatpush1.bf16.msra.mxu0 0
        %3095 = vmatprep.subr.bf16.mxu0 0
        %3096 = vmatpush1.bf16.msra.mxu0 0
        %3097 = vmatprep.subr.bf16.mxu0 0
        %3098 = vmatpush1.bf16.msra.mxu0 0
        %3099 = vmatprep.subr.bf16.mxu0 0
        %3100 = vmatpush1.bf16.msra.mxu0 0
        %3101 = vmatprep.mubr.bf16.mxu0 0
        %3102 = vmatmul.mubr.bf16.gmra.mrb[0].mxu0 %v3046
        %v3103 = vpop.f32.mrb[0].mxu0
        %v3104 = vadd.f32 %v3007, %v3103
        %v3105 = vpop.f32.mrb[0].mxu0
        %v3106 = vpop.f32.mrb[0].mxu0
        %v3107 = vadd.f32 %v3007, %v3106
        %v3108 = vpop.f32.mrb[0].mxu0
        %3109 = vmatprep.mubr.bf16.mxu0 0
        %3110 = vmatmul.mubr.bf16.gmra.mrb[0].mxu0 %v3049
        %v3111 = vpop.f32.mrb[0].mxu0
        %v3112 = vadd.f32 %v3007, %v3111
        %v3113 = vpop.f32.mrb[0].mxu0
        %v3114 = vpop.f32.mrb[0].mxu0
        %v3115 = vadd.f32 %v3007, %v3114
        %v3116 = vpop.f32.mrb[0].mxu0
        %3117 = vmatprep.mubr.bf16.mxu0 0
        %3118 = vmatmul.mubr.bf16.gmra.mrb[0].mxu0 %v3052
        %v3119 = vpop.f32.mrb[0].mxu0
        %v3120 = vadd.f32 %v3007, %v3119
        %v3121 = vpop.f32.mrb[0].mxu0
        %v3122 = vpop.f32.mrb[0].mxu0
        %v3123 = vadd.f32 %v3007, %v3122
        %v3124 = vpop.f32.mrb[0].mxu0
        %3125 = vmatprep.mubr.bf16.mxu0 0
        %3126 = vmatmul.mubr.bf16.gmra.mrb[0].mxu0 %v3055
        %v3127 = vpop.f32.mrb[0].mxu0
        %v3128 = vadd.f32 %v3007, %v3127
        %v3129 = vpop.f32.mrb[0].mxu0
        %v3130 = vpop.f32.mrb[0].mxu0
        %v3131 = vadd.f32 %v3007, %v3130
        %v3132 = vpop.f32.mrb[0].mxu0
        %3133 = vmatprep.mubr.bf16.mxu0 0
        %3134 = vmatmul.mubr.bf16.gmra.mrb[0].mxu0 %v3058
        %v3135 = vpop.f32.mrb[0].mxu0
        %v3136 = vadd.f32 %v3007, %v3135
        %v3137 = vpop.f32.mrb[0].mxu0
        %v3138 = vpop.f32.mrb[0].mxu0
        %v3139 = vadd.f32 %v3007, %v3138
        %v3140 = vpop.f32.mrb[0].mxu0
        %3141 = vmatprep.mubr.bf16.mxu0 0
        %3142 = vmatmul.mubr.bf16.gmra.mrb[0].mxu0 %v3061
        %v3143 = vpop.f32.mrb[0].mxu0
        %v3144 = vadd.f32 %v3007, %v3143
        %v3145 = vpop.f32.mrb[0].mxu0
        %v3146 = vpop.f32.mrb[0].mxu0
        %v3147 = vadd.f32 %v3007, %v3146
        %v3148 = vpop.f32.mrb[0].mxu0
        %3149 = vmatprep.mubr.bf16.mxu0 0
        %3150 = vmatmul.mubr.bf16.gmra.mrb[0].mxu0 %v3064
        %v3151 = vpop.f32.mrb[0].mxu0
        %v3152 = vadd.f32 %v3007, %v3151
        %v3153 = vpop.f32.mrb[0].mxu0
        %v3154 = vpop.f32.mrb[0].mxu0
        %v3155 = vadd.f32 %v3007, %v3154
        %v3156 = vpop.f32.mrb[0].mxu0
        %3157 = vmatprep.mubr.bf16.mxu0 0
        %3158 = vmatmul.mubr.bf16.gmra.mrb[0].mxu0 %v3067
        %v3159 = vpop.f32.mrb[0].mxu0
        %v3160 = vadd.f32 %v3007, %v3159
        %v3161 = vpop.f32.mrb[0].mxu0
        %v3162 = vpop.f32.mrb[0].mxu0
        %v3163 = vadd.f32 %v3007, %v3162
        %v3164 = vpop.f32.mrb[0].mxu0
        %3165 = vdwg.mxu0
        %v3166 = vtanh.pop %v3104
        %v3167 = vtanh.pop %v3107
        %v3168 = vtanh.pop %v3112
        %v3169 = vtanh.pop %v3115
        %v3170 = vtanh.pop %v3120
        %v3171 = vtanh.pop %v3123
        %v3172 = vtanh.pop %v3128
        %v3173 = vtanh.pop %v3131
        %v3174 = vtanh.pop %v3136
        %v3175 = vtanh.pop %v3139
        %v3176 = vtanh.pop %v3144
        %v3177 = vtanh.pop %v3147
        %v3178 = vtanh.pop %v3152
        %v3179 = vtanh.pop %v3155
        %v3180 = vtanh.pop %v3160
        %v3181 = vtanh.pop %v3163
        %v3182 = vld [vmem:[%s386] sm:$0xff]
        %v3183 = vld [vmem:[%s386 + $0x8] sm:$0xff]
        %v3184 = vld [vmem:[%s386 + $0x10] sm:$0xff]
        %v3185 = vld [vmem:[%s386 + $0x18] sm:$0xff]
        %v3186 = vld [vmem:[%s386 + $0x20] sm:$0xff]
        %v3187 = vld [vmem:[%s386 + $0x28] sm:$0xff]
        %v3188 = vld [vmem:[%s386 + $0x30] sm:$0xff]
        %v3189 = vld [vmem:[%s386 + $0x38] sm:$0xff]
        %v3190 = vld [vmem:[%s386 + $0x40] sm:$0xff]
        %v3191 = vld [vmem:[%s386 + $0x48] sm:$0xff]
        %v3192 = vld [vmem:[%s386 + $0x50] sm:$0xff]
        %v3193 = vld [vmem:[%s386 + $0x58] sm:$0xff]
        %v3194 = vld [vmem:[%s386 + $0x60] sm:$0xff]
        %v3195 = vld [vmem:[%s386 + $0x68] sm:$0xff]
        %v3196 = vld [vmem:[%s386 + $0x70] sm:$0xff]
        %v3197 = vld [vmem:[%s386 + $0x78] sm:$0xff]
        %vm3198 = vcmp.gt.f32.partialorder %v3182, 0.5
        %vm3199 = vcmp.gt.f32.partialorder %v3183, 0.5
        %vm3200 = vcmp.gt.f32.partialorder %v3184, 0.5
        %vm3201 = vcmp.gt.f32.partialorder %v3185, 0.5
        %vm3202 = vcmp.gt.f32.partialorder %v3186, 0.5
        %vm3203 = vcmp.gt.f32.partialorder %v3187, 0.5
        %vm3204 = vcmp.gt.f32.partialorder %v3188, 0.5
        %vm3205 = vcmp.gt.f32.partialorder %v3189, 0.5
        %vm3206 = vcmp.gt.f32.partialorder %v3190, 0.5
        %vm3207 = vcmp.gt.f32.partialorder %v3191, 0.5
        %vm3208 = vcmp.gt.f32.partialorder %v3192, 0.5
        %vm3209 = vcmp.gt.f32.partialorder %v3193, 0.5
        %vm3210 = vcmp.gt.f32.partialorder %v3194, 0.5
        %vm3211 = vcmp.gt.f32.partialorder %v3195, 0.5
        %vm3212 = vcmp.gt.f32.partialorder %v3196, 0.5
        %vm3213 = vcmp.gt.f32.partialorder %v3197, 0.5
        %3215 = vset.pattern.permute.xlu0 32
        %3216 = vperm.xlu0 %3215, %v3104
        %v3217 = vpop.permute.xlu0 %3216
        %3220 = vset.pattern.permute.xlu0 32
        %3221 = vperm.xlu0 %3220, %v3107
        %v3222 = vpop.permute.xlu0 %3221
        %3225 = vset.pattern.permute.xlu0 32
        %3226 = vperm.xlu0 %3225, %v3112
        %v3227 = vpop.permute.xlu0 %3226
        %3230 = vset.pattern.permute.xlu0 32
        %3231 = vperm.xlu0 %3230, %v3115
        %v3232 = vpop.permute.xlu0 %3231
        %3235 = vset.pattern.permute.xlu0 32
        %3236 = vperm.xlu0 %3235, %v3120
        %v3237 = vpop.permute.xlu0 %3236
        %3240 = vset.pattern.permute.xlu0 32
        %3241 = vperm.xlu0 %3240, %v3123
        %v3242 = vpop.permute.xlu0 %3241
        %3245 = vset.pattern.permute.xlu0 32
        %3246 = vperm.xlu0 %3245, %v3128
        %v3247 = vpop.permute.xlu0 %3246
        %3250 = vset.pattern.permute.xlu0 32
        %3251 = vperm.xlu0 %3250, %v3131
        %v3252 = vpop.permute.xlu0 %3251
        %3255 = vset.pattern.permute.xlu0 32
        %3256 = vperm.xlu0 %3255, %v3136
        %v3257 = vpop.permute.xlu0 %3256
        %3260 = vset.pattern.permute.xlu0 32
        %3261 = vperm.xlu0 %3260, %v3139
        %v3262 = vpop.permute.xlu0 %3261
        %3265 = vset.pattern.permute.xlu0 32
        %3266 = vperm.xlu0 %3265, %v3144
        %v3267 = vpop.permute.xlu0 %3266
        %3270 = vset.pattern.permute.xlu0 32
        %3271 = vperm.xlu0 %3270, %v3147
        %v3272 = vpop.permute.xlu0 %3271
        %3275 = vset.pattern.permute.xlu0 32
        %3276 = vperm.xlu0 %3275, %v3152
        %v3277 = vpop.permute.xlu0 %3276
        %3280 = vset.pattern.permute.xlu0 32
        %3281 = vperm.xlu0 %3280, %v3155
        %v3282 = vpop.permute.xlu0 %3281
        %3285 = vset.pattern.permute.xlu0 32
        %3286 = vperm.xlu0 %3285, %v3160
        %v3287 = vpop.permute.xlu0 %3286
        %3290 = vset.pattern.permute.xlu0 32
        %3291 = vperm.xlu0 %3290, %v3163
        %v3292 = vpop.permute.xlu0 %3291
        %v3294 = vsel %vm3198, %v3217, -1e+30
        %v3295 = vsel %vm3199, %v3222, -1e+30
        %v3296 = vsel %vm3200, %v3227, -1e+30
        %v3297 = vsel %vm3201, %v3232, -1e+30
        %v3298 = vsel %vm3202, %v3237, -1e+30
        %v3299 = vsel %vm3203, %v3242, -1e+30
        %v3300 = vsel %vm3204, %v3247, -1e+30
        %v3301 = vsel %vm3205, %v3252, -1e+30
        %v3302 = vsel %vm3206, %v3257, -1e+30
        %v3303 = vsel %vm3207, %v3262, -1e+30
        %v3304 = vsel %vm3208, %v3267, -1e+30
        %v3305 = vsel %vm3209, %v3272, -1e+30
        %v3306 = vsel %vm3210, %v3277, -1e+30
        %v3307 = vsel %vm3211, %v3282, -1e+30
        %v3308 = vsel %vm3212, %v3287, -1e+30
        %v3309 = vsel %vm3213, %v3292, -1e+30
        %vm3310 = vcmask 130048
        %v3311 = vsel %vm3310, %v3294, -inf
        %v3312 = vsel %vm3310, %v3295, -inf
        %v3313 = vsel %vm3310, %v3296, -inf
        %v3314 = vsel %vm3310, %v3297, -inf
        %v3315 = vsel %vm3310, %v3298, -inf
        %v3316 = vmax.f32 %v3311, %v3315
        %v3317 = vsel %vm3310, %v3299, -inf
        %v3318 = vmax.f32 %v3312, %v3317
        %v3319 = vsel %vm3310, %v3300, -inf
        %v3320 = vmax.f32 %v3313, %v3319
        %v3321 = vsel %vm3310, %v3301, -inf
        %v3322 = vmax.f32 %v3314, %v3321
        %v3323 = vsel %vm3310, %v3302, -inf
        %v3324 = vmax.f32 %v3316, %v3323
        %v3325 = vsel %vm3310, %v3303, -inf
        %v3326 = vmax.f32 %v3318, %v3325
        %v3327 = vsel %vm3310, %v3304, -inf
        %v3328 = vmax.f32 %v3320, %v3327
        %v3329 = vsel %vm3310, %v3305, -inf
        %v3330 = vmax.f32 %v3322, %v3329
        %v3331 = vsel %vm3310, %v3306, -inf
        %v3332 = vmax.f32 %v3324, %v3331
        %v3333 = vsel %vm3310, %v3307, -inf
        %v3334 = vmax.f32 %v3326, %v3333
        %v3335 = vsel %vm3310, %v3308, -inf
        %v3336 = vmax.f32 %v3328, %v3335
        %v3337 = vsel %vm3310, %v3309, -inf
        %v3338 = vmax.f32 %v3330, %v3337
        %v3339 = vmax.f32 %v3332, %v3334
        %v3340 = vmax.f32 %v3336, %v3338
        %v3341 = vmax.f32 %v3339, %v3340
        %v3342 = vrot.slane %v3341, 4
        %v3343 = vmax.f32 %v3341, %v3342
        %v3344 = vrot.slane %v3343, 2
        %v3345 = vmax.f32 %v3343, %v3344
        %v3346 = vrot.slane %v3345, 1
        %v3347 = vmax.f32 %v3345, %v3346
        %v3348 = vmul.f32 %v3182, %v3347
        %v3349 = vmul.f32 %v3183, %v3347
        %v3350 = vmul.f32 %v3184, %v3347
        %v3351 = vmul.f32 %v3185, %v3347
        %v3352 = vmul.f32 %v3186, %v3347
        %v3353 = vmul.f32 %v3187, %v3347
        %v3354 = vmul.f32 %v3188, %v3347
        %v3355 = vmul.f32 %v3189, %v3347
        %v3356 = vmul.f32 %v3190, %v3347
        %v3357 = vmul.f32 %v3191, %v3347
        %v3358 = vmul.f32 %v3192, %v3347
        %v3359 = vmul.f32 %v3193, %v3347
        %v3360 = vmul.f32 %v3194, %v3347
        %v3361 = vmul.f32 %v3195, %v3347
        %v3362 = vmul.f32 %v3196, %v3347
        %v3363 = vmul.f32 %v3197, %v3347
        %v3364 = vsel %vm3310, %v3348, 0.0
        %3365 = vadd.xlane.f32.xlu0 %v3364
        %v3366 = vpop.xlane.xlu0 %3365
        %v3367 = vsel %vm3310, %v3349, 0.0
        %3368 = vadd.xlane.f32.xlu0 %v3367
        %v3369 = vpop.xlane.xlu0 %3368
        %v3370 = vsel %vm3310, %v3350, 0.0
        %3371 = vadd.xlane.f32.xlu0 %v3370
        %v3372 = vpop.xlane.xlu0 %3371
        %v3373 = vsel %vm3310, %v3351, 0.0
        %3374 = vadd.xlane.f32.xlu0 %v3373
        %v3375 = vpop.xlane.xlu0 %3374
        %v3376 = vsel %vm3310, %v3352, 0.0
        %3377 = vadd.xlane.f32.xlu0 %v3376
        %v3378 = vpop.xlane.xlu0 %3377
        %v3379 = vsel %vm3310, %v3353, 0.0
        %3380 = vadd.xlane.f32.xlu0 %v3379
        %v3381 = vpop.xlane.xlu0 %3380
        %v3382 = vsel %vm3310, %v3354, 0.0
        %3383 = vadd.xlane.f32.xlu0 %v3382
        %v3384 = vpop.xlane.xlu0 %3383
        %v3385 = vsel %vm3310, %v3355, 0.0
        %3386 = vadd.xlane.f32.xlu0 %v3385
        %v3387 = vpop.xlane.xlu0 %3386
        %v3388 = vsel %vm3310, %v3356, 0.0
        %3389 = vadd.xlane.f32.xlu0 %v3388
        %v3390 = vpop.xlane.xlu0 %3389
        %v3391 = vsel %vm3310, %v3357, 0.0
        %3392 = vadd.xlane.f32.xlu0 %v3391
        %v3393 = vpop.xlane.xlu0 %3392
        %v3394 = vsel %vm3310, %v3358, 0.0
        %3395 = vadd.xlane.f32.xlu0 %v3394
        %v3396 = vpop.xlane.xlu0 %3395
        %v3397 = vsel %vm3310, %v3359, 0.0
        %3398 = vadd.xlane.f32.xlu0 %v3397
        %v3399 = vpop.xlane.xlu0 %3398
        %v3400 = vsel %vm3310, %v3360, 0.0
        %3401 = vadd.xlane.f32.xlu0 %v3400
        %v3402 = vpop.xlane.xlu0 %3401
        %v3403 = vsel %vm3310, %v3361, 0.0
        %3404 = vadd.xlane.f32.xlu0 %v3403
        %v3405 = vpop.xlane.xlu0 %3404
        %v3406 = vsel %vm3310, %v3362, 0.0
        %3407 = vadd.xlane.f32.xlu0 %v3406
        %v3408 = vpop.xlane.xlu0 %3407
        %v3409 = vsel %vm3310, %v3363, 0.0
        %3410 = vadd.xlane.f32.xlu0 %v3409
        %v3411 = vpop.xlane.xlu0 %3410
        %v3412 = vsub.f32 %v3104, %v3366
        %v3413 = vsub.f32 %v3107, %v3369
        %v3414 = vsub.f32 %v3112, %v3372
        %v3415 = vsub.f32 %v3115, %v3375
        %v3416 = vsub.f32 %v3120, %v3378
        %v3417 = vsub.f32 %v3123, %v3381
        %v3418 = vsub.f32 %v3128, %v3384
        %v3419 = vsub.f32 %v3131, %v3387
        %v3420 = vsub.f32 %v3136, %v3390
        %v3421 = vsub.f32 %v3139, %v3393
        %v3422 = vsub.f32 %v3144, %v3396
        %v3423 = vsub.f32 %v3147, %v3399
        %v3424 = vsub.f32 %v3152, %v3402
        %v3425 = vsub.f32 %v3155, %v3405
        %v3426 = vsub.f32 %v3160, %v3408
        %v3427 = vsub.f32 %v3163, %v3411
        %v3428 = vmul.f32 %v3412, 1.442695
        %v3429 = vpow.pop %v3428
        %v3430 = vmul.f32 %v3413, 1.442695
        %v3431 = vpow.pop %v3430
        %v3432 = vmul.f32 %v3414, 1.442695
        %v3433 = vpow.pop %v3432
        %v3434 = vmul.f32 %v3415, 1.442695
        %v3435 = vpow.pop %v3434
        %v3436 = vmul.f32 %v3416, 1.442695
        %v3437 = vpow.pop %v3436
        %v3438 = vmul.f32 %v3417, 1.442695
        %v3439 = vpow.pop %v3438
        %v3440 = vmul.f32 %v3418, 1.442695
        %v3441 = vpow.pop %v3440
        %v3442 = vmul.f32 %v3419, 1.442695
        %v3443 = vpow.pop %v3442
        %v3444 = vmul.f32 %v3420, 1.442695
        %v3445 = vpow.pop %v3444
        %v3446 = vmul.f32 %v3421, 1.442695
        %v3447 = vpow.pop %v3446
        %v3448 = vmul.f32 %v3422, 1.442695
        %v3449 = vpow.pop %v3448
        %v3450 = vmul.f32 %v3423, 1.442695
        %v3451 = vpow.pop %v3450
        %v3452 = vmul.f32 %v3424, 1.442695
        %v3453 = vpow.pop %v3452
        %v3454 = vmul.f32 %v3425, 1.442695
        %v3455 = vpow.pop %v3454
        %v3456 = vmul.f32 %v3426, 1.442695
        %v3457 = vpow.pop %v3456
        %v3458 = vmul.f32 %v3427, 1.442695
        %v3459 = vpow.pop %v3458
        %3461 = vset.pattern.permute.xlu0 32
        %3462 = vperm.xlu0 %3461, %v3429
        %v3463 = vpop.permute.xlu0 %3462
        %3466 = vset.pattern.permute.xlu0 32
        %3467 = vperm.xlu0 %3466, %v3431
        %v3468 = vpop.permute.xlu0 %3467
        %3471 = vset.pattern.permute.xlu0 32
        %3472 = vperm.xlu0 %3471, %v3433
        %v3473 = vpop.permute.xlu0 %3472
        %3476 = vset.pattern.permute.xlu0 32
        %3477 = vperm.xlu0 %3476, %v3435
        %v3478 = vpop.permute.xlu0 %3477
        %3481 = vset.pattern.permute.xlu0 32
        %3482 = vperm.xlu0 %3481, %v3437
        %v3483 = vpop.permute.xlu0 %3482
        %3486 = vset.pattern.permute.xlu0 32
        %3487 = vperm.xlu0 %3486, %v3439
        %v3488 = vpop.permute.xlu0 %3487
        %3491 = vset.pattern.permute.xlu0 32
        %3492 = vperm.xlu0 %3491, %v3441
        %v3493 = vpop.permute.xlu0 %3492
        %3496 = vset.pattern.permute.xlu0 32
        %3497 = vperm.xlu0 %3496, %v3443
        %v3498 = vpop.permute.xlu0 %3497
        %3501 = vset.pattern.permute.xlu0 32
        %3502 = vperm.xlu0 %3501, %v3445
        %v3503 = vpop.permute.xlu0 %3502
        %3506 = vset.pattern.permute.xlu0 32
        %3507 = vperm.xlu0 %3506, %v3447
        %v3508 = vpop.permute.xlu0 %3507
        %3511 = vset.pattern.permute.xlu0 32
        %3512 = vperm.xlu0 %3511, %v3449
        %v3513 = vpop.permute.xlu0 %3512
        %3516 = vset.pattern.permute.xlu0 32
        %3517 = vperm.xlu0 %3516, %v3451
        %v3518 = vpop.permute.xlu0 %3517
        %3521 = vset.pattern.permute.xlu0 32
        %3522 = vperm.xlu0 %3521, %v3453
        %v3523 = vpop.permute.xlu0 %3522
        %3526 = vset.pattern.permute.xlu0 32
        %3527 = vperm.xlu0 %3526, %v3455
        %v3528 = vpop.permute.xlu0 %3527
        %3531 = vset.pattern.permute.xlu0 32
        %3532 = vperm.xlu0 %3531, %v3457
        %v3533 = vpop.permute.xlu0 %3532
        %3536 = vset.pattern.permute.xlu0 32
        %3537 = vperm.xlu0 %3536, %v3459
        %v3538 = vpop.permute.xlu0 %3537
        %v3540 = vmul.f32 %v3463, %v2974
        %v3541 = vmul.f32 %v3468, %v2975
        %v3542 = vmul.f32 %v3473, %v2976
        %v3543 = vmul.f32 %v3478, %v2977
        %v3544 = vmul.f32 %v3483, %v2978
        %v3545 = vmul.f32 %v3488, %v2979
        %v3546 = vmul.f32 %v3493, %v2980
        %v3547 = vmul.f32 %v3498, %v2981
        %v3548 = vmul.f32 %v3503, %v2982
        %v3549 = vmul.f32 %v3508, %v2983
        %v3550 = vmul.f32 %v3513, %v2984
        %v3551 = vmul.f32 %v3518, %v2985
        %v3552 = vmul.f32 %v3523, %v2986
        %v3553 = vmul.f32 %v3528, %v2987
        %v3554 = vmul.f32 %v3533, %v2988
        %v3555 = vmul.f32 %v3538, %v2989
        %3572 = vrot.lane.b32.xlu0 %v3540, 96
        %v3573 = vpop.permute.xlu0 %3572
        %3574 = vrot.lane.b32.xlu0 %v3541, 96
        %v3575 = vpop.permute.xlu0 %3574
        %3576 = vrot.lane.b32.xlu0 %v3542, 96
        %v3577 = vpop.permute.xlu0 %3576
        %3578 = vrot.lane.b32.xlu0 %v3543, 96
        %v3579 = vpop.permute.xlu0 %3578
        %3580 = vrot.lane.b32.xlu0 %v3544, 96
        %v3581 = vpop.permute.xlu0 %3580
        %3582 = vrot.lane.b32.xlu0 %v3545, 96
        %v3583 = vpop.permute.xlu0 %3582
        %3584 = vrot.lane.b32.xlu0 %v3546, 96
        %v3585 = vpop.permute.xlu0 %3584
        %3586 = vrot.lane.b32.xlu0 %v3547, 96
        %v3587 = vpop.permute.xlu0 %3586
        %3588 = vrot.lane.b32.xlu0 %v3548, 96
        %v3589 = vpop.permute.xlu0 %3588
        %3590 = vrot.lane.b32.xlu0 %v3549, 96
        %v3591 = vpop.permute.xlu0 %3590
        %3592 = vrot.lane.b32.xlu0 %v3550, 96
        %v3593 = vpop.permute.xlu0 %3592
        %3594 = vrot.lane.b32.xlu0 %v3551, 96
        %v3595 = vpop.permute.xlu0 %3594
        %3596 = vrot.lane.b32.xlu0 %v3552, 96
        %v3597 = vpop.permute.xlu0 %3596
        %3598 = vrot.lane.b32.xlu0 %v3553, 96
        %v3599 = vpop.permute.xlu0 %3598
        %3600 = vrot.lane.b32.xlu0 %v3554, 96
        %v3601 = vpop.permute.xlu0 %3600
        %3602 = vrot.lane.b32.xlu0 %v3555, 96
        %v3603 = vpop.permute.xlu0 %3602
        %3636 = vrot.lane.b32.xlu0 %v3166, 32
        %v3637 = vpop.permute.xlu0 %3636
        %3638 = vrot.lane.b32.xlu0 %v3167, 32
        %v3639 = vpop.permute.xlu0 %3638
        %3640 = vrot.lane.b32.xlu0 %v3168, 32
        %v3641 = vpop.permute.xlu0 %3640
        %3642 = vrot.lane.b32.xlu0 %v3169, 32
        %v3643 = vpop.permute.xlu0 %3642
        %3644 = vrot.lane.b32.xlu0 %v3170, 32
        %v3645 = vpop.permute.xlu0 %3644
        %3646 = vrot.lane.b32.xlu0 %v3171, 32
        %v3647 = vpop.permute.xlu0 %3646
        %3648 = vrot.lane.b32.xlu0 %v3172, 32
        %v3649 = vpop.permute.xlu0 %3648
        %3650 = vrot.lane.b32.xlu0 %v3173, 32
        %v3651 = vpop.permute.xlu0 %3650
        %3652 = vrot.lane.b32.xlu0 %v3174, 32
        %v3653 = vpop.permute.xlu0 %3652
        %3654 = vrot.lane.b32.xlu0 %v3175, 32
        %v3655 = vpop.permute.xlu0 %3654
        %3656 = vrot.lane.b32.xlu0 %v3176, 32
        %v3657 = vpop.permute.xlu0 %3656
        %3658 = vrot.lane.b32.xlu0 %v3177, 32
        %v3659 = vpop.permute.xlu0 %3658
        %3660 = vrot.lane.b32.xlu0 %v3178, 32
        %v3661 = vpop.permute.xlu0 %3660
        %3662 = vrot.lane.b32.xlu0 %v3179, 32
        %v3663 = vpop.permute.xlu0 %3662
        %3664 = vrot.lane.b32.xlu0 %v3180, 32
        %v3665 = vpop.permute.xlu0 %3664
        %3666 = vrot.lane.b32.xlu0 %v3181, 32
        %v3667 = vpop.permute.xlu0 %3666
        %3684 = vrot.lane.b32.xlu0 %v3429, 32
        %v3685 = vpop.permute.xlu0 %3684
        %3686 = vrot.lane.b32.xlu0 %v3431, 32
        %v3687 = vpop.permute.xlu0 %3686
        %3688 = vrot.lane.b32.xlu0 %v3433, 32
        %v3689 = vpop.permute.xlu0 %3688
        %3690 = vrot.lane.b32.xlu0 %v3435, 32
        %v3691 = vpop.permute.xlu0 %3690
        %3692 = vrot.lane.b32.xlu0 %v3437, 32
        %v3693 = vpop.permute.xlu0 %3692
        %3694 = vrot.lane.b32.xlu0 %v3439, 32
        %v3695 = vpop.permute.xlu0 %3694
        %3696 = vrot.lane.b32.xlu0 %v3441, 32
        %v3697 = vpop.permute.xlu0 %3696
        %3698 = vrot.lane.b32.xlu0 %v3443, 32
        %v3699 = vpop.permute.xlu0 %3698
        %3700 = vrot.lane.b32.xlu0 %v3445, 32
        %v3701 = vpop.permute.xlu0 %3700
        %3702 = vrot.lane.b32.xlu0 %v3447, 32
        %v3703 = vpop.permute.xlu0 %3702
        %3704 = vrot.lane.b32.xlu0 %v3449, 32
        %v3705 = vpop.permute.xlu0 %3704
        %3706 = vrot.lane.b32.xlu0 %v3451, 32
        %v3707 = vpop.permute.xlu0 %3706
        %3708 = vrot.lane.b32.xlu0 %v3453, 32
        %v3709 = vpop.permute.xlu0 %3708
        %3710 = vrot.lane.b32.xlu0 %v3455, 32
        %v3711 = vpop.permute.xlu0 %3710
        %3712 = vrot.lane.b32.xlu0 %v3457, 32
        %v3713 = vpop.permute.xlu0 %3712
        %3714 = vrot.lane.b32.xlu0 %v3459, 32
        %v3715 = vpop.permute.xlu0 %3714
        %v3732 = vsel %vm615, %v3573, %v3637
        %v3733 = vsel %vm615, %v3575, %v3639
        %v3734 = vsel %vm615, %v3577, %v3641
        %v3735 = vsel %vm615, %v3579, %v3643
        %v3736 = vsel %vm615, %v3581, %v3645
        %v3737 = vsel %vm615, %v3583, %v3647
        %v3738 = vsel %vm615, %v3585, %v3649
        %v3739 = vsel %vm615, %v3587, %v3651
        %v3740 = vsel %vm615, %v3589, %v3653
        %v3741 = vsel %vm615, %v3591, %v3655
        %v3742 = vsel %vm615, %v3593, %v3657
        %v3743 = vsel %vm615, %v3595, %v3659
        %v3744 = vsel %vm615, %v3597, %v3661
        %v3745 = vsel %vm615, %v3599, %v3663
        %v3746 = vsel %vm615, %v3601, %v3665
        %v3747 = vsel %vm615, %v3603, %v3667
        %vm3748 = vcmask 523264
        %v3749 = vsel %vm3748, %v3732, %v3685
        %v3750 = vsel %vm3748, %v3733, %v3687
        %v3751 = vsel %vm3748, %v3734, %v3689
        %v3752 = vsel %vm3748, %v3735, %v3691
        %v3753 = vsel %vm3748, %v3736, %v3693
        %v3754 = vsel %vm3748, %v3737, %v3695
        %v3755 = vsel %vm3748, %v3738, %v3697
        %v3756 = vsel %vm3748, %v3739, %v3699
        %v3757 = vsel %vm3748, %v3740, %v3701
        %v3758 = vsel %vm3748, %v3741, %v3703
        %v3759 = vsel %vm3748, %v3742, %v3705
        %v3760 = vsel %vm3748, %v3743, %v3707
        %v3761 = vsel %vm3748, %v3744, %v3709
        %v3762 = vsel %vm3748, %v3745, %v3711
        %v3763 = vsel %vm3748, %v3746, %v3713
        %v3764 = vsel %vm3748, %v3747, %v3715
        %vm3765 = vcmask 531456
        %v3766 = vsel %vm3765, %v3749, 0.0
        %v3767 = vsel %vm3765, %v3750, 0.0
        %v3768 = vsel %vm3765, %v3751, 0.0
        %v3769 = vsel %vm3765, %v3752, 0.0
        %v3770 = vsel %vm3765, %v3753, 0.0
        %v3771 = vsel %vm3765, %v3754, 0.0
        %v3772 = vsel %vm3765, %v3755, 0.0
        %v3773 = vsel %vm3765, %v3756, 0.0
        %v3774 = vsel %vm3765, %v3757, 0.0
        %v3775 = vsel %vm3765, %v3758, 0.0
        %v3776 = vsel %vm3765, %v3759, 0.0
        %v3777 = vsel %vm3765, %v3760, 0.0
        %v3778 = vsel %vm3765, %v3761, 0.0
        %v3779 = vsel %vm3765, %v3762, 0.0
        %v3780 = vsel %vm3765, %v3763, 0.0
        %v3781 = vsel %vm3765, %v3764, 0.0
        %v3782 = vpack.c.bf16 %v3767, %v3766
        %v3783 = vpack.c.bf16 %v3769, %v3768
        %v3784 = vpack.c.bf16 %v3771, %v3770
        %v3785 = vpack.c.bf16 %v3773, %v3772
        %v3786 = vpack.c.bf16 %v3775, %v3774
        %v3787 = vpack.c.bf16 %v3777, %v3776
        %v3788 = vpack.c.bf16 %v3779, %v3778
        %v3789 = vpack.c.bf16 %v3781, %v3780
        %v3790 = vld [vmem:[%s381] sm:$0xf]
        %v3791 = vld [vmem:[%s381 + $0x4] sm:$0xf]
        %v3794 = vunpack.c.l.b16 %v3790
        %v3795 = vunpack.c.l.b16 %v3791
        %v3796 = vpack.c.b16 %v3795, %v3794
        %3798 = vmatprep.subr.bf16.mxu0 0
        %3799 = vmatpush1.bf16.msra.mxu0 %v3782
        %3800 = vmatprep.subr.bf16.mxu0 0
        %3801 = vmatpush1.bf16.msra.mxu0 %v3783
        %3802 = vmatprep.subr.bf16.mxu0 0
        %3803 = vmatpush1.bf16.msra.mxu0 %v3784
        %3804 = vmatprep.subr.bf16.mxu0 0
        %3805 = vmatpush1.bf16.msra.mxu0 %v3785
        %3806 = vmatprep.subr.bf16.mxu0 0
        %3807 = vmatpush1.bf16.msra.mxu0 %v3786
        %3808 = vmatprep.subr.bf16.mxu0 0
        %3809 = vmatpush1.bf16.msra.mxu0 %v3787
        %3810 = vmatprep.subr.bf16.mxu0 0
        %3811 = vmatpush1.bf16.msra.mxu0 %v3788
        %3812 = vmatprep.subr.bf16.mxu0 0
        %3813 = vmatpush1.bf16.msra.mxu0 %v3789
        %3814 = vmatprep.subr.bf16.mxu0 0
        %3815 = vmatpush1.bf16.msra.mxu0 0
        %3816 = vmatprep.subr.bf16.mxu0 0
        %3817 = vmatpush1.bf16.msra.mxu0 0
        %3818 = vmatprep.subr.bf16.mxu0 0
        %3819 = vmatpush1.bf16.msra.mxu0 0
        %3820 = vmatprep.subr.bf16.mxu0 0
        %3821 = vmatpush1.bf16.msra.mxu0 0
        %3822 = vmatprep.subr.bf16.mxu0 0
        %3823 = vmatpush1.bf16.msra.mxu0 0
        %3824 = vmatprep.subr.bf16.mxu0 0
        %3825 = vmatpush1.bf16.msra.mxu0 0
        %3826 = vmatprep.subr.bf16.mxu0 0
        %3827 = vmatpush1.bf16.msra.mxu0 0
        %3828 = vmatprep.subr.bf16.mxu0 0
        %3829 = vmatpush1.bf16.msra.mxu0 0
        %3830 = vmatprep.mubr.bf16.mxu0 0
        %3831 = vmatmul.mubr.bf16.gmra.mrb[0].mxu0 %v3796
        %v3832 = vpop.f32.mrb[0].mxu0
        %v3833 = vadd.f32 0.0, %v3832
        %v3834 = vpop.f32.mrb[0].mxu0
        %v3835 = vpop.f32.mrb[0].mxu0
        %v3836 = vadd.f32 0.0, %v3835
        %v3837 = vpop.f32.mrb[0].mxu0
        %3838 = vdwg.mxu0
        %v3839 = vmax.f32 %v3833, 1e-30
        %v3840 = vmax.f32 %v3836, 1e-30
        %v3841 = vrcp.pop %v3839
        %v3842 = vrcp.pop %v3840
        %3844 = vset.pattern.permute.xlu0 64
        %3845 = vperm.xlu0 %3844, %v3841
        %v3846 = vpop.permute.xlu0 %3845
        %3849 = vset.pattern.permute.xlu0 64
        %3850 = vperm.xlu0 %3849, %v3842
        %v3851 = vpop.permute.xlu0 %3850
        %v3853 = vmul.f32 %v3833, %v3846
        %v3854 = vmul.f32 %v3836, %v3851
        %3857 = vrot.lane.b32.xlu0 %v3833, 96
        %v3858 = vpop.permute.xlu0 %3857
        %3859 = vrot.lane.b32.xlu0 %v3836, 96
        %v3860 = vpop.permute.xlu0 %3859
        %v3863 = vmul.f32 %v3853, %v3858
        %v3864 = vmul.f32 %v3854, %v3860
        %v3865 = vtanh.pop %v3863
        %v3866 = vtanh.pop %v3864
        %v3867 = vsel %vm615, %v3865, 0.0
        %v3868 = vsel %vm615, %v3866, 0.0
        %3869 = vst [vmem:[%s371] sm:$0xff] %v3867
        %3870 = vst [vmem:[%s371 + $0x8] sm:$0xff] %v3868
        %s3871 = sand.u32 %s240, 1
        %s3872 = scalar_lea.sflag [#allocation3], %s3871
        %s3873 = sand.u32 %s240, 1
        %s3874 = smul.addr %s3873, 16
        %s3875 = scalar_lea.vmem [#allocation2], %s3874
        // Predicated region
        $region57: #{tpu_custom_call.1} parent=55 // pred_check
          %p3876 = pneg %p250
        $region58: #{tpu_custom_call.1} parent=55 // pred_check_branch
          %3878 = sbr.rel (%p3876) target = $region60
        $region59: #{tpu_custom_call.1} parent=55 // pred_region
          %s3879 = smul.u32 2, %s23
          %s3881 = ssub.s32 256, 256
          %3882 = vsyncadd %s3872, %s3881
          %s3883 = smul.addr %s3879, 128
          %s3884 = scalar_lea.hbm %s9, %s3883
          %s3885 = sshll.u32 %s3875, 4
          %s3886 = int_to_ptr.vmem [resolvable:$true] %s3885
          %3891 = dma.vmem_to_hbm [thread:$0]  %s3886, 256, %s3884, %s3872, 128, 128, 8
        $region60: #{tpu_custom_call.1} parent=55 // pred_fallthru
          _
      $region56: #{tpu_custom_call.1} parent=5 // pred_fallthru
        _
      %p3892 = scmp.le.s32.totalorder 2, %s18
      // Predicated region
      $region61: #{tpu_custom_call.1} parent=5 // pred_check
        %p3893 = pneg %p3892
      $region62: #{tpu_custom_call.1} parent=5 // pred_check_branch
        %3895 = sbr.rel (%p3893) target = $region64
      $region63: #{tpu_custom_call.1} parent=5 // pred_region
        %s3896 = ssub.s32 %s18, 2
        // Predicated region
        $region65: #{tpu_custom_call.1} parent=63 // pred_check
          %p3897 = pneg %p256
        $region66: #{tpu_custom_call.1} parent=63 // pred_check_branch
          %3899 = sbr.rel (%p3897) target = $region68
        $region67: #{tpu_custom_call.1} parent=63 // pred_region
          %s3900 = sand.u32 %s241, 1
          %s3901 = scalar_lea.sflag [#allocation3], %s3900
          %s3902 = sand.u32 %s241, 1
          %s3903 = smul.addr %s3902, 16
          %s3904 = scalar_lea.vmem [#allocation2], %s3903
          %3905 = dma.done %s3901, 256
        $region68: #{tpu_custom_call.1} parent=63 // pred_fallthru
          _
      $region64: #{tpu_custom_call.1} parent=5 // pred_fallthru
        _
    $region6: #{tpu_custom_call.1} parent=1 // loop_footer
      %s22 = sadd.s32 1, %s18
    $region7: #{tpu_custom_call.1} parent=1 // loop_footer_branch
      %17 = sbr.rel target = $region3
    $region8: #{tpu_custom_call.1} parent=1 // loop_exit
      _
    %3906 = vsyncpa [#allocation3], 1
    %s3907 = scalar_lea.sflag [#allocation3], 1
    %3908 = vsyncpa %s3907, 1

</llo_original>
